<compile_context>
chip_gen: v6e
topology: v6e:2x2x1
jax: 0.10.0
libtpu: 0.0.40
codegen_flags: <defaults>
</compile_context>

<pallas_src>
import functools
import math

import jax
import jax.numpy as jnp
import numpy as np
from jax.experimental import pallas as pl

# ---- model config (ModelArgs) ----
DIM = 16
N_HEADS = 4
HEAD_DIM = DIM // N_HEADS
HIDDEN = 4 * DIM
SEQ = 16
BATCH = 2
LN_EPS = 1e-5


def _round8(n):
    return (n + 7) // 8 * 8


# ---- parameter-slab row layout (all bands start on 8-row sublane-tile boundaries) ----
_ROW_LN1_W, _ROW_LN1_B, _ROW_LN2_W, _ROW_LN2_B, _ROW_B1, _ROW_B2 = 0, 1, 2, 3, 4, 5
_ROW_WQKV = 8
_ROW_WO = _ROW_WQKV + _round8(DIM)         # 24
_ROW_W1 = _ROW_WO + _round8(DIM)           # 40
_ROW_W2 = _ROW_W1 + _round8(DIM)           # 56
_ROW_SEG = _ROW_W2 + _round8(HIDDEN)       # 120
_ROW_EXP = _ROW_SEG + _round8(DIM)         # 136
_SLAB_ROWS = _round8(_ROW_EXP + N_HEADS)   # 144
_SLAB_LANES = 128


def _layer_norm(v, w, b):
    """Single-pass LN: the two lane reductions are independent (shorter dep chain)."""
    inv_n = 1.0 / v.shape[-1]
    s1 = jnp.sum(v, axis=-1, keepdims=True)
    s2 = jnp.sum(v * v, axis=-1, keepdims=True)
    mu = s1 * inv_n
    var = s2 * inv_n - mu * mu
    return (v - mu) * (jax.lax.rsqrt(var + LN_EPS) * w) + b


def transformer_block_kernel(x_ref, p_ref, out_ref, *, batch, seq, n_heads, head_dim):
    dim = n_heads * head_dim
    hidden = 4 * dim
    rows = batch * seq

    # ---- static views of the packed parameter slab (VMEM loads, no extra DMAs) ----
    ln1_w = p_ref[_ROW_LN1_W:_ROW_LN1_W + 1, 0:dim]
    ln1_b = p_ref[_ROW_LN1_B:_ROW_LN1_B + 1, 0:dim]
    ln2_w = p_ref[_ROW_LN2_W:_ROW_LN2_W + 1, 0:dim]
    ln2_b = p_ref[_ROW_LN2_B:_ROW_LN2_B + 1, 0:dim]
    b1 = p_ref[_ROW_B1:_ROW_B1 + 1, 0:hidden]
    b2 = p_ref[_ROW_B2:_ROW_B2 + 1, 0:dim]
    wqkv = p_ref[_ROW_WQKV:_ROW_WQKV + dim, 0:3 * dim]       # q cols pre-scaled
    wo = p_ref[_ROW_WO:_ROW_WO + dim, 0:dim]
    w1 = p_ref[_ROW_W1:_ROW_W1 + dim, 0:hidden]
    w2 = p_ref[_ROW_W2:_ROW_W2 + hidden, 0:dim]
    seg = p_ref[_ROW_SEG:_ROW_SEG + dim, 0:n_heads]          # (D, H) head indicator
    expand = p_ref[_ROW_EXP:_ROW_EXP + n_heads, 0:dim]       # (H, D) = seg.T

    x = x_ref[...]                                           # (B*S, D)

    # ---- attention_norm ----
    xn = _layer_norm(x, ln1_w, ln1_b)

    # ---- fused QKV projection (one MXU sequence) ----
    qkv = jnp.dot(xn, wqkv, preferred_element_type=jnp.float32)    # (B*S, 3D)
    q = qkv[:, 0:dim].reshape(batch, seq, dim)
    k = qkv[:, dim:2 * dim].reshape(batch, seq, dim)
    v = qkv[:, 2 * dim:3 * dim].reshape(batch, seq, dim)

    # ---- per-head scores, heads kept in the lane axis ----
    # prod[b,q,k,c] = q[b,q,c] * k[b,k,c];  scores[...,h] = sum_{c in head h} prod[...,c]
    prod = q[:, :, None, :] * k[:, None, :, :]                     # (B, Sq, Sk, D)
    scores = jnp.dot(prod.reshape(rows * seq, dim), seg,
                     preferred_element_type=jnp.float32)           # (B*Sq*Sk, H)
    scores = scores.reshape(rows, seq, n_heads)                    # (B*Sq, Sk, H)

    # ---- softmax over keys (sublane axis); reciprocal on the EUP ----
    m = jnp.max(scores, axis=1, keepdims=True)
    e = jnp.exp(scores - m)
    p = e * pl.reciprocal(jnp.sum(e, axis=1, keepdims=True), approx=True)

    # ---- expand head probs back to the feature axis and weight the values ----
    p_exp = jnp.dot(p.reshape(rows * seq, n_heads), expand,
                    preferred_element_type=jnp.float32)            # (B*Sq*Sk, D)
    p_exp = p_exp.reshape(batch, seq, seq, dim)
    attn = jnp.sum(p_exp * v[:, None, :, :], axis=2)               # (B, Sq, D)
    attn = attn.reshape(rows, dim)

    # ---- output projection + first residual ----
    h_res = x + jnp.dot(attn, wo, preferred_element_type=jnp.float32)

    # ---- ffn_norm ----
    hn = _layer_norm(h_res, ln2_w, ln2_b)

    # ---- feed forward: w2(gelu_tanh(w1(hn))) ----
    g = jnp.dot(hn, w1, preferred_element_type=jnp.float32) + b1
    g = 0.5 * g * (1.0 + jnp.tanh(0.7978845608028654 * (g + 0.044715 * g * g * g)))
    ffn = jnp.dot(g, w2, preferred_element_type=jnp.float32) + b2

    # ---- second residual ----
    out_ref[...] = h_res + ffn


def _pack_param_slab(params):
    """Pack every parameter (plus the two constant head matrices) into one lane-dense
    (144, 128) f32 slab so the kernel sees a single parameter DMA."""
    scale = 1.0 / math.sqrt(HEAD_DIM)
    wqkv = jnp.concatenate(
        [params["wqT"] * scale, params["wkT"], params["wvT"]], axis=1)   # (D, 3D)

    seg = np.zeros((DIM, N_HEADS), np.float32)
    for h in range(N_HEADS):
        seg[h * HEAD_DIM:(h + 1) * HEAD_DIM, h] = 1.0

    slab = jnp.zeros((_SLAB_ROWS, _SLAB_LANES), jnp.float32)
    slab = slab.at[_ROW_LN1_W, :DIM].set(params["ln1_w"].reshape(-1))
    slab = slab.at[_ROW_LN1_B, :DIM].set(params["ln1_b"].reshape(-1))
    slab = slab.at[_ROW_LN2_W, :DIM].set(params["ln2_w"].reshape(-1))
    slab = slab.at[_ROW_LN2_B, :DIM].set(params["ln2_b"].reshape(-1))
    slab = slab.at[_ROW_B1, :HIDDEN].set(params["b1"].reshape(-1))
    slab = slab.at[_ROW_B2, :DIM].set(params["b2"].reshape(-1))
    slab = slab.at[_ROW_WQKV:_ROW_WQKV + DIM, :3 * DIM].set(wqkv)
    slab = slab.at[_ROW_WO:_ROW_WO + DIM, :DIM].set(params["woT"])
    slab = slab.at[_ROW_W1:_ROW_W1 + DIM, :HIDDEN].set(params["w1T"])
    slab = slab.at[_ROW_W2:_ROW_W2 + HIDDEN, :DIM].set(params["w2T"])
    slab = slab.at[_ROW_SEG:_ROW_SEG + DIM, :N_HEADS].set(jnp.asarray(seg))
    slab = slab.at[_ROW_EXP:_ROW_EXP + N_HEADS, :DIM].set(jnp.asarray(seg.T))
    return slab


def transformer_block(x, params):
    """x: (B, S, D) float32.  params: dict of f32 arrays (see _init_params)."""
    B, S, D = x.shape
    slab = _pack_param_slab(params)

    kernel = functools.partial(
        transformer_block_kernel,
        batch=B, seq=S, n_heads=N_HEADS, head_dim=HEAD_DIM,
    )

    # Single grid step: no grid, no BlockSpecs -> both operands are whole-array VMEM
    # residents (2 input DMAs + 1 output DMA, < 100 KB total footprint).
    out2d = pl.pallas_call(
        kernel,
        out_shape=jax.ShapeDtypeStruct((B * S, D), jnp.float32),
    )(x.reshape(B * S, D), slab)
    return out2d.reshape(B, S, D)


def _init_params(key):
    """Deterministic synthetic params matching the module's shapes.
    Linear weights stored pre-transposed as (in, out); LayerNorm = ones/zeros
    (PyTorch default init) but kept as explicit arrays."""
    ks = jax.random.split(key, 8)
    s = 1.0 / math.sqrt(DIM)
    sh = 1.0 / math.sqrt(HIDDEN)
    return {
        "ln1_w": jnp.ones((1, DIM), jnp.float32),
        "ln1_b": jnp.zeros((1, DIM), jnp.float32),
        "wqT": jax.random.uniform(ks[0], (DIM, DIM), jnp.float32, -s, s),
        "wkT": jax.random.uniform(ks[1], (DIM, DIM), jnp.float32, -s, s),
        "wvT": jax.random.uniform(ks[2], (DIM, DIM), jnp.float32, -s, s),
        "woT": jax.random.uniform(ks[3], (DIM, DIM), jnp.float32, -s, s),
        "ln2_w": jnp.ones((1, DIM), jnp.float32),
        "ln2_b": jnp.zeros((1, DIM), jnp.float32),
        "w1T": jax.random.uniform(ks[4], (DIM, HIDDEN), jnp.float32, -s, s),
        "b1": jax.random.uniform(ks[5], (1, HIDDEN), jnp.float32, -s, s),
        "w2T": jax.random.uniform(ks[6], (HIDDEN, DIM), jnp.float32, -sh, sh),
        "b2": jax.random.uniform(ks[7], (1, DIM), jnp.float32, -sh, sh),
    }


def _reference(x, p):
    """Pure-JAX reference replicating the PyTorch forward (eval mode, no causal mask,
    exact erf GELU as in nn.GELU())."""
    def ln(v, w, b):
        mu = jnp.mean(v, axis=-1, keepdims=True)
        var = jnp.mean((v - mu) ** 2, axis=-1, keepdims=True)
        return (v - mu) / jnp.sqrt(var + LN_EPS) * w[0] + b[0]

    B, S, D = x.shape
    xn = ln(x, p["ln1_w"], p["ln1_b"])
    q = xn @ p["wqT"]
    k = xn @ p["wkT"]
    v = xn @ p["wvT"]
    q = q.reshape(B, S, N_HEADS, HEAD_DIM).transpose(0, 2, 1, 3)
    k = k.reshape(B, S, N_HEADS, HEAD_DIM).transpose(0, 2, 1, 3)
    v = v.reshape(B, S, N_HEADS, HEAD_DIM).transpose(0, 2, 1, 3)
    s = jnp.einsum("bhqd,bhkd->bhqk", q, k) / math.sqrt(HEAD_DIM)
    a = jax.nn.softmax(s, axis=-1)
    o = jnp.einsum("bhqk,bhkd->bhqd", a, v)
    o = o.transpose(0, 2, 1, 3).reshape(B, S, D)
    h = x + o @ p["woT"]
    hn = ln(h, p["ln2_w"], p["ln2_b"])
    g = hn @ p["w1T"] + p["b1"][0]
    g = 0.5 * g * (1.0 + jax.lax.erf(g / math.sqrt(2.0)))
    return h + (g @ p["w2T"] + p["b2"][0])


if __name__ == "__main__":
    key = jax.random.PRNGKey(0)
    kx, kp = jax.random.split(key)
    x = jax.random.normal(kx, (BATCH, SEQ, DIM), jnp.float32)
    params = _init_params(kp)

    out = transformer_block(x, params)
    out = jax.block_until_ready(out)

    ref = _reference(x, params)
    assert out.shape == (BATCH, SEQ, DIM)
    # Tolerance absorbs (a) the approximate-reciprocal softmax normalization (EUP vrcp,
    # ~1e-3 rel) and (b) tanh-approximation GELU vs exact erf GELU (~3e-4 abs per
    # activation). Everything else is exact f32.
    np.testing.assert_allclose(np.asarray(out), np.asarray(ref), rtol=2e-3, atol=2e-3)

    print("KERNEL_OK")
</pallas_src>

<mosaic_0001>
module attributes {stable_mosaic.version = 11 : i64} {
  func.func @transformer_block_kernel(%arg0: memref<32x16xf32, #tpu.memory_space<vmem>>, %arg1: memref<144x128xf32, #tpu.memory_space<vmem>>, %arg2: memref<32x16xf32, #tpu.memory_space<vmem>>) attributes {dimension_semantics = [], scalar_prefetch = 0 : i64, scratch_operands = 0 : i64, tpu.core_type = #tpu.core_type<tc>} {
    %c0 = arith.constant 0 : index
    %c0_0 = arith.constant 0 : index
    %0 = vector.load %arg1[%c0, %c0_0] : memref<144x128xf32, #tpu.memory_space<vmem>>, vector<1x16xf32>
    %c1 = arith.constant 1 : index
    %c0_1 = arith.constant 0 : index
    %1 = vector.load %arg1[%c1, %c0_1] : memref<144x128xf32, #tpu.memory_space<vmem>>, vector<1x16xf32>
    %c2 = arith.constant 2 : index
    %c0_2 = arith.constant 0 : index
    %2 = vector.load %arg1[%c2, %c0_2] : memref<144x128xf32, #tpu.memory_space<vmem>>, vector<1x16xf32>
    %c3 = arith.constant 3 : index
    %c0_3 = arith.constant 0 : index
    %3 = vector.load %arg1[%c3, %c0_3] : memref<144x128xf32, #tpu.memory_space<vmem>>, vector<1x16xf32>
    %c4 = arith.constant 4 : index
    %c0_4 = arith.constant 0 : index
    %4 = vector.load %arg1[%c4, %c0_4] : memref<144x128xf32, #tpu.memory_space<vmem>>, vector<1x64xf32>
    %c5 = arith.constant 5 : index
    %c0_5 = arith.constant 0 : index
    %5 = vector.load %arg1[%c5, %c0_5] : memref<144x128xf32, #tpu.memory_space<vmem>>, vector<1x16xf32>
    %c8 = arith.constant 8 : index
    %c0_6 = arith.constant 0 : index
    %6 = vector.load %arg1[%c8, %c0_6] : memref<144x128xf32, #tpu.memory_space<vmem>>, vector<16x48xf32>
    %c24 = arith.constant 24 : index
    %c0_7 = arith.constant 0 : index
    %7 = vector.load %arg1[%c24, %c0_7] : memref<144x128xf32, #tpu.memory_space<vmem>>, vector<16x16xf32>
    %c40 = arith.constant 40 : index
    %c0_8 = arith.constant 0 : index
    %8 = vector.load %arg1[%c40, %c0_8] : memref<144x128xf32, #tpu.memory_space<vmem>>, vector<16x64xf32>
    %c56 = arith.constant 56 : index
    %c0_9 = arith.constant 0 : index
    %9 = vector.load %arg1[%c56, %c0_9] : memref<144x128xf32, #tpu.memory_space<vmem>>, vector<64x16xf32>
    %c120 = arith.constant 120 : index
    %c0_10 = arith.constant 0 : index
    %10 = vector.load %arg1[%c120, %c0_10] : memref<144x128xf32, #tpu.memory_space<vmem>>, vector<16x4xf32>
    %c136 = arith.constant 136 : index
    %c0_11 = arith.constant 0 : index
    %11 = vector.load %arg1[%c136, %c0_11] : memref<144x128xf32, #tpu.memory_space<vmem>>, vector<4x16xf32>
    %c0_12 = arith.constant 0 : index
    %c0_13 = arith.constant 0 : index
    %12 = vector.load %arg0[%c0_12, %c0_13] : memref<32x16xf32, #tpu.memory_space<vmem>>, vector<32x16xf32>
    %cst = arith.constant dense<0.000000e+00> : vector<32xf32>
    %13 = vector.multi_reduction <add>, %12, %cst [1] : vector<32x16xf32> to vector<32xf32>
    %14 = vector.shape_cast %13 : vector<32xf32> to vector<32x1xf32>
    %15 = arith.mulf %12, %12 : vector<32x16xf32>
    %cst_14 = arith.constant dense<0.000000e+00> : vector<32xf32>
    %16 = vector.multi_reduction <add>, %15, %cst_14 [1] : vector<32x16xf32> to vector<32xf32>
    %17 = vector.shape_cast %16 : vector<32xf32> to vector<32x1xf32>
    %cst_15 = arith.constant 6.250000e-02 : f32
    %18 = vector.broadcast %cst_15 : f32 to vector<32x1xf32>
    %19 = arith.mulf %14, %18 : vector<32x1xf32>
    %cst_16 = arith.constant 6.250000e-02 : f32
    %20 = vector.broadcast %cst_16 : f32 to vector<32x1xf32>
    %21 = arith.mulf %17, %20 : vector<32x1xf32>
    %22 = arith.mulf %19, %19 : vector<32x1xf32>
    %23 = arith.subf %21, %22 : vector<32x1xf32>
    %24 = vector.broadcast %19 : vector<32x1xf32> to vector<32x16xf32>
    %25 = arith.subf %12, %24 : vector<32x16xf32>
    %cst_17 = arith.constant 9.99999974E-6 : f32
    %26 = vector.broadcast %cst_17 : f32 to vector<32x1xf32>
    %27 = arith.addf %23, %26 : vector<32x1xf32>
    %28 = math.rsqrt %27 : vector<32x1xf32>
    %29 = vector.broadcast %28 : vector<32x1xf32> to vector<32x16xf32>
    %30 = vector.broadcast %0 : vector<1x16xf32> to vector<32x16xf32>
    %31 = arith.mulf %29, %30 : vector<32x16xf32>
    %32 = arith.mulf %25, %31 : vector<32x16xf32>
    %33 = vector.broadcast %1 : vector<1x16xf32> to vector<32x16xf32>
    %34 = arith.addf %32, %33 : vector<32x16xf32>
    %cst_18 = arith.constant dense<0.000000e+00> : vector<32x48xf32>
    %35 = tpu.matmul %34, %6, %cst_18 {dimension_numbers = #tpu.dot_dimension_numbers<[1], [0], [0], [1], [0, 0, 1, 1], [], []>} : vector<32x16xf32>, vector<16x48xf32>, vector<32x48xf32> -> vector<32x48xf32>
    %36 = vector.extract_strided_slice %35 {offsets = [0, 0], sizes = [32, 16], strides = [1, 1]} : vector<32x48xf32> to vector<32x16xf32>
    %37 = vector.shape_cast %36 : vector<32x16xf32> to vector<2x16x16xf32>
    %38 = vector.extract_strided_slice %35 {offsets = [0, 16], sizes = [32, 16], strides = [1, 1]} : vector<32x48xf32> to vector<32x16xf32>
    %39 = vector.shape_cast %38 : vector<32x16xf32> to vector<2x16x16xf32>
    %40 = vector.extract_strided_slice %35 {offsets = [0, 32], sizes = [32, 16], strides = [1, 1]} : vector<32x48xf32> to vector<32x16xf32>
    %41 = vector.shape_cast %40 : vector<32x16xf32> to vector<2x16x16xf32>
    %42 = vector.shape_cast %37 : vector<2x16x16xf32> to vector<2x16x1x16xf32>
    %43 = vector.shape_cast %39 : vector<2x16x16xf32> to vector<2x1x16x16xf32>
    %44 = vector.broadcast %42 : vector<2x16x1x16xf32> to vector<2x16x16x16xf32>
    %45 = vector.broadcast %43 : vector<2x1x16x16xf32> to vector<2x16x16x16xf32>
    %46 = arith.mulf %44, %45 : vector<2x16x16x16xf32>
    %47 = vector.shape_cast %46 : vector<2x16x16x16xf32> to vector<512x16xf32>
    %cst_19 = arith.constant dense<0.000000e+00> : vector<512x4xf32>
    %48 = tpu.matmul %47, %10, %cst_19 {dimension_numbers = #tpu.dot_dimension_numbers<[1], [0], [0], [1], [0, 0, 1, 1], [], []>} : vector<512x16xf32>, vector<16x4xf32>, vector<512x4xf32> -> vector<512x4xf32>
    %49 = vector.shape_cast %48 : vector<512x4xf32> to vector<32x16x4xf32>
    %cst_20 = arith.constant dense<0xFF800000> : vector<32x4xf32>
    %50 = vector.multi_reduction <maximumf>, %49, %cst_20 [1] : vector<32x16x4xf32> to vector<32x4xf32>
    %51 = vector.shape_cast %50 : vector<32x4xf32> to vector<32x1x4xf32>
    %52 = vector.broadcast %51 : vector<32x1x4xf32> to vector<32x16x4xf32>
    %53 = arith.subf %49, %52 : vector<32x16x4xf32>
    %54 = math.exp %53 : vector<32x16x4xf32>
    %cst_21 = arith.constant dense<0.000000e+00> : vector<32x4xf32>
    %55 = vector.multi_reduction <add>, %54, %cst_21 [1] : vector<32x16x4xf32> to vector<32x4xf32>
    %56 = vector.shape_cast %55 : vector<32x4xf32> to vector<32x1x4xf32>
    %57 = tpu.reciprocal %56 {approx = true} : vector<32x1x4xf32> -> vector<32x1x4xf32>
    %58 = vector.broadcast %57 : vector<32x1x4xf32> to vector<32x16x4xf32>
    %59 = arith.mulf %54, %58 : vector<32x16x4xf32>
    %60 = vector.shape_cast %59 : vector<32x16x4xf32> to vector<512x4xf32>
    %cst_22 = arith.constant dense<0.000000e+00> : vector<512x16xf32>
    %61 = tpu.matmul %60, %11, %cst_22 {dimension_numbers = #tpu.dot_dimension_numbers<[1], [0], [0], [1], [0, 0, 1, 1], [], []>} : vector<512x4xf32>, vector<4x16xf32>, vector<512x16xf32> -> vector<512x16xf32>
    %62 = vector.shape_cast %61 : vector<512x16xf32> to vector<2x16x16x16xf32>
    %63 = vector.shape_cast %41 : vector<2x16x16xf32> to vector<2x1x16x16xf32>
    %64 = vector.broadcast %63 : vector<2x1x16x16xf32> to vector<2x16x16x16xf32>
    %65 = arith.mulf %62, %64 : vector<2x16x16x16xf32>
    %cst_23 = arith.constant dense<0.000000e+00> : vector<2x16x16xf32>
    %66 = vector.multi_reduction <add>, %65, %cst_23 [2] : vector<2x16x16x16xf32> to vector<2x16x16xf32>
    %67 = vector.shape_cast %66 : vector<2x16x16xf32> to vector<32x16xf32>
    %cst_24 = arith.constant dense<0.000000e+00> : vector<32x16xf32>
    %68 = tpu.matmul %67, %7, %cst_24 {dimension_numbers = #tpu.dot_dimension_numbers<[1], [0], [0], [1], [0, 0, 1, 1], [], []>} : vector<32x16xf32>, vector<16x16xf32>, vector<32x16xf32> -> vector<32x16xf32>
    %69 = arith.addf %12, %68 : vector<32x16xf32>
    %cst_25 = arith.constant dense<0.000000e+00> : vector<32xf32>
    %70 = vector.multi_reduction <add>, %69, %cst_25 [1] : vector<32x16xf32> to vector<32xf32>
    %71 = vector.shape_cast %70 : vector<32xf32> to vector<32x1xf32>
    %72 = arith.mulf %69, %69 : vector<32x16xf32>
    %cst_26 = arith.constant dense<0.000000e+00> : vector<32xf32>
    %73 = vector.multi_reduction <add>, %72, %cst_26 [1] : vector<32x16xf32> to vector<32xf32>
    %74 = vector.shape_cast %73 : vector<32xf32> to vector<32x1xf32>
    %cst_27 = arith.constant 6.250000e-02 : f32
    %75 = vector.broadcast %cst_27 : f32 to vector<32x1xf32>
    %76 = arith.mulf %71, %75 : vector<32x1xf32>
    %cst_28 = arith.constant 6.250000e-02 : f32
    %77 = vector.broadcast %cst_28 : f32 to vector<32x1xf32>
    %78 = arith.mulf %74, %77 : vector<32x1xf32>
    %79 = arith.mulf %76, %76 : vector<32x1xf32>
    %80 = arith.subf %78, %79 : vector<32x1xf32>
    %81 = vector.broadcast %76 : vector<32x1xf32> to vector<32x16xf32>
    %82 = arith.subf %69, %81 : vector<32x16xf32>
    %cst_29 = arith.constant 9.99999974E-6 : f32
    %83 = vector.broadcast %cst_29 : f32 to vector<32x1xf32>
    %84 = arith.addf %80, %83 : vector<32x1xf32>
    %85 = math.rsqrt %84 : vector<32x1xf32>
    %86 = vector.broadcast %85 : vector<32x1xf32> to vector<32x16xf32>
    %87 = vector.broadcast %2 : vector<1x16xf32> to vector<32x16xf32>
    %88 = arith.mulf %86, %87 : vector<32x16xf32>
    %89 = arith.mulf %82, %88 : vector<32x16xf32>
    %90 = vector.broadcast %3 : vector<1x16xf32> to vector<32x16xf32>
    %91 = arith.addf %89, %90 : vector<32x16xf32>
    %cst_30 = arith.constant dense<0.000000e+00> : vector<32x64xf32>
    %92 = tpu.matmul %91, %8, %cst_30 {dimension_numbers = #tpu.dot_dimension_numbers<[1], [0], [0], [1], [0, 0, 1, 1], [], []>} : vector<32x16xf32>, vector<16x64xf32>, vector<32x64xf32> -> vector<32x64xf32>
    %93 = vector.broadcast %4 : vector<1x64xf32> to vector<32x64xf32>
    %94 = arith.addf %92, %93 : vector<32x64xf32>
    %cst_31 = arith.constant 5.000000e-01 : f32
    %95 = vector.broadcast %cst_31 : f32 to vector<32x64xf32>
    %96 = arith.mulf %95, %94 : vector<32x64xf32>
    %cst_32 = arith.constant 4.471500e-02 : f32
    %97 = vector.broadcast %cst_32 : f32 to vector<32x64xf32>
    %98 = arith.mulf %97, %94 : vector<32x64xf32>
    %99 = arith.mulf %98, %94 : vector<32x64xf32>
    %100 = arith.mulf %99, %94 : vector<32x64xf32>
    %101 = arith.addf %94, %100 : vector<32x64xf32>
    %cst_33 = arith.constant 0.797884583 : f32
    %102 = vector.broadcast %cst_33 : f32 to vector<32x64xf32>
    %103 = arith.mulf %102, %101 : vector<32x64xf32>
    %104 = math.tanh %103 : vector<32x64xf32>
    %cst_34 = arith.constant 1.000000e+00 : f32
    %105 = vector.broadcast %cst_34 : f32 to vector<32x64xf32>
    %106 = arith.addf %105, %104 : vector<32x64xf32>
    %107 = arith.mulf %96, %106 : vector<32x64xf32>
    %cst_35 = arith.constant dense<0.000000e+00> : vector<32x16xf32>
    %108 = tpu.matmul %107, %9, %cst_35 {dimension_numbers = #tpu.dot_dimension_numbers<[1], [0], [0], [1], [0, 0, 1, 1], [], []>} : vector<32x64xf32>, vector<64x16xf32>, vector<32x16xf32> -> vector<32x16xf32>
    %109 = vector.broadcast %5 : vector<1x16xf32> to vector<32x16xf32>
    %110 = arith.addf %108, %109 : vector<32x16xf32>
    %111 = arith.addf %69, %110 : vector<32x16xf32>
    %c0_36 = arith.constant 0 : index
    %c0_37 = arith.constant 0 : index
    %112 = vector.load %arg2[%c0_36, %c0_37] : memref<32x16xf32, #tpu.memory_space<vmem>>, vector<32x16xf32>
    tpu.vector_store %arg2[%c0_36, %c0_37], %111 {strides = array<i32>} : memref<32x16xf32, #tpu.memory_space<vmem>>, vector<32x16xf32>,
    return
  }
}

</mosaic_0001>

<llo_original>
// kernel: tpu_custom_call.1
$region0: #{tpu_custom_call.1}
  #allocation0 [shape = 'u32[]', space=smem, size = 0x4, offset = 0x4, fixed_abs, tag = 'smem constant byte address 0x4 - core index']
  #allocation1 [shape = 'u32[144,128]{1,0:T(1,128)}', space=vmem, size = 0x12000, scoped, tag = 'internal scratch']
  %s0 = inlined_call_operand.vmem [shape: f32[32,16], index: 0, kind: input, shape index: {}]
  %s1 = inlined_call_operand.hbm [shape: f32[144,128], index: 1, kind: input, shape index: {}]
  %s2 = inlined_call_operand.vmem [shape: f32[32,16], index: 2, kind: output, shape index: {}]
  %s3 = sld [smem:[#allocation0]]
  $region22: #{tpu_custom_call.1} parent=0
    _
  %s5 = ssub.s32 1, %s3
  %s6 = scalar_select 0, %s5, %s3
  $region1: #{tpu_custom_call.1} parent=0
    #allocation2 [shape = 'u8[73728]{0}', space=vmem, size = 0x12000, scoped, tag = 'input window, operand 1, single buffered']
    #allocation3 [shape = 's32[1]{0}', space=sflag, size = 0x4, scoped, tag = 'scoped memory for tpu_custom_call.1']
    %7 = vsyncpa [#allocation3], 0
    // Predicated region
    $region2: #{tpu_custom_call.1} parent=1 // pred_check
      _
    $region3: #{tpu_custom_call.1} parent=1 // pred_check_branch
      %9 = sbr.rel (0) target = $region5
    $region4: #{tpu_custom_call.1} parent=1 // pred_region
      _
    $region5: #{tpu_custom_call.1} parent=1 // pred_fallthru
      _
    // Predicated region
    $region6: #{tpu_custom_call.1} parent=1 // pred_check
      _
    $region7: #{tpu_custom_call.1} parent=1 // pred_check_branch
      %11 = sbr.rel (0) target = $region9
    $region8: #{tpu_custom_call.1} parent=1 // pred_region
      %s13 = ssub.s32 2304, 2304
      %14 = vsyncadd [#allocation3], %s13
      %s15 = sshll.u32 [#allocation2], 4
      %s16 = int_to_ptr.vmem [resolvable:$true] %s15
      %21 = dma.hbm_to_vmem [thread:$0]  %s1, 2304, %s16, [#allocation3], 128, 128, 8
    $region9: #{tpu_custom_call.1} parent=1 // pred_fallthru
      _
    // Predicated region
    $region10: #{tpu_custom_call.1} parent=1 // pred_check
      _
    $region11: #{tpu_custom_call.1} parent=1 // pred_check_branch
      %23 = sbr.rel (0) target = $region13
    $region12: #{tpu_custom_call.1} parent=1 // pred_region
      %24 = dma.done [#allocation3], 2304
    $region13: #{tpu_custom_call.1} parent=1 // pred_fallthru
      _
    %v25 = vld [vmem:[#allocation2] sm:$0x1]
    %v26 = vld [vmem:[#allocation2 + $0x1] sm:$0x1]
    %v27 = vld [vmem:[#allocation2 + $0x2] sm:$0x1]
    %v28 = vld [vmem:[#allocation2 + $0x3] sm:$0x1]
    %v29 = vld [vmem:[#allocation2 + $0x4] sm:$0x1]
    %v30 = vld [vmem:[#allocation2 + $0x5] sm:$0x1]
    %v31 = vld [vmem:[#allocation2 + $0x8] sm:$0xff]
    %v32 = vld [vmem:[#allocation2 + $0x10] sm:$0xff]
    %v33 = vld [vmem:[#allocation2 + $0x18] sm:$0xff]
    %v34 = vld [vmem:[#allocation2 + $0x20] sm:$0xff]
    %v35 = vld [vmem:[#allocation2 + $0x28] sm:$0xff]
    %v36 = vld [vmem:[#allocation2 + $0x30] sm:$0xff]
    %v37 = vld [vmem:[#allocation2 + $0x38] sm:$0xff]
    %v38 = vld [vmem:[#allocation2 + $0x40] sm:$0xff]
    %v39 = vld [vmem:[#allocation2 + $0x48] sm:$0xff]
    %v40 = vld [vmem:[#allocation2 + $0x50] sm:$0xff]
    %v41 = vld [vmem:[#allocation2 + $0x58] sm:$0xff]
    %v42 = vld [vmem:[#allocation2 + $0x60] sm:$0xff]
    %v43 = vld [vmem:[#allocation2 + $0x68] sm:$0xff]
    %v44 = vld [vmem:[#allocation2 + $0x70] sm:$0xff]
    %v45 = vld [vmem:[#allocation2 + $0x78] sm:$0xff]
    %v46 = vld [vmem:[#allocation2 + $0x80] sm:$0xff]
    %v47 = vld [vmem:[#allocation2 + $0x88] sm:$0xf]
    %v48 = vld [vmem:[%s0] sm:$0xff]
    %v49 = vld [vmem:[%s0 + $0x8] sm:$0xff]
    %v50 = vld [vmem:[%s0 + $0x10] sm:$0xff]
    %v51 = vld [vmem:[%s0 + $0x18] sm:$0xff]
    %vm52 = vcmask 130048
    %v53 = vsel %vm52, %v48, 0.0
    %54 = vadd.xlane.f32.xlu0 %v53
    %v55 = vpop.xlane.xlu0 %54
    %v56 = vsel %vm52, %v49, 0.0
    %57 = vadd.xlane.f32.xlu0 %v56
    %v58 = vpop.xlane.xlu0 %57
    %v59 = vsel %vm52, %v50, 0.0
    %60 = vadd.xlane.f32.xlu0 %v59
    %v61 = vpop.xlane.xlu0 %60
    %v62 = vsel %vm52, %v51, 0.0
    %63 = vadd.xlane.f32.xlu0 %v62
    %v64 = vpop.xlane.xlu0 %63
    %v65 = vmul.f32 %v48, %v48
    %v66 = vmul.f32 %v49, %v49
    %v67 = vmul.f32 %v50, %v50
    %v68 = vmul.f32 %v51, %v51
    %v69 = vsel %vm52, %v65, 0.0
    %70 = vadd.xlane.f32.xlu0 %v69
    %v71 = vpop.xlane.xlu0 %70
    %v72 = vsel %vm52, %v66, 0.0
    %73 = vadd.xlane.f32.xlu0 %v72
    %v74 = vpop.xlane.xlu0 %73
    %v75 = vsel %vm52, %v67, 0.0
    %76 = vadd.xlane.f32.xlu0 %v75
    %v77 = vpop.xlane.xlu0 %76
    %v78 = vsel %vm52, %v68, 0.0
    %79 = vadd.xlane.f32.xlu0 %v78
    %v80 = vpop.xlane.xlu0 %79
    %v81 = vmul.f32 %v55, 0.0625
    %v82 = vmul.f32 %v58, 0.0625
    %v83 = vmul.f32 %v61, 0.0625
    %v84 = vmul.f32 %v64, 0.0625
    %v85 = vmul.f32 %v71, 0.0625
    %v86 = vmul.f32 %v74, 0.0625
    %v87 = vmul.f32 %v77, 0.0625
    %v88 = vmul.f32 %v80, 0.0625
    %v89 = vmul.f32 %v81, %v81
    %v90 = vmul.f32 %v82, %v82
    %v91 = vmul.f32 %v83, %v83
    %v92 = vmul.f32 %v84, %v84
    %v93 = vsub.f32 %v85, %v89
    %v94 = vsub.f32 %v86, %v90
    %v95 = vsub.f32 %v87, %v91
    %v96 = vsub.f32 %v88, %v92
    %v97 = vsub.f32 %v48, %v81
    %v98 = vsub.f32 %v49, %v82
    %v99 = vsub.f32 %v50, %v83
    %v100 = vsub.f32 %v51, %v84
    %v101 = vadd.f32 %v93, 1e-05
    %v102 = vadd.f32 %v94, 1e-05
    %v103 = vadd.f32 %v95, 1e-05
    %v104 = vadd.f32 %v96, 1e-05
    %v105 = vrsqrt.pop %v101
    %v106 = vrsqrt.pop %v102
    %v107 = vrsqrt.pop %v103
    %v108 = vrsqrt.pop %v104
    %v109 = vlaneseq
    %v110 = vshrl.u32 %v109, 7
    %v111 = vsub.s32 0, %v110
    %v112 = vrot.slane %v25, %v111
    %v113 = vmul.f32 %v105, %v112
    %v114 = vmul.f32 %v106, %v112
    %v115 = vmul.f32 %v107, %v112
    %v116 = vmul.f32 %v108, %v112
    %v117 = vmul.f32 %v97, %v113
    %v118 = vmul.f32 %v98, %v114
    %v119 = vmul.f32 %v99, %v115
    %v120 = vmul.f32 %v100, %v116
    %v121 = vlaneseq
    %v122 = vshrl.u32 %v121, 7
    %v123 = vsub.s32 0, %v122
    %v124 = vrot.slane %v26, %v123
    %v125 = vadd.f32 %v117, %v124
    %v126 = vadd.f32 %v118, %v124
    %v127 = vadd.f32 %v119, %v124
    %v128 = vadd.f32 %v120, %v124
    %v130 = vsel %vm52, %v125, 0
    %v133 = vsel %vm52, %v126, 0
    %v136 = vsel %vm52, %v127, 0
    %v139 = vsel %vm52, %v128, 0
    %141 = vmatprep.subr.mxu0 0.0
    %142 = vmatpush1.msra.mxu0 0.0
    %143 = vmatprep.subr.mxu0 0.0
    %144 = vmatpush1.msra.mxu0 0.0
    %145 = vmatprep.subr.mxu0 0.0
    %146 = vmatpush1.msra.mxu0 0.0
    %147 = vmatprep.subr.mxu0 0.0
    %148 = vmatpush1.msra.mxu0 0.0
    %149 = vmatprep.subr.mxu0 0.0
    %150 = vmatpush1.msra.mxu0 0.0
    %151 = vmatprep.subr.mxu0 0.0
    %152 = vmatpush1.msra.mxu0 0.0
    %153 = vmatprep.subr.mxu0 0.0
    %154 = vmatpush1.msra.mxu0 0.0
    %155 = vmatprep.subr.mxu0 0.0
    %156 = vmatpush1.msra.mxu0 0.0
    %157 = vmatprep.subr.mxu0 0.0
    %158 = vmatpush1.msra.mxu0 0.0
    %159 = vmatprep.subr.mxu0 0.0
    %160 = vmatpush1.msra.mxu0 0.0
    %161 = vmatprep.subr.mxu0 0.0
    %162 = vmatpush1.msra.mxu0 0.0
    %163 = vmatprep.subr.mxu0 0.0
    %164 = vmatpush1.msra.mxu0 0.0
    %165 = vmatprep.subr.mxu0 0.0
    %166 = vmatpush1.msra.mxu0 0.0
    %167 = vmatprep.subr.mxu0 0.0
    %168 = vmatpush1.msra.mxu0 0.0
    %169 = vmatprep.subr.mxu0 0.0
    %170 = vmatpush1.msra.mxu0 %v32
    %171 = vmatprep.subr.mxu0 0.0
    %172 = vmatpush1.msra.mxu0 %v31
    %173 = vmatprep.subr.mxu0 0.0
    %174 = vmatpush2.msra.mxu0 0.0
    %175 = vmatprep.subr.mxu0 0.0
    %176 = vmatpush2.msra.mxu0 0.0
    %177 = vmatprep.subr.mxu0 0.0
    %178 = vmatpush2.msra.mxu0 0.0
    %179 = vmatprep.subr.mxu0 0.0
    %180 = vmatpush2.msra.mxu0 0.0
    %181 = vmatprep.subr.mxu0 0.0
    %182 = vmatpush2.msra.mxu0 0.0
    %183 = vmatprep.subr.mxu0 0.0
    %184 = vmatpush2.msra.mxu0 0.0
    %185 = vmatprep.subr.mxu0 0.0
    %186 = vmatpush2.msra.mxu0 0.0
    %187 = vmatprep.subr.mxu0 0.0
    %188 = vmatpush2.msra.mxu0 0.0
    %189 = vmatprep.subr.mxu0 0.0
    %190 = vmatpush2.msra.mxu0 0.0
    %191 = vmatprep.subr.mxu0 0.0
    %192 = vmatpush2.msra.mxu0 0.0
    %193 = vmatprep.subr.mxu0 0.0
    %194 = vmatpush2.msra.mxu0 0.0
    %195 = vmatprep.subr.mxu0 0.0
    %196 = vmatpush2.msra.mxu0 0.0
    %197 = vmatprep.subr.mxu0 0.0
    %198 = vmatpush2.msra.mxu0 0.0
    %199 = vmatprep.subr.mxu0 0.0
    %200 = vmatpush2.msra.mxu0 0.0
    %201 = vmatprep.subr.mxu0 0.0
    %202 = vmatpush2.msra.mxu0 0.0
    %203 = vmatprep.subr.mxu0 0.0
    %204 = vmatpush2.msra.mxu0 0.0
    %205 = vmatprep.mubr.f32.mxu0 0.0
    %206 = vmatmul.mubr.f32.gmra.mxu0 %v130
    %v207 = vpop.f32.mrf.mxu0
    %v208 = vadd.f32 0.0, %v207
    %v209 = vpop.f32.mrf.mxu0
    %210 = vmatprep.mubr.f32.mxu0 0.0
    %211 = vmatmul.mubr.f32.gmra.mxu0 %v133
    %v212 = vpop.f32.mrf.mxu0
    %v213 = vadd.f32 0.0, %v212
    %v214 = vpop.f32.mrf.mxu0
    %215 = vmatprep.mubr.f32.mxu0 0.0
    %216 = vmatmul.mubr.f32.gmra.mxu0 %v136
    %v217 = vpop.f32.mrf.mxu0
    %v218 = vadd.f32 0.0, %v217
    %v219 = vpop.f32.mrf.mxu0
    %220 = vmatprep.mubr.f32.mxu0 0.0
    %221 = vmatmul.mubr.f32.gmra.mxu0 %v139
    %v222 = vpop.f32.mrf.mxu0
    %v223 = vadd.f32 0.0, %v222
    %v224 = vpop.f32.mrf.mxu0
    %225 = vdwg.mxu0
    %v230 = vcombine.high %v208, %v208
    %v232 = vunpack.c.l.s4 1966171168
    %v233 = vunpack.c.0.s8 %v232
    %v234 = vlaneseq
    %v235 = vshrl.u32 %v234, 7
    %v236 = vsub.s32 %v233, %v235
    %v237 = vrot.slane %v208, %v236
    %v239 = vunpack.c.l.s4 1966171168
    %v240 = vunpack.c.0.s8 %v239
    %v241 = vlaneseq
    %v242 = vshrl.u32 %v241, 7
    %v243 = vsub.s32 %v240, %v242
    %v244 = vrot.slane %v230, %v243
    %v245 = vcombine.high %v237, %v237
    %v246 = vcombine.high %v244, %v244
    %v248 = vunpack.c.l.s4 1966171168
    %v249 = vunpack.c.0.s8 %v248
    %v250 = vlaneseq
    %v251 = vshrl.u32 %v250, 7
    %v252 = vsub.s32 %v249, %v251
    %v253 = vrot.slane %v237, %v252
    %v255 = vunpack.c.l.s4 1966171168
    %v256 = vunpack.c.0.s8 %v255
    %v257 = vlaneseq
    %v258 = vshrl.u32 %v257, 7
    %v259 = vsub.s32 %v256, %v258
    %v260 = vrot.slane %v244, %v259
    %v262 = vunpack.c.l.s4 1966171168
    %v263 = vunpack.c.0.s8 %v262
    %v264 = vlaneseq
    %v265 = vshrl.u32 %v264, 7
    %v266 = vsub.s32 %v263, %v265
    %v267 = vrot.slane %v245, %v266
    %v269 = vunpack.c.l.s4 1966171168
    %v270 = vunpack.c.0.s8 %v269
    %v271 = vlaneseq
    %v272 = vshrl.u32 %v271, 7
    %v273 = vsub.s32 %v270, %v272
    %v274 = vrot.slane %v246, %v273
    %v275 = vcombine.high %v253, %v253
    %v276 = vcombine.high %v260, %v260
    %v277 = vcombine.high %v267, %v267
    %v278 = vcombine.high %v274, %v274
    %v279 = vcombine.high %v213, %v213
    %v281 = vunpack.c.l.s4 1966171168
    %v282 = vunpack.c.0.s8 %v281
    %v283 = vlaneseq
    %v284 = vshrl.u32 %v283, 7
    %v285 = vsub.s32 %v282, %v284
    %v286 = vrot.slane %v213, %v285
    %v288 = vunpack.c.l.s4 1966171168
    %v289 = vunpack.c.0.s8 %v288
    %v290 = vlaneseq
    %v291 = vshrl.u32 %v290, 7
    %v292 = vsub.s32 %v289, %v291
    %v293 = vrot.slane %v279, %v292
    %v294 = vcombine.high %v286, %v286
    %v295 = vcombine.high %v293, %v293
    %v297 = vunpack.c.l.s4 1966171168
    %v298 = vunpack.c.0.s8 %v297
    %v299 = vlaneseq
    %v300 = vshrl.u32 %v299, 7
    %v301 = vsub.s32 %v298, %v300
    %v302 = vrot.slane %v286, %v301
    %v304 = vunpack.c.l.s4 1966171168
    %v305 = vunpack.c.0.s8 %v304
    %v306 = vlaneseq
    %v307 = vshrl.u32 %v306, 7
    %v308 = vsub.s32 %v305, %v307
    %v309 = vrot.slane %v293, %v308
    %v311 = vunpack.c.l.s4 1966171168
    %v312 = vunpack.c.0.s8 %v311
    %v313 = vlaneseq
    %v314 = vshrl.u32 %v313, 7
    %v315 = vsub.s32 %v312, %v314
    %v316 = vrot.slane %v294, %v315
    %v318 = vunpack.c.l.s4 1966171168
    %v319 = vunpack.c.0.s8 %v318
    %v320 = vlaneseq
    %v321 = vshrl.u32 %v320, 7
    %v322 = vsub.s32 %v319, %v321
    %v323 = vrot.slane %v295, %v322
    %v324 = vcombine.high %v302, %v302
    %v325 = vcombine.high %v309, %v309
    %v326 = vcombine.high %v316, %v316
    %v327 = vcombine.high %v323, %v323
    %v328 = vcombine.high %v218, %v218
    %v330 = vunpack.c.l.s4 1966171168
    %v331 = vunpack.c.0.s8 %v330
    %v332 = vlaneseq
    %v333 = vshrl.u32 %v332, 7
    %v334 = vsub.s32 %v331, %v333
    %v335 = vrot.slane %v218, %v334
    %v337 = vunpack.c.l.s4 1966171168
    %v338 = vunpack.c.0.s8 %v337
    %v339 = vlaneseq
    %v340 = vshrl.u32 %v339, 7
    %v341 = vsub.s32 %v338, %v340
    %v342 = vrot.slane %v328, %v341
    %v343 = vcombine.high %v335, %v335
    %v344 = vcombine.high %v342, %v342
    %v346 = vunpack.c.l.s4 1966171168
    %v347 = vunpack.c.0.s8 %v346
    %v348 = vlaneseq
    %v349 = vshrl.u32 %v348, 7
    %v350 = vsub.s32 %v347, %v349
    %v351 = vrot.slane %v335, %v350
    %v353 = vunpack.c.l.s4 1966171168
    %v354 = vunpack.c.0.s8 %v353
    %v355 = vlaneseq
    %v356 = vshrl.u32 %v355, 7
    %v357 = vsub.s32 %v354, %v356
    %v358 = vrot.slane %v342, %v357
    %v360 = vunpack.c.l.s4 1966171168
    %v361 = vunpack.c.0.s8 %v360
    %v362 = vlaneseq
    %v363 = vshrl.u32 %v362, 7
    %v364 = vsub.s32 %v361, %v363
    %v365 = vrot.slane %v343, %v364
    %v367 = vunpack.c.l.s4 1966171168
    %v368 = vunpack.c.0.s8 %v367
    %v369 = vlaneseq
    %v370 = vshrl.u32 %v369, 7
    %v371 = vsub.s32 %v368, %v370
    %v372 = vrot.slane %v344, %v371
    %v373 = vcombine.high %v351, %v351
    %v374 = vcombine.high %v358, %v358
    %v375 = vcombine.high %v365, %v365
    %v376 = vcombine.high %v372, %v372
    %v377 = vcombine.high %v223, %v223
    %v379 = vunpack.c.l.s4 1966171168
    %v380 = vunpack.c.0.s8 %v379
    %v381 = vlaneseq
    %v382 = vshrl.u32 %v381, 7
    %v383 = vsub.s32 %v380, %v382
    %v384 = vrot.slane %v223, %v383
    %v386 = vunpack.c.l.s4 1966171168
    %v387 = vunpack.c.0.s8 %v386
    %v388 = vlaneseq
    %v389 = vshrl.u32 %v388, 7
    %v390 = vsub.s32 %v387, %v389
    %v391 = vrot.slane %v377, %v390
    %v392 = vcombine.high %v384, %v384
    %v393 = vcombine.high %v391, %v391
    %v395 = vunpack.c.l.s4 1966171168
    %v396 = vunpack.c.0.s8 %v395
    %v397 = vlaneseq
    %v398 = vshrl.u32 %v397, 7
    %v399 = vsub.s32 %v396, %v398
    %v400 = vrot.slane %v384, %v399
    %v402 = vunpack.c.l.s4 1966171168
    %v403 = vunpack.c.0.s8 %v402
    %v404 = vlaneseq
    %v405 = vshrl.u32 %v404, 7
    %v406 = vsub.s32 %v403, %v405
    %v407 = vrot.slane %v391, %v406
    %v409 = vunpack.c.l.s4 1966171168
    %v410 = vunpack.c.0.s8 %v409
    %v411 = vlaneseq
    %v412 = vshrl.u32 %v411, 7
    %v413 = vsub.s32 %v410, %v412
    %v414 = vrot.slane %v392, %v413
    %v416 = vunpack.c.l.s4 1966171168
    %v417 = vunpack.c.0.s8 %v416
    %v418 = vlaneseq
    %v419 = vshrl.u32 %v418, 7
    %v420 = vsub.s32 %v417, %v419
    %v421 = vrot.slane %v393, %v420
    %v422 = vcombine.high %v400, %v400
    %v423 = vcombine.high %v407, %v407
    %v424 = vcombine.high %v414, %v414
    %v425 = vcombine.high %v421, %v421
    %v426 = vlaneseq
    %v427 = vshrl.u32 %v426, 7
    %v428 = vsub.s32 0, %v427
    %v429 = vrot.slane %v253, %v428
    %v430 = vlaneseq
    %v431 = vshrl.u32 %v430, 7
    %v432 = vsub.s32 0, %v431
    %v433 = vrot.slane %v267, %v432
    %v434 = vlaneseq
    %v435 = vshrl.u32 %v434, 7
    %v436 = vsub.s32 0, %v435
    %v437 = vrot.slane %v275, %v436
    %v438 = vlaneseq
    %v439 = vshrl.u32 %v438, 7
    %v440 = vsub.s32 0, %v439
    %v441 = vrot.slane %v277, %v440
    %v442 = vlaneseq
    %v443 = vshrl.u32 %v442, 7
    %v444 = vsub.s32 0, %v443
    %v445 = vrot.slane %v260, %v444
    %v446 = vlaneseq
    %v447 = vshrl.u32 %v446, 7
    %v448 = vsub.s32 0, %v447
    %v449 = vrot.slane %v274, %v448
    %v450 = vlaneseq
    %v451 = vshrl.u32 %v450, 7
    %v452 = vsub.s32 0, %v451
    %v453 = vrot.slane %v276, %v452
    %v454 = vlaneseq
    %v455 = vshrl.u32 %v454, 7
    %v456 = vsub.s32 0, %v455
    %v457 = vrot.slane %v278, %v456
    %v458 = vlaneseq
    %v459 = vshrl.u32 %v458, 7
    %v460 = vsub.s32 0, %v459
    %v461 = vrot.slane %v302, %v460
    %v462 = vlaneseq
    %v463 = vshrl.u32 %v462, 7
    %v464 = vsub.s32 0, %v463
    %v465 = vrot.slane %v316, %v464
    %v466 = vlaneseq
    %v467 = vshrl.u32 %v466, 7
    %v468 = vsub.s32 0, %v467
    %v469 = vrot.slane %v324, %v468
    %v470 = vlaneseq
    %v471 = vshrl.u32 %v470, 7
    %v472 = vsub.s32 0, %v471
    %v473 = vrot.slane %v326, %v472
    %v474 = vlaneseq
    %v475 = vshrl.u32 %v474, 7
    %v476 = vsub.s32 0, %v475
    %v477 = vrot.slane %v309, %v476
    %v478 = vlaneseq
    %v479 = vshrl.u32 %v478, 7
    %v480 = vsub.s32 0, %v479
    %v481 = vrot.slane %v323, %v480
    %v482 = vlaneseq
    %v483 = vshrl.u32 %v482, 7
    %v484 = vsub.s32 0, %v483
    %v485 = vrot.slane %v325, %v484
    %v486 = vlaneseq
    %v487 = vshrl.u32 %v486, 7
    %v488 = vsub.s32 0, %v487
    %v489 = vrot.slane %v327, %v488
    %v490 = vlaneseq
    %v491 = vshrl.u32 %v490, 7
    %v492 = vsub.s32 0, %v491
    %v493 = vrot.slane %v351, %v492
    %v494 = vlaneseq
    %v495 = vshrl.u32 %v494, 7
    %v496 = vsub.s32 0, %v495
    %v497 = vrot.slane %v365, %v496
    %v498 = vlaneseq
    %v499 = vshrl.u32 %v498, 7
    %v500 = vsub.s32 0, %v499
    %v501 = vrot.slane %v373, %v500
    %v502 = vlaneseq
    %v503 = vshrl.u32 %v502, 7
    %v504 = vsub.s32 0, %v503
    %v505 = vrot.slane %v375, %v504
    %v506 = vlaneseq
    %v507 = vshrl.u32 %v506, 7
    %v508 = vsub.s32 0, %v507
    %v509 = vrot.slane %v358, %v508
    %v510 = vlaneseq
    %v511 = vshrl.u32 %v510, 7
    %v512 = vsub.s32 0, %v511
    %v513 = vrot.slane %v372, %v512
    %v514 = vlaneseq
    %v515 = vshrl.u32 %v514, 7
    %v516 = vsub.s32 0, %v515
    %v517 = vrot.slane %v374, %v516
    %v518 = vlaneseq
    %v519 = vshrl.u32 %v518, 7
    %v520 = vsub.s32 0, %v519
    %v521 = vrot.slane %v376, %v520
    %v522 = vlaneseq
    %v523 = vshrl.u32 %v522, 7
    %v524 = vsub.s32 0, %v523
    %v525 = vrot.slane %v400, %v524
    %v526 = vlaneseq
    %v527 = vshrl.u32 %v526, 7
    %v528 = vsub.s32 0, %v527
    %v529 = vrot.slane %v414, %v528
    %v530 = vlaneseq
    %v531 = vshrl.u32 %v530, 7
    %v532 = vsub.s32 0, %v531
    %v533 = vrot.slane %v422, %v532
    %v534 = vlaneseq
    %v535 = vshrl.u32 %v534, 7
    %v536 = vsub.s32 0, %v535
    %v537 = vrot.slane %v424, %v536
    %v538 = vlaneseq
    %v539 = vshrl.u32 %v538, 7
    %v540 = vsub.s32 0, %v539
    %v541 = vrot.slane %v407, %v540
    %v542 = vlaneseq
    %v543 = vshrl.u32 %v542, 7
    %v544 = vsub.s32 0, %v543
    %v545 = vrot.slane %v421, %v544
    %v546 = vlaneseq
    %v547 = vshrl.u32 %v546, 7
    %v548 = vsub.s32 0, %v547
    %v549 = vrot.slane %v423, %v548
    %v550 = vlaneseq
    %v551 = vshrl.u32 %v550, 7
    %v552 = vsub.s32 0, %v551
    %v553 = vrot.slane %v425, %v552
    %586 = vrot.lane.b32.xlu0 %v208, 112
    %v587 = vpop.permute.xlu0 %586
    %588 = vrot.lane.b32.xlu0 %v213, 112
    %v589 = vpop.permute.xlu0 %588
    %590 = vrot.lane.b32.xlu0 %v218, 112
    %v591 = vpop.permute.xlu0 %590
    %592 = vrot.lane.b32.xlu0 %v223, 112
    %v593 = vpop.permute.xlu0 %592
    %v598 = vmul.f32 %v429, %v587
    %v599 = vmul.f32 %v429, %v589
    %v600 = vmul.f32 %v433, %v587
    %v601 = vmul.f32 %v433, %v589
    %v602 = vmul.f32 %v437, %v587
    %v603 = vmul.f32 %v437, %v589
    %v604 = vmul.f32 %v441, %v587
    %v605 = vmul.f32 %v441, %v589
    %v606 = vmul.f32 %v445, %v587
    %v607 = vmul.f32 %v445, %v589
    %v608 = vmul.f32 %v449, %v587
    %v609 = vmul.f32 %v449, %v589
    %v610 = vmul.f32 %v453, %v587
    %v611 = vmul.f32 %v453, %v589
    %v612 = vmul.f32 %v457, %v587
    %v613 = vmul.f32 %v457, %v589
    %v614 = vmul.f32 %v461, %v587
    %v615 = vmul.f32 %v461, %v589
    %v616 = vmul.f32 %v465, %v587
    %v617 = vmul.f32 %v465, %v589
    %v618 = vmul.f32 %v469, %v587
    %v619 = vmul.f32 %v469, %v589
    %v620 = vmul.f32 %v473, %v587
    %v621 = vmul.f32 %v473, %v589
    %v622 = vmul.f32 %v477, %v587
    %v623 = vmul.f32 %v477, %v589
    %v624 = vmul.f32 %v481, %v587
    %v625 = vmul.f32 %v481, %v589
    %v626 = vmul.f32 %v485, %v587
    %v627 = vmul.f32 %v485, %v589
    %v628 = vmul.f32 %v489, %v587
    %v629 = vmul.f32 %v489, %v589
    %v630 = vmul.f32 %v493, %v591
    %v631 = vmul.f32 %v493, %v593
    %v632 = vmul.f32 %v497, %v591
    %v633 = vmul.f32 %v497, %v593
    %v634 = vmul.f32 %v501, %v591
    %v635 = vmul.f32 %v501, %v593
    %v636 = vmul.f32 %v505, %v591
    %v637 = vmul.f32 %v505, %v593
    %v638 = vmul.f32 %v509, %v591
    %v639 = vmul.f32 %v509, %v593
    %v640 = vmul.f32 %v513, %v591
    %v641 = vmul.f32 %v513, %v593
    %v642 = vmul.f32 %v517, %v591
    %v643 = vmul.f32 %v517, %v593
    %v644 = vmul.f32 %v521, %v591
    %v645 = vmul.f32 %v521, %v593
    %v646 = vmul.f32 %v525, %v591
    %v647 = vmul.f32 %v525, %v593
    %v648 = vmul.f32 %v529, %v591
    %v649 = vmul.f32 %v529, %v593
    %v650 = vmul.f32 %v533, %v591
    %v651 = vmul.f32 %v533, %v593
    %v652 = vmul.f32 %v537, %v591
    %v653 = vmul.f32 %v537, %v593
    %v654 = vmul.f32 %v541, %v591
    %v655 = vmul.f32 %v541, %v593
    %v656 = vmul.f32 %v545, %v591
    %v657 = vmul.f32 %v545, %v593
    %v658 = vmul.f32 %v549, %v591
    %v659 = vmul.f32 %v549, %v593
    %v660 = vmul.f32 %v553, %v591
    %v661 = vmul.f32 %v553, %v593
    %v663 = vsel %vm52, %v598, 0
    %v666 = vsel %vm52, %v599, 0
    %v669 = vsel %vm52, %v600, 0
    %v672 = vsel %vm52, %v601, 0
    %v675 = vsel %vm52, %v602, 0
    %v678 = vsel %vm52, %v603, 0
    %v681 = vsel %vm52, %v604, 0
    %v684 = vsel %vm52, %v605, 0
    %v687 = vsel %vm52, %v606, 0
    %v690 = vsel %vm52, %v607, 0
    %v693 = vsel %vm52, %v608, 0
    %v696 = vsel %vm52, %v609, 0
    %v699 = vsel %vm52, %v610, 0
    %v702 = vsel %vm52, %v611, 0
    %v705 = vsel %vm52, %v612, 0
    %v708 = vsel %vm52, %v613, 0
    %v711 = vsel %vm52, %v614, 0
    %v714 = vsel %vm52, %v615, 0
    %v717 = vsel %vm52, %v616, 0
    %v720 = vsel %vm52, %v617, 0
    %v723 = vsel %vm52, %v618, 0
    %v726 = vsel %vm52, %v619, 0
    %v729 = vsel %vm52, %v620, 0
    %v732 = vsel %vm52, %v621, 0
    %v735 = vsel %vm52, %v622, 0
    %v738 = vsel %vm52, %v623, 0
    %v741 = vsel %vm52, %v624, 0
    %v744 = vsel %vm52, %v625, 0
    %v747 = vsel %vm52, %v626, 0
    %v750 = vsel %vm52, %v627, 0
    %v753 = vsel %vm52, %v628, 0
    %v756 = vsel %vm52, %v629, 0
    %v759 = vsel %vm52, %v630, 0
    %v762 = vsel %vm52, %v631, 0
    %v765 = vsel %vm52, %v632, 0
    %v768 = vsel %vm52, %v633, 0
    %v771 = vsel %vm52, %v634, 0
    %v774 = vsel %vm52, %v635, 0
    %v777 = vsel %vm52, %v636, 0
    %v780 = vsel %vm52, %v637, 0
    %v783 = vsel %vm52, %v638, 0
    %v786 = vsel %vm52, %v639, 0
    %v789 = vsel %vm52, %v640, 0
    %v792 = vsel %vm52, %v641, 0
    %v795 = vsel %vm52, %v642, 0
    %v798 = vsel %vm52, %v643, 0
    %v801 = vsel %vm52, %v644, 0
    %v804 = vsel %vm52, %v645, 0
    %v807 = vsel %vm52, %v646, 0
    %v810 = vsel %vm52, %v647, 0
    %v813 = vsel %vm52, %v648, 0
    %v816 = vsel %vm52, %v649, 0
    %v819 = vsel %vm52, %v650, 0
    %v822 = vsel %vm52, %v651, 0
    %v825 = vsel %vm52, %v652, 0
    %v828 = vsel %vm52, %v653, 0
    %v831 = vsel %vm52, %v654, 0
    %v834 = vsel %vm52, %v655, 0
    %v837 = vsel %vm52, %v656, 0
    %v840 = vsel %vm52, %v657, 0
    %v843 = vsel %vm52, %v658, 0
    %v846 = vsel %vm52, %v659, 0
    %v849 = vsel %vm52, %v660, 0
    %v852 = vsel %vm52, %v661, 0
    %854 = vmatprep.subr.mxu0 0.0
    %855 = vmatpush1.msra.mxu0 0.0
    %856 = vmatprep.subr.mxu0 0.0
    %857 = vmatpush1.msra.mxu0 0.0
    %858 = vmatprep.subr.mxu0 0.0
    %859 = vmatpush1.msra.mxu0 0.0
    %860 = vmatprep.subr.mxu0 0.0
    %861 = vmatpush1.msra.mxu0 0.0
    %862 = vmatprep.subr.mxu0 0.0
    %863 = vmatpush1.msra.mxu0 0.0
    %864 = vmatprep.subr.mxu0 0.0
    %865 = vmatpush1.msra.mxu0 0.0
    %866 = vmatprep.subr.mxu0 0.0
    %867 = vmatpush1.msra.mxu0 0.0
    %868 = vmatprep.subr.mxu0 0.0
    %869 = vmatpush1.msra.mxu0 0.0
    %870 = vmatprep.subr.mxu0 0.0
    %871 = vmatpush1.msra.mxu0 0.0
    %872 = vmatprep.subr.mxu0 0.0
    %873 = vmatpush1.msra.mxu0 0.0
    %874 = vmatprep.subr.mxu0 0.0
    %875 = vmatpush1.msra.mxu0 0.0
    %876 = vmatprep.subr.mxu0 0.0
    %877 = vmatpush1.msra.mxu0 0.0
    %878 = vmatprep.subr.mxu0 0.0
    %879 = vmatpush1.msra.mxu0 0.0
    %880 = vmatprep.subr.mxu0 0.0
    %881 = vmatpush1.msra.mxu0 0.0
    %882 = vmatprep.subr.mxu0 0.0
    %883 = vmatpush1.msra.mxu0 %v46
    %884 = vmatprep.subr.mxu0 0.0
    %885 = vmatpush1.msra.mxu0 %v45
    %886 = vmatprep.subr.mxu0 0.0
    %887 = vmatpush2.msra.mxu0 0.0
    %888 = vmatprep.subr.mxu0 0.0
    %889 = vmatpush2.msra.mxu0 0.0
    %890 = vmatprep.subr.mxu0 0.0
    %891 = vmatpush2.msra.mxu0 0.0
    %892 = vmatprep.subr.mxu0 0.0
    %893 = vmatpush2.msra.mxu0 0.0
    %894 = vmatprep.subr.mxu0 0.0
    %895 = vmatpush2.msra.mxu0 0.0
    %896 = vmatprep.subr.mxu0 0.0
    %897 = vmatpush2.msra.mxu0 0.0
    %898 = vmatprep.subr.mxu0 0.0
    %899 = vmatpush2.msra.mxu0 0.0
    %900 = vmatprep.subr.mxu0 0.0
    %901 = vmatpush2.msra.mxu0 0.0
    %902 = vmatprep.subr.mxu0 0.0
    %903 = vmatpush2.msra.mxu0 0.0
    %904 = vmatprep.subr.mxu0 0.0
    %905 = vmatpush2.msra.mxu0 0.0
    %906 = vmatprep.subr.mxu0 0.0
    %907 = vmatpush2.msra.mxu0 0.0
    %908 = vmatprep.subr.mxu0 0.0
    %909 = vmatpush2.msra.mxu0 0.0
    %910 = vmatprep.subr.mxu0 0.0
    %911 = vmatpush2.msra.mxu0 0.0
    %912 = vmatprep.subr.mxu0 0.0
    %913 = vmatpush2.msra.mxu0 0.0
    %914 = vmatprep.subr.mxu0 0.0
    %915 = vmatpush2.msra.mxu0 0.0
    %916 = vmatprep.subr.mxu0 0.0
    %917 = vmatpush2.msra.mxu0 0.0
    %918 = vmatprep.mubr.f32.mxu0 0.0
    %919 = vmatmul.mubr.f32.gmra.mxu0 %v663
    %v920 = vpop.f32.mrf.mxu0
    %v921 = vadd.f32 0.0, %v920
    %v922 = vpop.f32.mrf.mxu0
    %923 = vmatprep.mubr.f32.mxu0 0.0
    %924 = vmatmul.mubr.f32.gmra.mxu0 %v666
    %v925 = vpop.f32.mrf.mxu0
    %v926 = vadd.f32 0.0, %v925
    %v927 = vpop.f32.mrf.mxu0
    %928 = vmatprep.mubr.f32.mxu0 0.0
    %929 = vmatmul.mubr.f32.gmra.mxu0 %v669
    %v930 = vpop.f32.mrf.mxu0
    %v931 = vadd.f32 0.0, %v930
    %v932 = vpop.f32.mrf.mxu0
    %933 = vmatprep.mubr.f32.mxu0 0.0
    %934 = vmatmul.mubr.f32.gmra.mxu0 %v672
    %v935 = vpop.f32.mrf.mxu0
    %v936 = vadd.f32 0.0, %v935
    %v937 = vpop.f32.mrf.mxu0
    %938 = vmatprep.mubr.f32.mxu0 0.0
    %939 = vmatmul.mubr.f32.gmra.mxu0 %v675
    %v940 = vpop.f32.mrf.mxu0
    %v941 = vadd.f32 0.0, %v940
    %v942 = vpop.f32.mrf.mxu0
    %943 = vmatprep.mubr.f32.mxu0 0.0
    %944 = vmatmul.mubr.f32.gmra.mxu0 %v678
    %v945 = vpop.f32.mrf.mxu0
    %v946 = vadd.f32 0.0, %v945
    %v947 = vpop.f32.mrf.mxu0
    %948 = vmatprep.mubr.f32.mxu0 0.0
    %949 = vmatmul.mubr.f32.gmra.mxu0 %v681
    %v950 = vpop.f32.mrf.mxu0
    %v951 = vadd.f32 0.0, %v950
    %v952 = vpop.f32.mrf.mxu0
    %953 = vmatprep.mubr.f32.mxu0 0.0
    %954 = vmatmul.mubr.f32.gmra.mxu0 %v684
    %v955 = vpop.f32.mrf.mxu0
    %v956 = vadd.f32 0.0, %v955
    %v957 = vpop.f32.mrf.mxu0
    %958 = vmatprep.mubr.f32.mxu0 0.0
    %959 = vmatmul.mubr.f32.gmra.mxu0 %v687
    %v960 = vpop.f32.mrf.mxu0
    %v961 = vadd.f32 0.0, %v960
    %v962 = vpop.f32.mrf.mxu0
    %963 = vmatprep.mubr.f32.mxu0 0.0
    %964 = vmatmul.mubr.f32.gmra.mxu0 %v690
    %v965 = vpop.f32.mrf.mxu0
    %v966 = vadd.f32 0.0, %v965
    %v967 = vpop.f32.mrf.mxu0
    %968 = vmatprep.mubr.f32.mxu0 0.0
    %969 = vmatmul.mubr.f32.gmra.mxu0 %v693
    %v970 = vpop.f32.mrf.mxu0
    %v971 = vadd.f32 0.0, %v970
    %v972 = vpop.f32.mrf.mxu0
    %973 = vmatprep.mubr.f32.mxu0 0.0
    %974 = vmatmul.mubr.f32.gmra.mxu0 %v696
    %v975 = vpop.f32.mrf.mxu0
    %v976 = vadd.f32 0.0, %v975
    %v977 = vpop.f32.mrf.mxu0
    %978 = vmatprep.mubr.f32.mxu0 0.0
    %979 = vmatmul.mubr.f32.gmra.mxu0 %v699
    %v980 = vpop.f32.mrf.mxu0
    %v981 = vadd.f32 0.0, %v980
    %v982 = vpop.f32.mrf.mxu0
    %983 = vmatprep.mubr.f32.mxu0 0.0
    %984 = vmatmul.mubr.f32.gmra.mxu0 %v702
    %v985 = vpop.f32.mrf.mxu0
    %v986 = vadd.f32 0.0, %v985
    %v987 = vpop.f32.mrf.mxu0
    %988 = vmatprep.mubr.f32.mxu0 0.0
    %989 = vmatmul.mubr.f32.gmra.mxu0 %v705
    %v990 = vpop.f32.mrf.mxu0
    %v991 = vadd.f32 0.0, %v990
    %v992 = vpop.f32.mrf.mxu0
    %993 = vmatprep.mubr.f32.mxu0 0.0
    %994 = vmatmul.mubr.f32.gmra.mxu0 %v708
    %v995 = vpop.f32.mrf.mxu0
    %v996 = vadd.f32 0.0, %v995
    %v997 = vpop.f32.mrf.mxu0
    %998 = vmatprep.mubr.f32.mxu0 0.0
    %999 = vmatmul.mubr.f32.gmra.mxu0 %v711
    %v1000 = vpop.f32.mrf.mxu0
    %v1001 = vadd.f32 0.0, %v1000
    %v1002 = vpop.f32.mrf.mxu0
    %1003 = vmatprep.mubr.f32.mxu0 0.0
    %1004 = vmatmul.mubr.f32.gmra.mxu0 %v714
    %v1005 = vpop.f32.mrf.mxu0
    %v1006 = vadd.f32 0.0, %v1005
    %v1007 = vpop.f32.mrf.mxu0
    %1008 = vmatprep.mubr.f32.mxu0 0.0
    %1009 = vmatmul.mubr.f32.gmra.mxu0 %v717
    %v1010 = vpop.f32.mrf.mxu0
    %v1011 = vadd.f32 0.0, %v1010
    %v1012 = vpop.f32.mrf.mxu0
    %1013 = vmatprep.mubr.f32.mxu0 0.0
    %1014 = vmatmul.mubr.f32.gmra.mxu0 %v720
    %v1015 = vpop.f32.mrf.mxu0
    %v1016 = vadd.f32 0.0, %v1015
    %v1017 = vpop.f32.mrf.mxu0
    %1018 = vmatprep.mubr.f32.mxu0 0.0
    %1019 = vmatmul.mubr.f32.gmra.mxu0 %v723
    %v1020 = vpop.f32.mrf.mxu0
    %v1021 = vadd.f32 0.0, %v1020
    %v1022 = vpop.f32.mrf.mxu0
    %1023 = vmatprep.mubr.f32.mxu0 0.0
    %1024 = vmatmul.mubr.f32.gmra.mxu0 %v726
    %v1025 = vpop.f32.mrf.mxu0
    %v1026 = vadd.f32 0.0, %v1025
    %v1027 = vpop.f32.mrf.mxu0
    %1028 = vmatprep.mubr.f32.mxu0 0.0
    %1029 = vmatmul.mubr.f32.gmra.mxu0 %v729
    %v1030 = vpop.f32.mrf.mxu0
    %v1031 = vadd.f32 0.0, %v1030
    %v1032 = vpop.f32.mrf.mxu0
    %1033 = vmatprep.mubr.f32.mxu0 0.0
    %1034 = vmatmul.mubr.f32.gmra.mxu0 %v732
    %v1035 = vpop.f32.mrf.mxu0
    %v1036 = vadd.f32 0.0, %v1035
    %v1037 = vpop.f32.mrf.mxu0
    %1038 = vmatprep.mubr.f32.mxu0 0.0
    %1039 = vmatmul.mubr.f32.gmra.mxu0 %v735
    %v1040 = vpop.f32.mrf.mxu0
    %v1041 = vadd.f32 0.0, %v1040
    %v1042 = vpop.f32.mrf.mxu0
    %1043 = vmatprep.mubr.f32.mxu0 0.0
    %1044 = vmatmul.mubr.f32.gmra.mxu0 %v738
    %v1045 = vpop.f32.mrf.mxu0
    %v1046 = vadd.f32 0.0, %v1045
    %v1047 = vpop.f32.mrf.mxu0
    %1048 = vmatprep.mubr.f32.mxu0 0.0
    %1049 = vmatmul.mubr.f32.gmra.mxu0 %v741
    %v1050 = vpop.f32.mrf.mxu0
    %v1051 = vadd.f32 0.0, %v1050
    %v1052 = vpop.f32.mrf.mxu0
    %1053 = vmatprep.mubr.f32.mxu0 0.0
    %1054 = vmatmul.mubr.f32.gmra.mxu0 %v744
    %v1055 = vpop.f32.mrf.mxu0
    %v1056 = vadd.f32 0.0, %v1055
    %v1057 = vpop.f32.mrf.mxu0
    %1058 = vmatprep.mubr.f32.mxu0 0.0
    %1059 = vmatmul.mubr.f32.gmra.mxu0 %v747
    %v1060 = vpop.f32.mrf.mxu0
    %v1061 = vadd.f32 0.0, %v1060
    %v1062 = vpop.f32.mrf.mxu0
    %1063 = vmatprep.mubr.f32.mxu0 0.0
    %1064 = vmatmul.mubr.f32.gmra.mxu0 %v750
    %v1065 = vpop.f32.mrf.mxu0
    %v1066 = vadd.f32 0.0, %v1065
    %v1067 = vpop.f32.mrf.mxu0
    %1068 = vmatprep.mubr.f32.mxu0 0.0
    %1069 = vmatmul.mubr.f32.gmra.mxu0 %v753
    %v1070 = vpop.f32.mrf.mxu0
    %v1071 = vadd.f32 0.0, %v1070
    %v1072 = vpop.f32.mrf.mxu0
    %1073 = vmatprep.mubr.f32.mxu0 0.0
    %1074 = vmatmul.mubr.f32.gmra.mxu0 %v756
    %v1075 = vpop.f32.mrf.mxu0
    %v1076 = vadd.f32 0.0, %v1075
    %v1077 = vpop.f32.mrf.mxu0
    %1078 = vmatprep.mubr.f32.mxu0 0.0
    %1079 = vmatmul.mubr.f32.gmra.mxu0 %v759
    %v1080 = vpop.f32.mrf.mxu0
    %v1081 = vadd.f32 0.0, %v1080
    %v1082 = vpop.f32.mrf.mxu0
    %1083 = vmatprep.mubr.f32.mxu0 0.0
    %1084 = vmatmul.mubr.f32.gmra.mxu0 %v762
    %v1085 = vpop.f32.mrf.mxu0
    %v1086 = vadd.f32 0.0, %v1085
    %v1087 = vpop.f32.mrf.mxu0
    %1088 = vmatprep.mubr.f32.mxu0 0.0
    %1089 = vmatmul.mubr.f32.gmra.mxu0 %v765
    %v1090 = vpop.f32.mrf.mxu0
    %v1091 = vadd.f32 0.0, %v1090
    %v1092 = vpop.f32.mrf.mxu0
    %1093 = vmatprep.mubr.f32.mxu0 0.0
    %1094 = vmatmul.mubr.f32.gmra.mxu0 %v768
    %v1095 = vpop.f32.mrf.mxu0
    %v1096 = vadd.f32 0.0, %v1095
    %v1097 = vpop.f32.mrf.mxu0
    %1098 = vmatprep.mubr.f32.mxu0 0.0
    %1099 = vmatmul.mubr.f32.gmra.mxu0 %v771
    %v1100 = vpop.f32.mrf.mxu0
    %v1101 = vadd.f32 0.0, %v1100
    %v1102 = vpop.f32.mrf.mxu0
    %1103 = vmatprep.mubr.f32.mxu0 0.0
    %1104 = vmatmul.mubr.f32.gmra.mxu0 %v774
    %v1105 = vpop.f32.mrf.mxu0
    %v1106 = vadd.f32 0.0, %v1105
    %v1107 = vpop.f32.mrf.mxu0
    %1108 = vmatprep.mubr.f32.mxu0 0.0
    %1109 = vmatmul.mubr.f32.gmra.mxu0 %v777
    %v1110 = vpop.f32.mrf.mxu0
    %v1111 = vadd.f32 0.0, %v1110
    %v1112 = vpop.f32.mrf.mxu0
    %1113 = vmatprep.mubr.f32.mxu0 0.0
    %1114 = vmatmul.mubr.f32.gmra.mxu0 %v780
    %v1115 = vpop.f32.mrf.mxu0
    %v1116 = vadd.f32 0.0, %v1115
    %v1117 = vpop.f32.mrf.mxu0
    %1118 = vmatprep.mubr.f32.mxu0 0.0
    %1119 = vmatmul.mubr.f32.gmra.mxu0 %v783
    %v1120 = vpop.f32.mrf.mxu0
    %v1121 = vadd.f32 0.0, %v1120
    %v1122 = vpop.f32.mrf.mxu0
    %1123 = vmatprep.mubr.f32.mxu0 0.0
    %1124 = vmatmul.mubr.f32.gmra.mxu0 %v786
    %v1125 = vpop.f32.mrf.mxu0
    %v1126 = vadd.f32 0.0, %v1125
    %v1127 = vpop.f32.mrf.mxu0
    %1128 = vmatprep.mubr.f32.mxu0 0.0
    %1129 = vmatmul.mubr.f32.gmra.mxu0 %v789
    %v1130 = vpop.f32.mrf.mxu0
    %v1131 = vadd.f32 0.0, %v1130
    %v1132 = vpop.f32.mrf.mxu0
    %1133 = vmatprep.mubr.f32.mxu0 0.0
    %1134 = vmatmul.mubr.f32.gmra.mxu0 %v792
    %v1135 = vpop.f32.mrf.mxu0
    %v1136 = vadd.f32 0.0, %v1135
    %v1137 = vpop.f32.mrf.mxu0
    %1138 = vmatprep.mubr.f32.mxu0 0.0
    %1139 = vmatmul.mubr.f32.gmra.mxu0 %v795
    %v1140 = vpop.f32.mrf.mxu0
    %v1141 = vadd.f32 0.0, %v1140
    %v1142 = vpop.f32.mrf.mxu0
    %1143 = vmatprep.mubr.f32.mxu0 0.0
    %1144 = vmatmul.mubr.f32.gmra.mxu0 %v798
    %v1145 = vpop.f32.mrf.mxu0
    %v1146 = vadd.f32 0.0, %v1145
    %v1147 = vpop.f32.mrf.mxu0
    %1148 = vmatprep.mubr.f32.mxu0 0.0
    %1149 = vmatmul.mubr.f32.gmra.mxu0 %v801
    %v1150 = vpop.f32.mrf.mxu0
    %v1151 = vadd.f32 0.0, %v1150
    %v1152 = vpop.f32.mrf.mxu0
    %1153 = vmatprep.mubr.f32.mxu0 0.0
    %1154 = vmatmul.mubr.f32.gmra.mxu0 %v804
    %v1155 = vpop.f32.mrf.mxu0
    %v1156 = vadd.f32 0.0, %v1155
    %v1157 = vpop.f32.mrf.mxu0
    %1158 = vmatprep.mubr.f32.mxu0 0.0
    %1159 = vmatmul.mubr.f32.gmra.mxu0 %v807
    %v1160 = vpop.f32.mrf.mxu0
    %v1161 = vadd.f32 0.0, %v1160
    %v1162 = vpop.f32.mrf.mxu0
    %1163 = vmatprep.mubr.f32.mxu0 0.0
    %1164 = vmatmul.mubr.f32.gmra.mxu0 %v810
    %v1165 = vpop.f32.mrf.mxu0
    %v1166 = vadd.f32 0.0, %v1165
    %v1167 = vpop.f32.mrf.mxu0
    %1168 = vmatprep.mubr.f32.mxu0 0.0
    %1169 = vmatmul.mubr.f32.gmra.mxu0 %v813
    %v1170 = vpop.f32.mrf.mxu0
    %v1171 = vadd.f32 0.0, %v1170
    %v1172 = vpop.f32.mrf.mxu0
    %1173 = vmatprep.mubr.f32.mxu0 0.0
    %1174 = vmatmul.mubr.f32.gmra.mxu0 %v816
    %v1175 = vpop.f32.mrf.mxu0
    %v1176 = vadd.f32 0.0, %v1175
    %v1177 = vpop.f32.mrf.mxu0
    %1178 = vmatprep.mubr.f32.mxu0 0.0
    %1179 = vmatmul.mubr.f32.gmra.mxu0 %v819
    %v1180 = vpop.f32.mrf.mxu0
    %v1181 = vadd.f32 0.0, %v1180
    %v1182 = vpop.f32.mrf.mxu0
    %1183 = vmatprep.mubr.f32.mxu0 0.0
    %1184 = vmatmul.mubr.f32.gmra.mxu0 %v822
    %v1185 = vpop.f32.mrf.mxu0
    %v1186 = vadd.f32 0.0, %v1185
    %v1187 = vpop.f32.mrf.mxu0
    %1188 = vmatprep.mubr.f32.mxu0 0.0
    %1189 = vmatmul.mubr.f32.gmra.mxu0 %v825
    %v1190 = vpop.f32.mrf.mxu0
    %v1191 = vadd.f32 0.0, %v1190
    %v1192 = vpop.f32.mrf.mxu0
    %1193 = vmatprep.mubr.f32.mxu0 0.0
    %1194 = vmatmul.mubr.f32.gmra.mxu0 %v828
    %v1195 = vpop.f32.mrf.mxu0
    %v1196 = vadd.f32 0.0, %v1195
    %v1197 = vpop.f32.mrf.mxu0
    %1198 = vmatprep.mubr.f32.mxu0 0.0
    %1199 = vmatmul.mubr.f32.gmra.mxu0 %v831
    %v1200 = vpop.f32.mrf.mxu0
    %v1201 = vadd.f32 0.0, %v1200
    %v1202 = vpop.f32.mrf.mxu0
    %1203 = vmatprep.mubr.f32.mxu0 0.0
    %1204 = vmatmul.mubr.f32.gmra.mxu0 %v834
    %v1205 = vpop.f32.mrf.mxu0
    %v1206 = vadd.f32 0.0, %v1205
    %v1207 = vpop.f32.mrf.mxu0
    %1208 = vmatprep.mubr.f32.mxu0 0.0
    %1209 = vmatmul.mubr.f32.gmra.mxu0 %v837
    %v1210 = vpop.f32.mrf.mxu0
    %v1211 = vadd.f32 0.0, %v1210
    %v1212 = vpop.f32.mrf.mxu0
    %1213 = vmatprep.mubr.f32.mxu0 0.0
    %1214 = vmatmul.mubr.f32.gmra.mxu0 %v840
    %v1215 = vpop.f32.mrf.mxu0
    %v1216 = vadd.f32 0.0, %v1215
    %v1217 = vpop.f32.mrf.mxu0
    %1218 = vmatprep.mubr.f32.mxu0 0.0
    %1219 = vmatmul.mubr.f32.gmra.mxu0 %v843
    %v1220 = vpop.f32.mrf.mxu0
    %v1221 = vadd.f32 0.0, %v1220
    %v1222 = vpop.f32.mrf.mxu0
    %1223 = vmatprep.mubr.f32.mxu0 0.0
    %1224 = vmatmul.mubr.f32.gmra.mxu0 %v846
    %v1225 = vpop.f32.mrf.mxu0
    %v1226 = vadd.f32 0.0, %v1225
    %v1227 = vpop.f32.mrf.mxu0
    %1228 = vmatprep.mubr.f32.mxu0 0.0
    %1229 = vmatmul.mubr.f32.gmra.mxu0 %v849
    %v1230 = vpop.f32.mrf.mxu0
    %v1231 = vadd.f32 0.0, %v1230
    %v1232 = vpop.f32.mrf.mxu0
    %1233 = vmatprep.mubr.f32.mxu0 0.0
    %1234 = vmatmul.mubr.f32.gmra.mxu0 %v852
    %v1235 = vpop.f32.mrf.mxu0
    %v1236 = vadd.f32 0.0, %v1235
    %v1237 = vpop.f32.mrf.mxu0
    %1238 = vdwg.mxu0
    %vm1239 = vcmask 31744
    %v1240 = vsel %vm1239, %v921, -inf
    %v1241 = vsel %vm1239, %v926, -inf
    %v1242 = vmax.f32 %v1240, %v1241
    %v1243 = vrot.slane %v1242, 4
    %v1244 = vmax.f32 %v1242, %v1243
    %v1245 = vrot.slane %v1244, 2
    %v1246 = vmax.f32 %v1244, %v1245
    %v1247 = vrot.slane %v1246, 1
    %v1248 = vmax.f32 %v1246, %v1247
    %v1249 = vsel %vm1239, %v931, -inf
    %v1250 = vsel %vm1239, %v936, -inf
    %v1251 = vmax.f32 %v1249, %v1250
    %v1252 = vrot.slane %v1251, 4
    %v1253 = vmax.f32 %v1251, %v1252
    %v1254 = vrot.slane %v1253, 2
    %v1255 = vmax.f32 %v1253, %v1254
    %v1256 = vrot.slane %v1255, 1
    %v1257 = vmax.f32 %v1255, %v1256
    %v1258 = vsel %vm1239, %v941, -inf
    %v1259 = vsel %vm1239, %v946, -inf
    %v1260 = vmax.f32 %v1258, %v1259
    %v1261 = vrot.slane %v1260, 4
    %v1262 = vmax.f32 %v1260, %v1261
    %v1263 = vrot.slane %v1262, 2
    %v1264 = vmax.f32 %v1262, %v1263
    %v1265 = vrot.slane %v1264, 1
    %v1266 = vmax.f32 %v1264, %v1265
    %v1267 = vsel %vm1239, %v951, -inf
    %v1268 = vsel %vm1239, %v956, -inf
    %v1269 = vmax.f32 %v1267, %v1268
    %v1270 = vrot.slane %v1269, 4
    %v1271 = vmax.f32 %v1269, %v1270
    %v1272 = vrot.slane %v1271, 2
    %v1273 = vmax.f32 %v1271, %v1272
    %v1274 = vrot.slane %v1273, 1
    %v1275 = vmax.f32 %v1273, %v1274
    %v1276 = vsel %vm1239, %v961, -inf
    %v1277 = vsel %vm1239, %v966, -inf
    %v1278 = vmax.f32 %v1276, %v1277
    %v1279 = vrot.slane %v1278, 4
    %v1280 = vmax.f32 %v1278, %v1279
    %v1281 = vrot.slane %v1280, 2
    %v1282 = vmax.f32 %v1280, %v1281
    %v1283 = vrot.slane %v1282, 1
    %v1284 = vmax.f32 %v1282, %v1283
    %v1285 = vsel %vm1239, %v971, -inf
    %v1286 = vsel %vm1239, %v976, -inf
    %v1287 = vmax.f32 %v1285, %v1286
    %v1288 = vrot.slane %v1287, 4
    %v1289 = vmax.f32 %v1287, %v1288
    %v1290 = vrot.slane %v1289, 2
    %v1291 = vmax.f32 %v1289, %v1290
    %v1292 = vrot.slane %v1291, 1
    %v1293 = vmax.f32 %v1291, %v1292
    %v1294 = vsel %vm1239, %v981, -inf
    %v1295 = vsel %vm1239, %v986, -inf
    %v1296 = vmax.f32 %v1294, %v1295
    %v1297 = vrot.slane %v1296, 4
    %v1298 = vmax.f32 %v1296, %v1297
    %v1299 = vrot.slane %v1298, 2
    %v1300 = vmax.f32 %v1298, %v1299
    %v1301 = vrot.slane %v1300, 1
    %v1302 = vmax.f32 %v1300, %v1301
    %v1303 = vsel %vm1239, %v991, -inf
    %v1304 = vsel %vm1239, %v996, -inf
    %v1305 = vmax.f32 %v1303, %v1304
    %v1306 = vrot.slane %v1305, 4
    %v1307 = vmax.f32 %v1305, %v1306
    %v1308 = vrot.slane %v1307, 2
    %v1309 = vmax.f32 %v1307, %v1308
    %v1310 = vrot.slane %v1309, 1
    %v1311 = vmax.f32 %v1309, %v1310
    %v1312 = vsel %vm1239, %v1001, -inf
    %v1313 = vsel %vm1239, %v1006, -inf
    %v1314 = vmax.f32 %v1312, %v1313
    %v1315 = vrot.slane %v1314, 4
    %v1316 = vmax.f32 %v1314, %v1315
    %v1317 = vrot.slane %v1316, 2
    %v1318 = vmax.f32 %v1316, %v1317
    %v1319 = vrot.slane %v1318, 1
    %v1320 = vmax.f32 %v1318, %v1319
    %v1321 = vsel %vm1239, %v1011, -inf
    %v1322 = vsel %vm1239, %v1016, -inf
    %v1323 = vmax.f32 %v1321, %v1322
    %v1324 = vrot.slane %v1323, 4
    %v1325 = vmax.f32 %v1323, %v1324
    %v1326 = vrot.slane %v1325, 2
    %v1327 = vmax.f32 %v1325, %v1326
    %v1328 = vrot.slane %v1327, 1
    %v1329 = vmax.f32 %v1327, %v1328
    %v1330 = vsel %vm1239, %v1021, -inf
    %v1331 = vsel %vm1239, %v1026, -inf
    %v1332 = vmax.f32 %v1330, %v1331
    %v1333 = vrot.slane %v1332, 4
    %v1334 = vmax.f32 %v1332, %v1333
    %v1335 = vrot.slane %v1334, 2
    %v1336 = vmax.f32 %v1334, %v1335
    %v1337 = vrot.slane %v1336, 1
    %v1338 = vmax.f32 %v1336, %v1337
    %v1339 = vsel %vm1239, %v1031, -inf
    %v1340 = vsel %vm1239, %v1036, -inf
    %v1341 = vmax.f32 %v1339, %v1340
    %v1342 = vrot.slane %v1341, 4
    %v1343 = vmax.f32 %v1341, %v1342
    %v1344 = vrot.slane %v1343, 2
    %v1345 = vmax.f32 %v1343, %v1344
    %v1346 = vrot.slane %v1345, 1
    %v1347 = vmax.f32 %v1345, %v1346
    %v1348 = vsel %vm1239, %v1041, -inf
    %v1349 = vsel %vm1239, %v1046, -inf
    %v1350 = vmax.f32 %v1348, %v1349
    %v1351 = vrot.slane %v1350, 4
    %v1352 = vmax.f32 %v1350, %v1351
    %v1353 = vrot.slane %v1352, 2
    %v1354 = vmax.f32 %v1352, %v1353
    %v1355 = vrot.slane %v1354, 1
    %v1356 = vmax.f32 %v1354, %v1355
    %v1357 = vsel %vm1239, %v1051, -inf
    %v1358 = vsel %vm1239, %v1056, -inf
    %v1359 = vmax.f32 %v1357, %v1358
    %v1360 = vrot.slane %v1359, 4
    %v1361 = vmax.f32 %v1359, %v1360
    %v1362 = vrot.slane %v1361, 2
    %v1363 = vmax.f32 %v1361, %v1362
    %v1364 = vrot.slane %v1363, 1
    %v1365 = vmax.f32 %v1363, %v1364
    %v1366 = vsel %vm1239, %v1061, -inf
    %v1367 = vsel %vm1239, %v1066, -inf
    %v1368 = vmax.f32 %v1366, %v1367
    %v1369 = vrot.slane %v1368, 4
    %v1370 = vmax.f32 %v1368, %v1369
    %v1371 = vrot.slane %v1370, 2
    %v1372 = vmax.f32 %v1370, %v1371
    %v1373 = vrot.slane %v1372, 1
    %v1374 = vmax.f32 %v1372, %v1373
    %v1375 = vsel %vm1239, %v1071, -inf
    %v1376 = vsel %vm1239, %v1076, -inf
    %v1377 = vmax.f32 %v1375, %v1376
    %v1378 = vrot.slane %v1377, 4
    %v1379 = vmax.f32 %v1377, %v1378
    %v1380 = vrot.slane %v1379, 2
    %v1381 = vmax.f32 %v1379, %v1380
    %v1382 = vrot.slane %v1381, 1
    %v1383 = vmax.f32 %v1381, %v1382
    %v1384 = vsel %vm1239, %v1081, -inf
    %v1385 = vsel %vm1239, %v1086, -inf
    %v1386 = vmax.f32 %v1384, %v1385
    %v1387 = vrot.slane %v1386, 4
    %v1388 = vmax.f32 %v1386, %v1387
    %v1389 = vrot.slane %v1388, 2
    %v1390 = vmax.f32 %v1388, %v1389
    %v1391 = vrot.slane %v1390, 1
    %v1392 = vmax.f32 %v1390, %v1391
    %v1393 = vsel %vm1239, %v1091, -inf
    %v1394 = vsel %vm1239, %v1096, -inf
    %v1395 = vmax.f32 %v1393, %v1394
    %v1396 = vrot.slane %v1395, 4
    %v1397 = vmax.f32 %v1395, %v1396
    %v1398 = vrot.slane %v1397, 2
    %v1399 = vmax.f32 %v1397, %v1398
    %v1400 = vrot.slane %v1399, 1
    %v1401 = vmax.f32 %v1399, %v1400
    %v1402 = vsel %vm1239, %v1101, -inf
    %v1403 = vsel %vm1239, %v1106, -inf
    %v1404 = vmax.f32 %v1402, %v1403
    %v1405 = vrot.slane %v1404, 4
    %v1406 = vmax.f32 %v1404, %v1405
    %v1407 = vrot.slane %v1406, 2
    %v1408 = vmax.f32 %v1406, %v1407
    %v1409 = vrot.slane %v1408, 1
    %v1410 = vmax.f32 %v1408, %v1409
    %v1411 = vsel %vm1239, %v1111, -inf
    %v1412 = vsel %vm1239, %v1116, -inf
    %v1413 = vmax.f32 %v1411, %v1412
    %v1414 = vrot.slane %v1413, 4
    %v1415 = vmax.f32 %v1413, %v1414
    %v1416 = vrot.slane %v1415, 2
    %v1417 = vmax.f32 %v1415, %v1416
    %v1418 = vrot.slane %v1417, 1
    %v1419 = vmax.f32 %v1417, %v1418
    %v1420 = vsel %vm1239, %v1121, -inf
    %v1421 = vsel %vm1239, %v1126, -inf
    %v1422 = vmax.f32 %v1420, %v1421
    %v1423 = vrot.slane %v1422, 4
    %v1424 = vmax.f32 %v1422, %v1423
    %v1425 = vrot.slane %v1424, 2
    %v1426 = vmax.f32 %v1424, %v1425
    %v1427 = vrot.slane %v1426, 1
    %v1428 = vmax.f32 %v1426, %v1427
    %v1429 = vsel %vm1239, %v1131, -inf
    %v1430 = vsel %vm1239, %v1136, -inf
    %v1431 = vmax.f32 %v1429, %v1430
    %v1432 = vrot.slane %v1431, 4
    %v1433 = vmax.f32 %v1431, %v1432
    %v1434 = vrot.slane %v1433, 2
    %v1435 = vmax.f32 %v1433, %v1434
    %v1436 = vrot.slane %v1435, 1
    %v1437 = vmax.f32 %v1435, %v1436
    %v1438 = vsel %vm1239, %v1141, -inf
    %v1439 = vsel %vm1239, %v1146, -inf
    %v1440 = vmax.f32 %v1438, %v1439
    %v1441 = vrot.slane %v1440, 4
    %v1442 = vmax.f32 %v1440, %v1441
    %v1443 = vrot.slane %v1442, 2
    %v1444 = vmax.f32 %v1442, %v1443
    %v1445 = vrot.slane %v1444, 1
    %v1446 = vmax.f32 %v1444, %v1445
    %v1447 = vsel %vm1239, %v1151, -inf
    %v1448 = vsel %vm1239, %v1156, -inf
    %v1449 = vmax.f32 %v1447, %v1448
    %v1450 = vrot.slane %v1449, 4
    %v1451 = vmax.f32 %v1449, %v1450
    %v1452 = vrot.slane %v1451, 2
    %v1453 = vmax.f32 %v1451, %v1452
    %v1454 = vrot.slane %v1453, 1
    %v1455 = vmax.f32 %v1453, %v1454
    %v1456 = vsel %vm1239, %v1161, -inf
    %v1457 = vsel %vm1239, %v1166, -inf
    %v1458 = vmax.f32 %v1456, %v1457
    %v1459 = vrot.slane %v1458, 4
    %v1460 = vmax.f32 %v1458, %v1459
    %v1461 = vrot.slane %v1460, 2
    %v1462 = vmax.f32 %v1460, %v1461
    %v1463 = vrot.slane %v1462, 1
    %v1464 = vmax.f32 %v1462, %v1463
    %v1465 = vsel %vm1239, %v1171, -inf
    %v1466 = vsel %vm1239, %v1176, -inf
    %v1467 = vmax.f32 %v1465, %v1466
    %v1468 = vrot.slane %v1467, 4
    %v1469 = vmax.f32 %v1467, %v1468
    %v1470 = vrot.slane %v1469, 2
    %v1471 = vmax.f32 %v1469, %v1470
    %v1472 = vrot.slane %v1471, 1
    %v1473 = vmax.f32 %v1471, %v1472
    %v1474 = vsel %vm1239, %v1181, -inf
    %v1475 = vsel %vm1239, %v1186, -inf
    %v1476 = vmax.f32 %v1474, %v1475
    %v1477 = vrot.slane %v1476, 4
    %v1478 = vmax.f32 %v1476, %v1477
    %v1479 = vrot.slane %v1478, 2
    %v1480 = vmax.f32 %v1478, %v1479
    %v1481 = vrot.slane %v1480, 1
    %v1482 = vmax.f32 %v1480, %v1481
    %v1483 = vsel %vm1239, %v1191, -inf
    %v1484 = vsel %vm1239, %v1196, -inf
    %v1485 = vmax.f32 %v1483, %v1484
    %v1486 = vrot.slane %v1485, 4
    %v1487 = vmax.f32 %v1485, %v1486
    %v1488 = vrot.slane %v1487, 2
    %v1489 = vmax.f32 %v1487, %v1488
    %v1490 = vrot.slane %v1489, 1
    %v1491 = vmax.f32 %v1489, %v1490
    %v1492 = vsel %vm1239, %v1201, -inf
    %v1493 = vsel %vm1239, %v1206, -inf
    %v1494 = vmax.f32 %v1492, %v1493
    %v1495 = vrot.slane %v1494, 4
    %v1496 = vmax.f32 %v1494, %v1495
    %v1497 = vrot.slane %v1496, 2
    %v1498 = vmax.f32 %v1496, %v1497
    %v1499 = vrot.slane %v1498, 1
    %v1500 = vmax.f32 %v1498, %v1499
    %v1501 = vsel %vm1239, %v1211, -inf
    %v1502 = vsel %vm1239, %v1216, -inf
    %v1503 = vmax.f32 %v1501, %v1502
    %v1504 = vrot.slane %v1503, 4
    %v1505 = vmax.f32 %v1503, %v1504
    %v1506 = vrot.slane %v1505, 2
    %v1507 = vmax.f32 %v1505, %v1506
    %v1508 = vrot.slane %v1507, 1
    %v1509 = vmax.f32 %v1507, %v1508
    %v1510 = vsel %vm1239, %v1221, -inf
    %v1511 = vsel %vm1239, %v1226, -inf
    %v1512 = vmax.f32 %v1510, %v1511
    %v1513 = vrot.slane %v1512, 4
    %v1514 = vmax.f32 %v1512, %v1513
    %v1515 = vrot.slane %v1514, 2
    %v1516 = vmax.f32 %v1514, %v1515
    %v1517 = vrot.slane %v1516, 1
    %v1518 = vmax.f32 %v1516, %v1517
    %v1519 = vsel %vm1239, %v1231, -inf
    %v1520 = vsel %vm1239, %v1236, -inf
    %v1521 = vmax.f32 %v1519, %v1520
    %v1522 = vrot.slane %v1521, 4
    %v1523 = vmax.f32 %v1521, %v1522
    %v1524 = vrot.slane %v1523, 2
    %v1525 = vmax.f32 %v1523, %v1524
    %v1526 = vrot.slane %v1525, 1
    %v1527 = vmax.f32 %v1525, %v1526
    %v1528 = vsub.f32 %v921, %v1248
    %v1529 = vsub.f32 %v926, %v1248
    %v1530 = vsub.f32 %v931, %v1257
    %v1531 = vsub.f32 %v936, %v1257
    %v1532 = vsub.f32 %v941, %v1266
    %v1533 = vsub.f32 %v946, %v1266
    %v1534 = vsub.f32 %v951, %v1275
    %v1535 = vsub.f32 %v956, %v1275
    %v1536 = vsub.f32 %v961, %v1284
    %v1537 = vsub.f32 %v966, %v1284
    %v1538 = vsub.f32 %v971, %v1293
    %v1539 = vsub.f32 %v976, %v1293
    %v1540 = vsub.f32 %v981, %v1302
    %v1541 = vsub.f32 %v986, %v1302
    %v1542 = vsub.f32 %v991, %v1311
    %v1543 = vsub.f32 %v996, %v1311
    %v1544 = vsub.f32 %v1001, %v1320
    %v1545 = vsub.f32 %v1006, %v1320
    %v1546 = vsub.f32 %v1011, %v1329
    %v1547 = vsub.f32 %v1016, %v1329
    %v1548 = vsub.f32 %v1021, %v1338
    %v1549 = vsub.f32 %v1026, %v1338
    %v1550 = vsub.f32 %v1031, %v1347
    %v1551 = vsub.f32 %v1036, %v1347
    %v1552 = vsub.f32 %v1041, %v1356
    %v1553 = vsub.f32 %v1046, %v1356
    %v1554 = vsub.f32 %v1051, %v1365
    %v1555 = vsub.f32 %v1056, %v1365
    %v1556 = vsub.f32 %v1061, %v1374
    %v1557 = vsub.f32 %v1066, %v1374
    %v1558 = vsub.f32 %v1071, %v1383
    %v1559 = vsub.f32 %v1076, %v1383
    %v1560 = vsub.f32 %v1081, %v1392
    %v1561 = vsub.f32 %v1086, %v1392
    %v1562 = vsub.f32 %v1091, %v1401
    %v1563 = vsub.f32 %v1096, %v1401
    %v1564 = vsub.f32 %v1101, %v1410
    %v1565 = vsub.f32 %v1106, %v1410
    %v1566 = vsub.f32 %v1111, %v1419
    %v1567 = vsub.f32 %v1116, %v1419
    %v1568 = vsub.f32 %v1121, %v1428
    %v1569 = vsub.f32 %v1126, %v1428
    %v1570 = vsub.f32 %v1131, %v1437
    %v1571 = vsub.f32 %v1136, %v1437
    %v1572 = vsub.f32 %v1141, %v1446
    %v1573 = vsub.f32 %v1146, %v1446
    %v1574 = vsub.f32 %v1151, %v1455
    %v1575 = vsub.f32 %v1156, %v1455
    %v1576 = vsub.f32 %v1161, %v1464
    %v1577 = vsub.f32 %v1166, %v1464
    %v1578 = vsub.f32 %v1171, %v1473
    %v1579 = vsub.f32 %v1176, %v1473
    %v1580 = vsub.f32 %v1181, %v1482
    %v1581 = vsub.f32 %v1186, %v1482
    %v1582 = vsub.f32 %v1191, %v1491
    %v1583 = vsub.f32 %v1196, %v1491
    %v1584 = vsub.f32 %v1201, %v1500
    %v1585 = vsub.f32 %v1206, %v1500
    %v1586 = vsub.f32 %v1211, %v1509
    %v1587 = vsub.f32 %v1216, %v1509
    %v1588 = vsub.f32 %v1221, %v1518
    %v1589 = vsub.f32 %v1226, %v1518
    %v1590 = vsub.f32 %v1231, %v1527
    %v1591 = vsub.f32 %v1236, %v1527
    %v1592 = vmul.f32 %v1528, 1.442695
    %v1593 = vpow.pop %v1592
    %v1594 = vmul.f32 %v1529, 1.442695
    %v1595 = vpow.pop %v1594
    %v1596 = vmul.f32 %v1530, 1.442695
    %v1597 = vpow.pop %v1596
    %v1598 = vmul.f32 %v1531, 1.442695
    %v1599 = vpow.pop %v1598
    %v1600 = vmul.f32 %v1532, 1.442695
    %v1601 = vpow.pop %v1600
    %v1602 = vmul.f32 %v1533, 1.442695
    %v1603 = vpow.pop %v1602
    %v1604 = vmul.f32 %v1534, 1.442695
    %v1605 = vpow.pop %v1604
    %v1606 = vmul.f32 %v1535, 1.442695
    %v1607 = vpow.pop %v1606
    %v1608 = vmul.f32 %v1536, 1.442695
    %v1609 = vpow.pop %v1608
    %v1610 = vmul.f32 %v1537, 1.442695
    %v1611 = vpow.pop %v1610
    %v1612 = vmul.f32 %v1538, 1.442695
    %v1613 = vpow.pop %v1612
    %v1614 = vmul.f32 %v1539, 1.442695
    %v1615 = vpow.pop %v1614
    %v1616 = vmul.f32 %v1540, 1.442695
    %v1617 = vpow.pop %v1616
    %v1618 = vmul.f32 %v1541, 1.442695
    %v1619 = vpow.pop %v1618
    %v1620 = vmul.f32 %v1542, 1.442695
    %v1621 = vpow.pop %v1620
    %v1622 = vmul.f32 %v1543, 1.442695
    %v1623 = vpow.pop %v1622
    %v1624 = vmul.f32 %v1544, 1.442695
    %v1625 = vpow.pop %v1624
    %v1626 = vmul.f32 %v1545, 1.442695
    %v1627 = vpow.pop %v1626
    %v1628 = vmul.f32 %v1546, 1.442695
    %v1629 = vpow.pop %v1628
    %v1630 = vmul.f32 %v1547, 1.442695
    %v1631 = vpow.pop %v1630
    %v1632 = vmul.f32 %v1548, 1.442695
    %v1633 = vpow.pop %v1632
    %v1634 = vmul.f32 %v1549, 1.442695
    %v1635 = vpow.pop %v1634
    %v1636 = vmul.f32 %v1550, 1.442695
    %v1637 = vpow.pop %v1636
    %v1638 = vmul.f32 %v1551, 1.442695
    %v1639 = vpow.pop %v1638
    %v1640 = vmul.f32 %v1552, 1.442695
    %v1641 = vpow.pop %v1640
    %v1642 = vmul.f32 %v1553, 1.442695
    %v1643 = vpow.pop %v1642
    %v1644 = vmul.f32 %v1554, 1.442695
    %v1645 = vpow.pop %v1644
    %v1646 = vmul.f32 %v1555, 1.442695
    %v1647 = vpow.pop %v1646
    %v1648 = vmul.f32 %v1556, 1.442695
    %v1649 = vpow.pop %v1648
    %v1650 = vmul.f32 %v1557, 1.442695
    %v1651 = vpow.pop %v1650
    %v1652 = vmul.f32 %v1558, 1.442695
    %v1653 = vpow.pop %v1652
    %v1654 = vmul.f32 %v1559, 1.442695
    %v1655 = vpow.pop %v1654
    %v1656 = vmul.f32 %v1560, 1.442695
    %v1657 = vpow.pop %v1656
    %v1658 = vmul.f32 %v1561, 1.442695
    %v1659 = vpow.pop %v1658
    %v1660 = vmul.f32 %v1562, 1.442695
    %v1661 = vpow.pop %v1660
    %v1662 = vmul.f32 %v1563, 1.442695
    %v1663 = vpow.pop %v1662
    %v1664 = vmul.f32 %v1564, 1.442695
    %v1665 = vpow.pop %v1664
    %v1666 = vmul.f32 %v1565, 1.442695
    %v1667 = vpow.pop %v1666
    %v1668 = vmul.f32 %v1566, 1.442695
    %v1669 = vpow.pop %v1668
    %v1670 = vmul.f32 %v1567, 1.442695
    %v1671 = vpow.pop %v1670
    %v1672 = vmul.f32 %v1568, 1.442695
    %v1673 = vpow.pop %v1672
    %v1674 = vmul.f32 %v1569, 1.442695
    %v1675 = vpow.pop %v1674
    %v1676 = vmul.f32 %v1570, 1.442695
    %v1677 = vpow.pop %v1676
    %v1678 = vmul.f32 %v1571, 1.442695
    %v1679 = vpow.pop %v1678
    %v1680 = vmul.f32 %v1572, 1.442695
    %v1681 = vpow.pop %v1680
    %v1682 = vmul.f32 %v1573, 1.442695
    %v1683 = vpow.pop %v1682
    %v1684 = vmul.f32 %v1574, 1.442695
    %v1685 = vpow.pop %v1684
    %v1686 = vmul.f32 %v1575, 1.442695
    %v1687 = vpow.pop %v1686
    %v1688 = vmul.f32 %v1576, 1.442695
    %v1689 = vpow.pop %v1688
    %v1690 = vmul.f32 %v1577, 1.442695
    %v1691 = vpow.pop %v1690
    %v1692 = vmul.f32 %v1578, 1.442695
    %v1693 = vpow.pop %v1692
    %v1694 = vmul.f32 %v1579, 1.442695
    %v1695 = vpow.pop %v1694
    %v1696 = vmul.f32 %v1580, 1.442695
    %v1697 = vpow.pop %v1696
    %v1698 = vmul.f32 %v1581, 1.442695
    %v1699 = vpow.pop %v1698
    %v1700 = vmul.f32 %v1582, 1.442695
    %v1701 = vpow.pop %v1700
    %v1702 = vmul.f32 %v1583, 1.442695
    %v1703 = vpow.pop %v1702
    %v1704 = vmul.f32 %v1584, 1.442695
    %v1705 = vpow.pop %v1704
    %v1706 = vmul.f32 %v1585, 1.442695
    %v1707 = vpow.pop %v1706
    %v1708 = vmul.f32 %v1586, 1.442695
    %v1709 = vpow.pop %v1708
    %v1710 = vmul.f32 %v1587, 1.442695
    %v1711 = vpow.pop %v1710
    %v1712 = vmul.f32 %v1588, 1.442695
    %v1713 = vpow.pop %v1712
    %v1714 = vmul.f32 %v1589, 1.442695
    %v1715 = vpow.pop %v1714
    %v1716 = vmul.f32 %v1590, 1.442695
    %v1717 = vpow.pop %v1716
    %v1718 = vmul.f32 %v1591, 1.442695
    %v1719 = vpow.pop %v1718
    %v1720 = vsel %vm1239, %v1593, 0.0
    %v1721 = vsel %vm1239, %v1595, 0.0
    %v1722 = vadd.f32 %v1720, %v1721
    %v1723 = vrot.slane %v1722, 4
    %v1724 = vadd.f32 %v1722, %v1723
    %v1725 = vrot.slane %v1724, 2
    %v1726 = vadd.f32 %v1724, %v1725
    %v1727 = vrot.slane %v1726, 1
    %v1728 = vadd.f32 %v1726, %v1727
    %v1729 = vsel %vm1239, %v1597, 0.0
    %v1730 = vsel %vm1239, %v1599, 0.0
    %v1731 = vadd.f32 %v1729, %v1730
    %v1732 = vrot.slane %v1731, 4
    %v1733 = vadd.f32 %v1731, %v1732
    %v1734 = vrot.slane %v1733, 2
    %v1735 = vadd.f32 %v1733, %v1734
    %v1736 = vrot.slane %v1735, 1
    %v1737 = vadd.f32 %v1735, %v1736
    %v1738 = vsel %vm1239, %v1601, 0.0
    %v1739 = vsel %vm1239, %v1603, 0.0
    %v1740 = vadd.f32 %v1738, %v1739
    %v1741 = vrot.slane %v1740, 4
    %v1742 = vadd.f32 %v1740, %v1741
    %v1743 = vrot.slane %v1742, 2
    %v1744 = vadd.f32 %v1742, %v1743
    %v1745 = vrot.slane %v1744, 1
    %v1746 = vadd.f32 %v1744, %v1745
    %v1747 = vsel %vm1239, %v1605, 0.0
    %v1748 = vsel %vm1239, %v1607, 0.0
    %v1749 = vadd.f32 %v1747, %v1748
    %v1750 = vrot.slane %v1749, 4
    %v1751 = vadd.f32 %v1749, %v1750
    %v1752 = vrot.slane %v1751, 2
    %v1753 = vadd.f32 %v1751, %v1752
    %v1754 = vrot.slane %v1753, 1
    %v1755 = vadd.f32 %v1753, %v1754
    %v1756 = vsel %vm1239, %v1609, 0.0
    %v1757 = vsel %vm1239, %v1611, 0.0
    %v1758 = vadd.f32 %v1756, %v1757
    %v1759 = vrot.slane %v1758, 4
    %v1760 = vadd.f32 %v1758, %v1759
    %v1761 = vrot.slane %v1760, 2
    %v1762 = vadd.f32 %v1760, %v1761
    %v1763 = vrot.slane %v1762, 1
    %v1764 = vadd.f32 %v1762, %v1763
    %v1765 = vsel %vm1239, %v1613, 0.0
    %v1766 = vsel %vm1239, %v1615, 0.0
    %v1767 = vadd.f32 %v1765, %v1766
    %v1768 = vrot.slane %v1767, 4
    %v1769 = vadd.f32 %v1767, %v1768
    %v1770 = vrot.slane %v1769, 2
    %v1771 = vadd.f32 %v1769, %v1770
    %v1772 = vrot.slane %v1771, 1
    %v1773 = vadd.f32 %v1771, %v1772
    %v1774 = vsel %vm1239, %v1617, 0.0
    %v1775 = vsel %vm1239, %v1619, 0.0
    %v1776 = vadd.f32 %v1774, %v1775
    %v1777 = vrot.slane %v1776, 4
    %v1778 = vadd.f32 %v1776, %v1777
    %v1779 = vrot.slane %v1778, 2
    %v1780 = vadd.f32 %v1778, %v1779
    %v1781 = vrot.slane %v1780, 1
    %v1782 = vadd.f32 %v1780, %v1781
    %v1783 = vsel %vm1239, %v1621, 0.0
    %v1784 = vsel %vm1239, %v1623, 0.0
    %v1785 = vadd.f32 %v1783, %v1784
    %v1786 = vrot.slane %v1785, 4
    %v1787 = vadd.f32 %v1785, %v1786
    %v1788 = vrot.slane %v1787, 2
    %v1789 = vadd.f32 %v1787, %v1788
    %v1790 = vrot.slane %v1789, 1
    %v1791 = vadd.f32 %v1789, %v1790
    %v1792 = vsel %vm1239, %v1625, 0.0
    %v1793 = vsel %vm1239, %v1627, 0.0
    %v1794 = vadd.f32 %v1792, %v1793
    %v1795 = vrot.slane %v1794, 4
    %v1796 = vadd.f32 %v1794, %v1795
    %v1797 = vrot.slane %v1796, 2
    %v1798 = vadd.f32 %v1796, %v1797
    %v1799 = vrot.slane %v1798, 1
    %v1800 = vadd.f32 %v1798, %v1799
    %v1801 = vsel %vm1239, %v1629, 0.0
    %v1802 = vsel %vm1239, %v1631, 0.0
    %v1803 = vadd.f32 %v1801, %v1802
    %v1804 = vrot.slane %v1803, 4
    %v1805 = vadd.f32 %v1803, %v1804
    %v1806 = vrot.slane %v1805, 2
    %v1807 = vadd.f32 %v1805, %v1806
    %v1808 = vrot.slane %v1807, 1
    %v1809 = vadd.f32 %v1807, %v1808
    %v1810 = vsel %vm1239, %v1633, 0.0
    %v1811 = vsel %vm1239, %v1635, 0.0
    %v1812 = vadd.f32 %v1810, %v1811
    %v1813 = vrot.slane %v1812, 4
    %v1814 = vadd.f32 %v1812, %v1813
    %v1815 = vrot.slane %v1814, 2
    %v1816 = vadd.f32 %v1814, %v1815
    %v1817 = vrot.slane %v1816, 1
    %v1818 = vadd.f32 %v1816, %v1817
    %v1819 = vsel %vm1239, %v1637, 0.0
    %v1820 = vsel %vm1239, %v1639, 0.0
    %v1821 = vadd.f32 %v1819, %v1820
    %v1822 = vrot.slane %v1821, 4
    %v1823 = vadd.f32 %v1821, %v1822
    %v1824 = vrot.slane %v1823, 2
    %v1825 = vadd.f32 %v1823, %v1824
    %v1826 = vrot.slane %v1825, 1
    %v1827 = vadd.f32 %v1825, %v1826
    %v1828 = vsel %vm1239, %v1641, 0.0
    %v1829 = vsel %vm1239, %v1643, 0.0
    %v1830 = vadd.f32 %v1828, %v1829
    %v1831 = vrot.slane %v1830, 4
    %v1832 = vadd.f32 %v1830, %v1831
    %v1833 = vrot.slane %v1832, 2
    %v1834 = vadd.f32 %v1832, %v1833
    %v1835 = vrot.slane %v1834, 1
    %v1836 = vadd.f32 %v1834, %v1835
    %v1837 = vsel %vm1239, %v1645, 0.0
    %v1838 = vsel %vm1239, %v1647, 0.0
    %v1839 = vadd.f32 %v1837, %v1838
    %v1840 = vrot.slane %v1839, 4
    %v1841 = vadd.f32 %v1839, %v1840
    %v1842 = vrot.slane %v1841, 2
    %v1843 = vadd.f32 %v1841, %v1842
    %v1844 = vrot.slane %v1843, 1
    %v1845 = vadd.f32 %v1843, %v1844
    %v1846 = vsel %vm1239, %v1649, 0.0
    %v1847 = vsel %vm1239, %v1651, 0.0
    %v1848 = vadd.f32 %v1846, %v1847
    %v1849 = vrot.slane %v1848, 4
    %v1850 = vadd.f32 %v1848, %v1849
    %v1851 = vrot.slane %v1850, 2
    %v1852 = vadd.f32 %v1850, %v1851
    %v1853 = vrot.slane %v1852, 1
    %v1854 = vadd.f32 %v1852, %v1853
    %v1855 = vsel %vm1239, %v1653, 0.0
    %v1856 = vsel %vm1239, %v1655, 0.0
    %v1857 = vadd.f32 %v1855, %v1856
    %v1858 = vrot.slane %v1857, 4
    %v1859 = vadd.f32 %v1857, %v1858
    %v1860 = vrot.slane %v1859, 2
    %v1861 = vadd.f32 %v1859, %v1860
    %v1862 = vrot.slane %v1861, 1
    %v1863 = vadd.f32 %v1861, %v1862
    %v1864 = vsel %vm1239, %v1657, 0.0
    %v1865 = vsel %vm1239, %v1659, 0.0
    %v1866 = vadd.f32 %v1864, %v1865
    %v1867 = vrot.slane %v1866, 4
    %v1868 = vadd.f32 %v1866, %v1867
    %v1869 = vrot.slane %v1868, 2
    %v1870 = vadd.f32 %v1868, %v1869
    %v1871 = vrot.slane %v1870, 1
    %v1872 = vadd.f32 %v1870, %v1871
    %v1873 = vsel %vm1239, %v1661, 0.0
    %v1874 = vsel %vm1239, %v1663, 0.0
    %v1875 = vadd.f32 %v1873, %v1874
    %v1876 = vrot.slane %v1875, 4
    %v1877 = vadd.f32 %v1875, %v1876
    %v1878 = vrot.slane %v1877, 2
    %v1879 = vadd.f32 %v1877, %v1878
    %v1880 = vrot.slane %v1879, 1
    %v1881 = vadd.f32 %v1879, %v1880
    %v1882 = vsel %vm1239, %v1665, 0.0
    %v1883 = vsel %vm1239, %v1667, 0.0
    %v1884 = vadd.f32 %v1882, %v1883
    %v1885 = vrot.slane %v1884, 4
    %v1886 = vadd.f32 %v1884, %v1885
    %v1887 = vrot.slane %v1886, 2
    %v1888 = vadd.f32 %v1886, %v1887
    %v1889 = vrot.slane %v1888, 1
    %v1890 = vadd.f32 %v1888, %v1889
    %v1891 = vsel %vm1239, %v1669, 0.0
    %v1892 = vsel %vm1239, %v1671, 0.0
    %v1893 = vadd.f32 %v1891, %v1892
    %v1894 = vrot.slane %v1893, 4
    %v1895 = vadd.f32 %v1893, %v1894
    %v1896 = vrot.slane %v1895, 2
    %v1897 = vadd.f32 %v1895, %v1896
    %v1898 = vrot.slane %v1897, 1
    %v1899 = vadd.f32 %v1897, %v1898
    %v1900 = vsel %vm1239, %v1673, 0.0
    %v1901 = vsel %vm1239, %v1675, 0.0
    %v1902 = vadd.f32 %v1900, %v1901
    %v1903 = vrot.slane %v1902, 4
    %v1904 = vadd.f32 %v1902, %v1903
    %v1905 = vrot.slane %v1904, 2
    %v1906 = vadd.f32 %v1904, %v1905
    %v1907 = vrot.slane %v1906, 1
    %v1908 = vadd.f32 %v1906, %v1907
    %v1909 = vsel %vm1239, %v1677, 0.0
    %v1910 = vsel %vm1239, %v1679, 0.0
    %v1911 = vadd.f32 %v1909, %v1910
    %v1912 = vrot.slane %v1911, 4
    %v1913 = vadd.f32 %v1911, %v1912
    %v1914 = vrot.slane %v1913, 2
    %v1915 = vadd.f32 %v1913, %v1914
    %v1916 = vrot.slane %v1915, 1
    %v1917 = vadd.f32 %v1915, %v1916
    %v1918 = vsel %vm1239, %v1681, 0.0
    %v1919 = vsel %vm1239, %v1683, 0.0
    %v1920 = vadd.f32 %v1918, %v1919
    %v1921 = vrot.slane %v1920, 4
    %v1922 = vadd.f32 %v1920, %v1921
    %v1923 = vrot.slane %v1922, 2
    %v1924 = vadd.f32 %v1922, %v1923
    %v1925 = vrot.slane %v1924, 1
    %v1926 = vadd.f32 %v1924, %v1925
    %v1927 = vsel %vm1239, %v1685, 0.0
    %v1928 = vsel %vm1239, %v1687, 0.0
    %v1929 = vadd.f32 %v1927, %v1928
    %v1930 = vrot.slane %v1929, 4
    %v1931 = vadd.f32 %v1929, %v1930
    %v1932 = vrot.slane %v1931, 2
    %v1933 = vadd.f32 %v1931, %v1932
    %v1934 = vrot.slane %v1933, 1
    %v1935 = vadd.f32 %v1933, %v1934
    %v1936 = vsel %vm1239, %v1689, 0.0
    %v1937 = vsel %vm1239, %v1691, 0.0
    %v1938 = vadd.f32 %v1936, %v1937
    %v1939 = vrot.slane %v1938, 4
    %v1940 = vadd.f32 %v1938, %v1939
    %v1941 = vrot.slane %v1940, 2
    %v1942 = vadd.f32 %v1940, %v1941
    %v1943 = vrot.slane %v1942, 1
    %v1944 = vadd.f32 %v1942, %v1943
    %v1945 = vsel %vm1239, %v1693, 0.0
    %v1946 = vsel %vm1239, %v1695, 0.0
    %v1947 = vadd.f32 %v1945, %v1946
    %v1948 = vrot.slane %v1947, 4
    %v1949 = vadd.f32 %v1947, %v1948
    %v1950 = vrot.slane %v1949, 2
    %v1951 = vadd.f32 %v1949, %v1950
    %v1952 = vrot.slane %v1951, 1
    %v1953 = vadd.f32 %v1951, %v1952
    %v1954 = vsel %vm1239, %v1697, 0.0
    %v1955 = vsel %vm1239, %v1699, 0.0
    %v1956 = vadd.f32 %v1954, %v1955
    %v1957 = vrot.slane %v1956, 4
    %v1958 = vadd.f32 %v1956, %v1957
    %v1959 = vrot.slane %v1958, 2
    %v1960 = vadd.f32 %v1958, %v1959
    %v1961 = vrot.slane %v1960, 1
    %v1962 = vadd.f32 %v1960, %v1961
    %v1963 = vsel %vm1239, %v1701, 0.0
    %v1964 = vsel %vm1239, %v1703, 0.0
    %v1965 = vadd.f32 %v1963, %v1964
    %v1966 = vrot.slane %v1965, 4
    %v1967 = vadd.f32 %v1965, %v1966
    %v1968 = vrot.slane %v1967, 2
    %v1969 = vadd.f32 %v1967, %v1968
    %v1970 = vrot.slane %v1969, 1
    %v1971 = vadd.f32 %v1969, %v1970
    %v1972 = vsel %vm1239, %v1705, 0.0
    %v1973 = vsel %vm1239, %v1707, 0.0
    %v1974 = vadd.f32 %v1972, %v1973
    %v1975 = vrot.slane %v1974, 4
    %v1976 = vadd.f32 %v1974, %v1975
    %v1977 = vrot.slane %v1976, 2
    %v1978 = vadd.f32 %v1976, %v1977
    %v1979 = vrot.slane %v1978, 1
    %v1980 = vadd.f32 %v1978, %v1979
    %v1981 = vsel %vm1239, %v1709, 0.0
    %v1982 = vsel %vm1239, %v1711, 0.0
    %v1983 = vadd.f32 %v1981, %v1982
    %v1984 = vrot.slane %v1983, 4
    %v1985 = vadd.f32 %v1983, %v1984
    %v1986 = vrot.slane %v1985, 2
    %v1987 = vadd.f32 %v1985, %v1986
    %v1988 = vrot.slane %v1987, 1
    %v1989 = vadd.f32 %v1987, %v1988
    %v1990 = vsel %vm1239, %v1713, 0.0
    %v1991 = vsel %vm1239, %v1715, 0.0
    %v1992 = vadd.f32 %v1990, %v1991
    %v1993 = vrot.slane %v1992, 4
    %v1994 = vadd.f32 %v1992, %v1993
    %v1995 = vrot.slane %v1994, 2
    %v1996 = vadd.f32 %v1994, %v1995
    %v1997 = vrot.slane %v1996, 1
    %v1998 = vadd.f32 %v1996, %v1997
    %v1999 = vsel %vm1239, %v1717, 0.0
    %v2000 = vsel %vm1239, %v1719, 0.0
    %v2001 = vadd.f32 %v1999, %v2000
    %v2002 = vrot.slane %v2001, 4
    %v2003 = vadd.f32 %v2001, %v2002
    %v2004 = vrot.slane %v2003, 2
    %v2005 = vadd.f32 %v2003, %v2004
    %v2006 = vrot.slane %v2005, 1
    %v2007 = vadd.f32 %v2005, %v2006
    %v2008 = vrcp.pop %v1728
    %v2009 = vrcp.pop %v1737
    %v2010 = vrcp.pop %v1746
    %v2011 = vrcp.pop %v1755
    %v2012 = vrcp.pop %v1764
    %v2013 = vrcp.pop %v1773
    %v2014 = vrcp.pop %v1782
    %v2015 = vrcp.pop %v1791
    %v2016 = vrcp.pop %v1800
    %v2017 = vrcp.pop %v1809
    %v2018 = vrcp.pop %v1818
    %v2019 = vrcp.pop %v1827
    %v2020 = vrcp.pop %v1836
    %v2021 = vrcp.pop %v1845
    %v2022 = vrcp.pop %v1854
    %v2023 = vrcp.pop %v1863
    %v2024 = vrcp.pop %v1872
    %v2025 = vrcp.pop %v1881
    %v2026 = vrcp.pop %v1890
    %v2027 = vrcp.pop %v1899
    %v2028 = vrcp.pop %v1908
    %v2029 = vrcp.pop %v1917
    %v2030 = vrcp.pop %v1926
    %v2031 = vrcp.pop %v1935
    %v2032 = vrcp.pop %v1944
    %v2033 = vrcp.pop %v1953
    %v2034 = vrcp.pop %v1962
    %v2035 = vrcp.pop %v1971
    %v2036 = vrcp.pop %v1980
    %v2037 = vrcp.pop %v1989
    %v2038 = vrcp.pop %v1998
    %v2039 = vrcp.pop %v2007
    %v2040 = vmul.f32 %v1593, %v2008
    %v2041 = vmul.f32 %v1595, %v2008
    %v2042 = vmul.f32 %v1597, %v2009
    %v2043 = vmul.f32 %v1599, %v2009
    %v2044 = vmul.f32 %v1601, %v2010
    %v2045 = vmul.f32 %v1603, %v2010
    %v2046 = vmul.f32 %v1605, %v2011
    %v2047 = vmul.f32 %v1607, %v2011
    %v2048 = vmul.f32 %v1609, %v2012
    %v2049 = vmul.f32 %v1611, %v2012
    %v2050 = vmul.f32 %v1613, %v2013
    %v2051 = vmul.f32 %v1615, %v2013
    %v2052 = vmul.f32 %v1617, %v2014
    %v2053 = vmul.f32 %v1619, %v2014
    %v2054 = vmul.f32 %v1621, %v2015
    %v2055 = vmul.f32 %v1623, %v2015
    %v2056 = vmul.f32 %v1625, %v2016
    %v2057 = vmul.f32 %v1627, %v2016
    %v2058 = vmul.f32 %v1629, %v2017
    %v2059 = vmul.f32 %v1631, %v2017
    %v2060 = vmul.f32 %v1633, %v2018
    %v2061 = vmul.f32 %v1635, %v2018
    %v2062 = vmul.f32 %v1637, %v2019
    %v2063 = vmul.f32 %v1639, %v2019
    %v2064 = vmul.f32 %v1641, %v2020
    %v2065 = vmul.f32 %v1643, %v2020
    %v2066 = vmul.f32 %v1645, %v2021
    %v2067 = vmul.f32 %v1647, %v2021
    %v2068 = vmul.f32 %v1649, %v2022
    %v2069 = vmul.f32 %v1651, %v2022
    %v2070 = vmul.f32 %v1653, %v2023
    %v2071 = vmul.f32 %v1655, %v2023
    %v2072 = vmul.f32 %v1657, %v2024
    %v2073 = vmul.f32 %v1659, %v2024
    %v2074 = vmul.f32 %v1661, %v2025
    %v2075 = vmul.f32 %v1663, %v2025
    %v2076 = vmul.f32 %v1665, %v2026
    %v2077 = vmul.f32 %v1667, %v2026
    %v2078 = vmul.f32 %v1669, %v2027
    %v2079 = vmul.f32 %v1671, %v2027
    %v2080 = vmul.f32 %v1673, %v2028
    %v2081 = vmul.f32 %v1675, %v2028
    %v2082 = vmul.f32 %v1677, %v2029
    %v2083 = vmul.f32 %v1679, %v2029
    %v2084 = vmul.f32 %v1681, %v2030
    %v2085 = vmul.f32 %v1683, %v2030
    %v2086 = vmul.f32 %v1685, %v2031
    %v2087 = vmul.f32 %v1687, %v2031
    %v2088 = vmul.f32 %v1689, %v2032
    %v2089 = vmul.f32 %v1691, %v2032
    %v2090 = vmul.f32 %v1693, %v2033
    %v2091 = vmul.f32 %v1695, %v2033
    %v2092 = vmul.f32 %v1697, %v2034
    %v2093 = vmul.f32 %v1699, %v2034
    %v2094 = vmul.f32 %v1701, %v2035
    %v2095 = vmul.f32 %v1703, %v2035
    %v2096 = vmul.f32 %v1705, %v2036
    %v2097 = vmul.f32 %v1707, %v2036
    %v2098 = vmul.f32 %v1709, %v2037
    %v2099 = vmul.f32 %v1711, %v2037
    %v2100 = vmul.f32 %v1713, %v2038
    %v2101 = vmul.f32 %v1715, %v2038
    %v2102 = vmul.f32 %v1717, %v2039
    %v2103 = vmul.f32 %v1719, %v2039
    %v2105 = vsel %vm1239, %v2040, 0
    %v2108 = vsel %vm1239, %v2041, 0
    %v2111 = vsel %vm1239, %v2042, 0
    %v2114 = vsel %vm1239, %v2043, 0
    %v2117 = vsel %vm1239, %v2044, 0
    %v2120 = vsel %vm1239, %v2045, 0
    %v2123 = vsel %vm1239, %v2046, 0
    %v2126 = vsel %vm1239, %v2047, 0
    %v2129 = vsel %vm1239, %v2048, 0
    %v2132 = vsel %vm1239, %v2049, 0
    %v2135 = vsel %vm1239, %v2050, 0
    %v2138 = vsel %vm1239, %v2051, 0
    %v2141 = vsel %vm1239, %v2052, 0
    %v2144 = vsel %vm1239, %v2053, 0
    %v2147 = vsel %vm1239, %v2054, 0
    %v2150 = vsel %vm1239, %v2055, 0
    %v2153 = vsel %vm1239, %v2056, 0
    %v2156 = vsel %vm1239, %v2057, 0
    %v2159 = vsel %vm1239, %v2058, 0
    %v2162 = vsel %vm1239, %v2059, 0
    %v2165 = vsel %vm1239, %v2060, 0
    %v2168 = vsel %vm1239, %v2061, 0
    %v2171 = vsel %vm1239, %v2062, 0
    %v2174 = vsel %vm1239, %v2063, 0
    %v2177 = vsel %vm1239, %v2064, 0
    %v2180 = vsel %vm1239, %v2065, 0
    %v2183 = vsel %vm1239, %v2066, 0
    %v2186 = vsel %vm1239, %v2067, 0
    %v2189 = vsel %vm1239, %v2068, 0
    %v2192 = vsel %vm1239, %v2069, 0
    %v2195 = vsel %vm1239, %v2070, 0
    %v2198 = vsel %vm1239, %v2071, 0
    %v2201 = vsel %vm1239, %v2072, 0
    %v2204 = vsel %vm1239, %v2073, 0
    %v2207 = vsel %vm1239, %v2074, 0
    %v2210 = vsel %vm1239, %v2075, 0
    %v2213 = vsel %vm1239, %v2076, 0
    %v2216 = vsel %vm1239, %v2077, 0
    %v2219 = vsel %vm1239, %v2078, 0
    %v2222 = vsel %vm1239, %v2079, 0
    %v2225 = vsel %vm1239, %v2080, 0
    %v2228 = vsel %vm1239, %v2081, 0
    %v2231 = vsel %vm1239, %v2082, 0
    %v2234 = vsel %vm1239, %v2083, 0
    %v2237 = vsel %vm1239, %v2084, 0
    %v2240 = vsel %vm1239, %v2085, 0
    %v2243 = vsel %vm1239, %v2086, 0
    %v2246 = vsel %vm1239, %v2087, 0
    %v2249 = vsel %vm1239, %v2088, 0
    %v2252 = vsel %vm1239, %v2089, 0
    %v2255 = vsel %vm1239, %v2090, 0
    %v2258 = vsel %vm1239, %v2091, 0
    %v2261 = vsel %vm1239, %v2092, 0
    %v2264 = vsel %vm1239, %v2093, 0
    %v2267 = vsel %vm1239, %v2094, 0
    %v2270 = vsel %vm1239, %v2095, 0
    %v2273 = vsel %vm1239, %v2096, 0
    %v2276 = vsel %vm1239, %v2097, 0
    %v2279 = vsel %vm1239, %v2098, 0
    %v2282 = vsel %vm1239, %v2099, 0
    %v2285 = vsel %vm1239, %v2100, 0
    %v2288 = vsel %vm1239, %v2101, 0
    %v2291 = vsel %vm1239, %v2102, 0
    %v2294 = vsel %vm1239, %v2103, 0
    %vm2296 = vcmask 1043456
    %v2298 = vsel %vm2296, %v47, 0
    %2300 = vmatprep.subr.mxu0 0.0
    %2301 = vmatpush1.msra.mxu0 0.0
    %2302 = vmatprep.subr.mxu0 0.0
    %2303 = vmatpush1.msra.mxu0 0.0
    %2304 = vmatprep.subr.mxu0 0.0
    %2305 = vmatpush1.msra.mxu0 0.0
    %2306 = vmatprep.subr.mxu0 0.0
    %2307 = vmatpush1.msra.mxu0 0.0
    %2308 = vmatprep.subr.mxu0 0.0
    %2309 = vmatpush1.msra.mxu0 0.0
    %2310 = vmatprep.subr.mxu0 0.0
    %2311 = vmatpush1.msra.mxu0 0.0
    %2312 = vmatprep.subr.mxu0 0.0
    %2313 = vmatpush1.msra.mxu0 0.0
    %2314 = vmatprep.subr.mxu0 0.0
    %2315 = vmatpush1.msra.mxu0 0.0
    %2316 = vmatprep.subr.mxu0 0.0
    %2317 = vmatpush1.msra.mxu0 0.0
    %2318 = vmatprep.subr.mxu0 0.0
    %2319 = vmatpush1.msra.mxu0 0.0
    %2320 = vmatprep.subr.mxu0 0.0
    %2321 = vmatpush1.msra.mxu0 0.0
    %2322 = vmatprep.subr.mxu0 0.0
    %2323 = vmatpush1.msra.mxu0 0.0
    %2324 = vmatprep.subr.mxu0 0.0
    %2325 = vmatpush1.msra.mxu0 0.0
    %2326 = vmatprep.subr.mxu0 0.0
    %2327 = vmatpush1.msra.mxu0 0.0
    %2328 = vmatprep.subr.mxu0 0.0
    %2329 = vmatpush1.msra.mxu0 0.0
    %2330 = vmatprep.subr.mxu0 0.0
    %2331 = vmatpush1.msra.mxu0 %v2298
    %2332 = vmatprep.subr.mxu0 0.0
    %2333 = vmatpush2.msra.mxu0 0.0
    %2334 = vmatprep.subr.mxu0 0.0
    %2335 = vmatpush2.msra.mxu0 0.0
    %2336 = vmatprep.subr.mxu0 0.0
    %2337 = vmatpush2.msra.mxu0 0.0
    %2338 = vmatprep.subr.mxu0 0.0
    %2339 = vmatpush2.msra.mxu0 0.0
    %2340 = vmatprep.subr.mxu0 0.0
    %2341 = vmatpush2.msra.mxu0 0.0
    %2342 = vmatprep.subr.mxu0 0.0
    %2343 = vmatpush2.msra.mxu0 0.0
    %2344 = vmatprep.subr.mxu0 0.0
    %2345 = vmatpush2.msra.mxu0 0.0
    %2346 = vmatprep.subr.mxu0 0.0
    %2347 = vmatpush2.msra.mxu0 0.0
    %2348 = vmatprep.subr.mxu0 0.0
    %2349 = vmatpush2.msra.mxu0 0.0
    %2350 = vmatprep.subr.mxu0 0.0
    %2351 = vmatpush2.msra.mxu0 0.0
    %2352 = vmatprep.subr.mxu0 0.0
    %2353 = vmatpush2.msra.mxu0 0.0
    %2354 = vmatprep.subr.mxu0 0.0
    %2355 = vmatpush2.msra.mxu0 0.0
    %2356 = vmatprep.subr.mxu0 0.0
    %2357 = vmatpush2.msra.mxu0 0.0
    %2358 = vmatprep.subr.mxu0 0.0
    %2359 = vmatpush2.msra.mxu0 0.0
    %2360 = vmatprep.subr.mxu0 0.0
    %2361 = vmatpush2.msra.mxu0 0.0
    %2362 = vmatprep.subr.mxu0 0.0
    %2363 = vmatpush2.msra.mxu0 0.0
    %2364 = vmatprep.mubr.f32.mxu0 0.0
    %2365 = vmatmul.mubr.f32.gmra.mxu0 %v2105
    %v2366 = vpop.f32.mrf.mxu0
    %v2367 = vadd.f32 0.0, %v2366
    %v2368 = vpop.f32.mrf.mxu0
    %2369 = vmatprep.mubr.f32.mxu0 0.0
    %2370 = vmatmul.mubr.f32.gmra.mxu0 %v2108
    %v2371 = vpop.f32.mrf.mxu0
    %v2372 = vadd.f32 0.0, %v2371
    %v2373 = vpop.f32.mrf.mxu0
    %2374 = vmatprep.mubr.f32.mxu0 0.0
    %2375 = vmatmul.mubr.f32.gmra.mxu0 %v2111
    %v2376 = vpop.f32.mrf.mxu0
    %v2377 = vadd.f32 0.0, %v2376
    %v2378 = vpop.f32.mrf.mxu0
    %2379 = vmatprep.mubr.f32.mxu0 0.0
    %2380 = vmatmul.mubr.f32.gmra.mxu0 %v2114
    %v2381 = vpop.f32.mrf.mxu0
    %v2382 = vadd.f32 0.0, %v2381
    %v2383 = vpop.f32.mrf.mxu0
    %2384 = vmatprep.mubr.f32.mxu0 0.0
    %2385 = vmatmul.mubr.f32.gmra.mxu0 %v2117
    %v2386 = vpop.f32.mrf.mxu0
    %v2387 = vadd.f32 0.0, %v2386
    %v2388 = vpop.f32.mrf.mxu0
    %2389 = vmatprep.mubr.f32.mxu0 0.0
    %2390 = vmatmul.mubr.f32.gmra.mxu0 %v2120
    %v2391 = vpop.f32.mrf.mxu0
    %v2392 = vadd.f32 0.0, %v2391
    %v2393 = vpop.f32.mrf.mxu0
    %2394 = vmatprep.mubr.f32.mxu0 0.0
    %2395 = vmatmul.mubr.f32.gmra.mxu0 %v2123
    %v2396 = vpop.f32.mrf.mxu0
    %v2397 = vadd.f32 0.0, %v2396
    %v2398 = vpop.f32.mrf.mxu0
    %2399 = vmatprep.mubr.f32.mxu0 0.0
    %2400 = vmatmul.mubr.f32.gmra.mxu0 %v2126
    %v2401 = vpop.f32.mrf.mxu0
    %v2402 = vadd.f32 0.0, %v2401
    %v2403 = vpop.f32.mrf.mxu0
    %2404 = vmatprep.mubr.f32.mxu0 0.0
    %2405 = vmatmul.mubr.f32.gmra.mxu0 %v2129
    %v2406 = vpop.f32.mrf.mxu0
    %v2407 = vadd.f32 0.0, %v2406
    %v2408 = vpop.f32.mrf.mxu0
    %2409 = vmatprep.mubr.f32.mxu0 0.0
    %2410 = vmatmul.mubr.f32.gmra.mxu0 %v2132
    %v2411 = vpop.f32.mrf.mxu0
    %v2412 = vadd.f32 0.0, %v2411
    %v2413 = vpop.f32.mrf.mxu0
    %2414 = vmatprep.mubr.f32.mxu0 0.0
    %2415 = vmatmul.mubr.f32.gmra.mxu0 %v2135
    %v2416 = vpop.f32.mrf.mxu0
    %v2417 = vadd.f32 0.0, %v2416
    %v2418 = vpop.f32.mrf.mxu0
    %2419 = vmatprep.mubr.f32.mxu0 0.0
    %2420 = vmatmul.mubr.f32.gmra.mxu0 %v2138
    %v2421 = vpop.f32.mrf.mxu0
    %v2422 = vadd.f32 0.0, %v2421
    %v2423 = vpop.f32.mrf.mxu0
    %2424 = vmatprep.mubr.f32.mxu0 0.0
    %2425 = vmatmul.mubr.f32.gmra.mxu0 %v2141
    %v2426 = vpop.f32.mrf.mxu0
    %v2427 = vadd.f32 0.0, %v2426
    %v2428 = vpop.f32.mrf.mxu0
    %2429 = vmatprep.mubr.f32.mxu0 0.0
    %2430 = vmatmul.mubr.f32.gmra.mxu0 %v2144
    %v2431 = vpop.f32.mrf.mxu0
    %v2432 = vadd.f32 0.0, %v2431
    %v2433 = vpop.f32.mrf.mxu0
    %2434 = vmatprep.mubr.f32.mxu0 0.0
    %2435 = vmatmul.mubr.f32.gmra.mxu0 %v2147
    %v2436 = vpop.f32.mrf.mxu0
    %v2437 = vadd.f32 0.0, %v2436
    %v2438 = vpop.f32.mrf.mxu0
    %2439 = vmatprep.mubr.f32.mxu0 0.0
    %2440 = vmatmul.mubr.f32.gmra.mxu0 %v2150
    %v2441 = vpop.f32.mrf.mxu0
    %v2442 = vadd.f32 0.0, %v2441
    %v2443 = vpop.f32.mrf.mxu0
    %2444 = vmatprep.mubr.f32.mxu0 0.0
    %2445 = vmatmul.mubr.f32.gmra.mxu0 %v2153
    %v2446 = vpop.f32.mrf.mxu0
    %v2447 = vadd.f32 0.0, %v2446
    %v2448 = vpop.f32.mrf.mxu0
    %2449 = vmatprep.mubr.f32.mxu0 0.0
    %2450 = vmatmul.mubr.f32.gmra.mxu0 %v2156
    %v2451 = vpop.f32.mrf.mxu0
    %v2452 = vadd.f32 0.0, %v2451
    %v2453 = vpop.f32.mrf.mxu0
    %2454 = vmatprep.mubr.f32.mxu0 0.0
    %2455 = vmatmul.mubr.f32.gmra.mxu0 %v2159
    %v2456 = vpop.f32.mrf.mxu0
    %v2457 = vadd.f32 0.0, %v2456
    %v2458 = vpop.f32.mrf.mxu0
    %2459 = vmatprep.mubr.f32.mxu0 0.0
    %2460 = vmatmul.mubr.f32.gmra.mxu0 %v2162
    %v2461 = vpop.f32.mrf.mxu0
    %v2462 = vadd.f32 0.0, %v2461
    %v2463 = vpop.f32.mrf.mxu0
    %2464 = vmatprep.mubr.f32.mxu0 0.0
    %2465 = vmatmul.mubr.f32.gmra.mxu0 %v2165
    %v2466 = vpop.f32.mrf.mxu0
    %v2467 = vadd.f32 0.0, %v2466
    %v2468 = vpop.f32.mrf.mxu0
    %2469 = vmatprep.mubr.f32.mxu0 0.0
    %2470 = vmatmul.mubr.f32.gmra.mxu0 %v2168
    %v2471 = vpop.f32.mrf.mxu0
    %v2472 = vadd.f32 0.0, %v2471
    %v2473 = vpop.f32.mrf.mxu0
    %2474 = vmatprep.mubr.f32.mxu0 0.0
    %2475 = vmatmul.mubr.f32.gmra.mxu0 %v2171
    %v2476 = vpop.f32.mrf.mxu0
    %v2477 = vadd.f32 0.0, %v2476
    %v2478 = vpop.f32.mrf.mxu0
    %2479 = vmatprep.mubr.f32.mxu0 0.0
    %2480 = vmatmul.mubr.f32.gmra.mxu0 %v2174
    %v2481 = vpop.f32.mrf.mxu0
    %v2482 = vadd.f32 0.0, %v2481
    %v2483 = vpop.f32.mrf.mxu0
    %2484 = vmatprep.mubr.f32.mxu0 0.0
    %2485 = vmatmul.mubr.f32.gmra.mxu0 %v2177
    %v2486 = vpop.f32.mrf.mxu0
    %v2487 = vadd.f32 0.0, %v2486
    %v2488 = vpop.f32.mrf.mxu0
    %2489 = vmatprep.mubr.f32.mxu0 0.0
    %2490 = vmatmul.mubr.f32.gmra.mxu0 %v2180
    %v2491 = vpop.f32.mrf.mxu0
    %v2492 = vadd.f32 0.0, %v2491
    %v2493 = vpop.f32.mrf.mxu0
    %2494 = vmatprep.mubr.f32.mxu0 0.0
    %2495 = vmatmul.mubr.f32.gmra.mxu0 %v2183
    %v2496 = vpop.f32.mrf.mxu0
    %v2497 = vadd.f32 0.0, %v2496
    %v2498 = vpop.f32.mrf.mxu0
    %2499 = vmatprep.mubr.f32.mxu0 0.0
    %2500 = vmatmul.mubr.f32.gmra.mxu0 %v2186
    %v2501 = vpop.f32.mrf.mxu0
    %v2502 = vadd.f32 0.0, %v2501
    %v2503 = vpop.f32.mrf.mxu0
    %2504 = vmatprep.mubr.f32.mxu0 0.0
    %2505 = vmatmul.mubr.f32.gmra.mxu0 %v2189
    %v2506 = vpop.f32.mrf.mxu0
    %v2507 = vadd.f32 0.0, %v2506
    %v2508 = vpop.f32.mrf.mxu0
    %2509 = vmatprep.mubr.f32.mxu0 0.0
    %2510 = vmatmul.mubr.f32.gmra.mxu0 %v2192
    %v2511 = vpop.f32.mrf.mxu0
    %v2512 = vadd.f32 0.0, %v2511
    %v2513 = vpop.f32.mrf.mxu0
    %2514 = vmatprep.mubr.f32.mxu0 0.0
    %2515 = vmatmul.mubr.f32.gmra.mxu0 %v2195
    %v2516 = vpop.f32.mrf.mxu0
    %v2517 = vadd.f32 0.0, %v2516
    %v2518 = vpop.f32.mrf.mxu0
    %2519 = vmatprep.mubr.f32.mxu0 0.0
    %2520 = vmatmul.mubr.f32.gmra.mxu0 %v2198
    %v2521 = vpop.f32.mrf.mxu0
    %v2522 = vadd.f32 0.0, %v2521
    %v2523 = vpop.f32.mrf.mxu0
    %2524 = vmatprep.mubr.f32.mxu0 0.0
    %2525 = vmatmul.mubr.f32.gmra.mxu0 %v2201
    %v2526 = vpop.f32.mrf.mxu0
    %v2527 = vadd.f32 0.0, %v2526
    %v2528 = vpop.f32.mrf.mxu0
    %2529 = vmatprep.mubr.f32.mxu0 0.0
    %2530 = vmatmul.mubr.f32.gmra.mxu0 %v2204
    %v2531 = vpop.f32.mrf.mxu0
    %v2532 = vadd.f32 0.0, %v2531
    %v2533 = vpop.f32.mrf.mxu0
    %2534 = vmatprep.mubr.f32.mxu0 0.0
    %2535 = vmatmul.mubr.f32.gmra.mxu0 %v2207
    %v2536 = vpop.f32.mrf.mxu0
    %v2537 = vadd.f32 0.0, %v2536
    %v2538 = vpop.f32.mrf.mxu0
    %2539 = vmatprep.mubr.f32.mxu0 0.0
    %2540 = vmatmul.mubr.f32.gmra.mxu0 %v2210
    %v2541 = vpop.f32.mrf.mxu0
    %v2542 = vadd.f32 0.0, %v2541
    %v2543 = vpop.f32.mrf.mxu0
    %2544 = vmatprep.mubr.f32.mxu0 0.0
    %2545 = vmatmul.mubr.f32.gmra.mxu0 %v2213
    %v2546 = vpop.f32.mrf.mxu0
    %v2547 = vadd.f32 0.0, %v2546
    %v2548 = vpop.f32.mrf.mxu0
    %2549 = vmatprep.mubr.f32.mxu0 0.0
    %2550 = vmatmul.mubr.f32.gmra.mxu0 %v2216
    %v2551 = vpop.f32.mrf.mxu0
    %v2552 = vadd.f32 0.0, %v2551
    %v2553 = vpop.f32.mrf.mxu0
    %2554 = vmatprep.mubr.f32.mxu0 0.0
    %2555 = vmatmul.mubr.f32.gmra.mxu0 %v2219
    %v2556 = vpop.f32.mrf.mxu0
    %v2557 = vadd.f32 0.0, %v2556
    %v2558 = vpop.f32.mrf.mxu0
    %2559 = vmatprep.mubr.f32.mxu0 0.0
    %2560 = vmatmul.mubr.f32.gmra.mxu0 %v2222
    %v2561 = vpop.f32.mrf.mxu0
    %v2562 = vadd.f32 0.0, %v2561
    %v2563 = vpop.f32.mrf.mxu0
    %2564 = vmatprep.mubr.f32.mxu0 0.0
    %2565 = vmatmul.mubr.f32.gmra.mxu0 %v2225
    %v2566 = vpop.f32.mrf.mxu0
    %v2567 = vadd.f32 0.0, %v2566
    %v2568 = vpop.f32.mrf.mxu0
    %2569 = vmatprep.mubr.f32.mxu0 0.0
    %2570 = vmatmul.mubr.f32.gmra.mxu0 %v2228
    %v2571 = vpop.f32.mrf.mxu0
    %v2572 = vadd.f32 0.0, %v2571
    %v2573 = vpop.f32.mrf.mxu0
    %2574 = vmatprep.mubr.f32.mxu0 0.0
    %2575 = vmatmul.mubr.f32.gmra.mxu0 %v2231
    %v2576 = vpop.f32.mrf.mxu0
    %v2577 = vadd.f32 0.0, %v2576
    %v2578 = vpop.f32.mrf.mxu0
    %2579 = vmatprep.mubr.f32.mxu0 0.0
    %2580 = vmatmul.mubr.f32.gmra.mxu0 %v2234
    %v2581 = vpop.f32.mrf.mxu0
    %v2582 = vadd.f32 0.0, %v2581
    %v2583 = vpop.f32.mrf.mxu0
    %2584 = vmatprep.mubr.f32.mxu0 0.0
    %2585 = vmatmul.mubr.f32.gmra.mxu0 %v2237
    %v2586 = vpop.f32.mrf.mxu0
    %v2587 = vadd.f32 0.0, %v2586
    %v2588 = vpop.f32.mrf.mxu0
    %2589 = vmatprep.mubr.f32.mxu0 0.0
    %2590 = vmatmul.mubr.f32.gmra.mxu0 %v2240
    %v2591 = vpop.f32.mrf.mxu0
    %v2592 = vadd.f32 0.0, %v2591
    %v2593 = vpop.f32.mrf.mxu0
    %2594 = vmatprep.mubr.f32.mxu0 0.0
    %2595 = vmatmul.mubr.f32.gmra.mxu0 %v2243
    %v2596 = vpop.f32.mrf.mxu0
    %v2597 = vadd.f32 0.0, %v2596
    %v2598 = vpop.f32.mrf.mxu0
    %2599 = vmatprep.mubr.f32.mxu0 0.0
    %2600 = vmatmul.mubr.f32.gmra.mxu0 %v2246
    %v2601 = vpop.f32.mrf.mxu0
    %v2602 = vadd.f32 0.0, %v2601
    %v2603 = vpop.f32.mrf.mxu0
    %2604 = vmatprep.mubr.f32.mxu0 0.0
    %2605 = vmatmul.mubr.f32.gmra.mxu0 %v2249
    %v2606 = vpop.f32.mrf.mxu0
    %v2607 = vadd.f32 0.0, %v2606
    %v2608 = vpop.f32.mrf.mxu0
    %2609 = vmatprep.mubr.f32.mxu0 0.0
    %2610 = vmatmul.mubr.f32.gmra.mxu0 %v2252
    %v2611 = vpop.f32.mrf.mxu0
    %v2612 = vadd.f32 0.0, %v2611
    %v2613 = vpop.f32.mrf.mxu0
    %2614 = vmatprep.mubr.f32.mxu0 0.0
    %2615 = vmatmul.mubr.f32.gmra.mxu0 %v2255
    %v2616 = vpop.f32.mrf.mxu0
    %v2617 = vadd.f32 0.0, %v2616
    %v2618 = vpop.f32.mrf.mxu0
    %2619 = vmatprep.mubr.f32.mxu0 0.0
    %2620 = vmatmul.mubr.f32.gmra.mxu0 %v2258
    %v2621 = vpop.f32.mrf.mxu0
    %v2622 = vadd.f32 0.0, %v2621
    %v2623 = vpop.f32.mrf.mxu0
    %2624 = vmatprep.mubr.f32.mxu0 0.0
    %2625 = vmatmul.mubr.f32.gmra.mxu0 %v2261
    %v2626 = vpop.f32.mrf.mxu0
    %v2627 = vadd.f32 0.0, %v2626
    %v2628 = vpop.f32.mrf.mxu0
    %2629 = vmatprep.mubr.f32.mxu0 0.0
    %2630 = vmatmul.mubr.f32.gmra.mxu0 %v2264
    %v2631 = vpop.f32.mrf.mxu0
    %v2632 = vadd.f32 0.0, %v2631
    %v2633 = vpop.f32.mrf.mxu0
    %2634 = vmatprep.mubr.f32.mxu0 0.0
    %2635 = vmatmul.mubr.f32.gmra.mxu0 %v2267
    %v2636 = vpop.f32.mrf.mxu0
    %v2637 = vadd.f32 0.0, %v2636
    %v2638 = vpop.f32.mrf.mxu0
    %2639 = vmatprep.mubr.f32.mxu0 0.0
    %2640 = vmatmul.mubr.f32.gmra.mxu0 %v2270
    %v2641 = vpop.f32.mrf.mxu0
    %v2642 = vadd.f32 0.0, %v2641
    %v2643 = vpop.f32.mrf.mxu0
    %2644 = vmatprep.mubr.f32.mxu0 0.0
    %2645 = vmatmul.mubr.f32.gmra.mxu0 %v2273
    %v2646 = vpop.f32.mrf.mxu0
    %v2647 = vadd.f32 0.0, %v2646
    %v2648 = vpop.f32.mrf.mxu0
    %2649 = vmatprep.mubr.f32.mxu0 0.0
    %2650 = vmatmul.mubr.f32.gmra.mxu0 %v2276
    %v2651 = vpop.f32.mrf.mxu0
    %v2652 = vadd.f32 0.0, %v2651
    %v2653 = vpop.f32.mrf.mxu0
    %2654 = vmatprep.mubr.f32.mxu0 0.0
    %2655 = vmatmul.mubr.f32.gmra.mxu0 %v2279
    %v2656 = vpop.f32.mrf.mxu0
    %v2657 = vadd.f32 0.0, %v2656
    %v2658 = vpop.f32.mrf.mxu0
    %2659 = vmatprep.mubr.f32.mxu0 0.0
    %2660 = vmatmul.mubr.f32.gmra.mxu0 %v2282
    %v2661 = vpop.f32.mrf.mxu0
    %v2662 = vadd.f32 0.0, %v2661
    %v2663 = vpop.f32.mrf.mxu0
    %2664 = vmatprep.mubr.f32.mxu0 0.0
    %2665 = vmatmul.mubr.f32.gmra.mxu0 %v2285
    %v2666 = vpop.f32.mrf.mxu0
    %v2667 = vadd.f32 0.0, %v2666
    %v2668 = vpop.f32.mrf.mxu0
    %2669 = vmatprep.mubr.f32.mxu0 0.0
    %2670 = vmatmul.mubr.f32.gmra.mxu0 %v2288
    %v2671 = vpop.f32.mrf.mxu0
    %v2672 = vadd.f32 0.0, %v2671
    %v2673 = vpop.f32.mrf.mxu0
    %2674 = vmatprep.mubr.f32.mxu0 0.0
    %2675 = vmatmul.mubr.f32.gmra.mxu0 %v2291
    %v2676 = vpop.f32.mrf.mxu0
    %v2677 = vadd.f32 0.0, %v2676
    %v2678 = vpop.f32.mrf.mxu0
    %2679 = vmatprep.mubr.f32.mxu0 0.0
    %2680 = vmatmul.mubr.f32.gmra.mxu0 %v2294
    %v2681 = vpop.f32.mrf.mxu0
    %v2682 = vadd.f32 0.0, %v2681
    %v2683 = vpop.f32.mrf.mxu0
    %2684 = vdwg.mxu0
    %2685 = vrot.lane.b32.xlu0 %v208, 96
    %v2686 = vpop.permute.xlu0 %2685
    %2687 = vrot.lane.b32.xlu0 %v213, 96
    %v2688 = vpop.permute.xlu0 %2687
    %2689 = vrot.lane.b32.xlu0 %v218, 96
    %v2690 = vpop.permute.xlu0 %2689
    %2691 = vrot.lane.b32.xlu0 %v223, 96
    %v2692 = vpop.permute.xlu0 %2691
    %v2697 = vmul.f32 %v2367, %v2686
    %v2698 = vmul.f32 %v2372, %v2688
    %v2699 = vmul.f32 %v2377, %v2686
    %v2700 = vmul.f32 %v2382, %v2688
    %v2701 = vmul.f32 %v2387, %v2686
    %v2702 = vmul.f32 %v2392, %v2688
    %v2703 = vmul.f32 %v2397, %v2686
    %v2704 = vmul.f32 %v2402, %v2688
    %v2705 = vmul.f32 %v2407, %v2686
    %v2706 = vmul.f32 %v2412, %v2688
    %v2707 = vmul.f32 %v2417, %v2686
    %v2708 = vmul.f32 %v2422, %v2688
    %v2709 = vmul.f32 %v2427, %v2686
    %v2710 = vmul.f32 %v2432, %v2688
    %v2711 = vmul.f32 %v2437, %v2686
    %v2712 = vmul.f32 %v2442, %v2688
    %v2713 = vmul.f32 %v2447, %v2686
    %v2714 = vmul.f32 %v2452, %v2688
    %v2715 = vmul.f32 %v2457, %v2686
    %v2716 = vmul.f32 %v2462, %v2688
    %v2717 = vmul.f32 %v2467, %v2686
    %v2718 = vmul.f32 %v2472, %v2688
    %v2719 = vmul.f32 %v2477, %v2686
    %v2720 = vmul.f32 %v2482, %v2688
    %v2721 = vmul.f32 %v2487, %v2686
    %v2722 = vmul.f32 %v2492, %v2688
    %v2723 = vmul.f32 %v2497, %v2686
    %v2724 = vmul.f32 %v2502, %v2688
    %v2725 = vmul.f32 %v2507, %v2686
    %v2726 = vmul.f32 %v2512, %v2688
    %v2727 = vmul.f32 %v2517, %v2686
    %v2728 = vmul.f32 %v2522, %v2688
    %v2729 = vmul.f32 %v2527, %v2690
    %v2730 = vmul.f32 %v2532, %v2692
    %v2731 = vmul.f32 %v2537, %v2690
    %v2732 = vmul.f32 %v2542, %v2692
    %v2733 = vmul.f32 %v2547, %v2690
    %v2734 = vmul.f32 %v2552, %v2692
    %v2735 = vmul.f32 %v2557, %v2690
    %v2736 = vmul.f32 %v2562, %v2692
    %v2737 = vmul.f32 %v2567, %v2690
    %v2738 = vmul.f32 %v2572, %v2692
    %v2739 = vmul.f32 %v2577, %v2690
    %v2740 = vmul.f32 %v2582, %v2692
    %v2741 = vmul.f32 %v2587, %v2690
    %v2742 = vmul.f32 %v2592, %v2692
    %v2743 = vmul.f32 %v2597, %v2690
    %v2744 = vmul.f32 %v2602, %v2692
    %v2745 = vmul.f32 %v2607, %v2690
    %v2746 = vmul.f32 %v2612, %v2692
    %v2747 = vmul.f32 %v2617, %v2690
    %v2748 = vmul.f32 %v2622, %v2692
    %v2749 = vmul.f32 %v2627, %v2690
    %v2750 = vmul.f32 %v2632, %v2692
    %v2751 = vmul.f32 %v2637, %v2690
    %v2752 = vmul.f32 %v2642, %v2692
    %v2753 = vmul.f32 %v2647, %v2690
    %v2754 = vmul.f32 %v2652, %v2692
    %v2755 = vmul.f32 %v2657, %v2690
    %v2756 = vmul.f32 %v2662, %v2692
    %v2757 = vmul.f32 %v2667, %v2690
    %v2758 = vmul.f32 %v2672, %v2692
    %v2759 = vmul.f32 %v2677, %v2690
    %v2760 = vmul.f32 %v2682, %v2692
    %v2761 = vsel %vm52, %v2697, 0.0
    %v2762 = vsel %vm52, %v2698, 0.0
    %v2763 = vadd.f32 %v2761, %v2762
    %v2764 = vrot.slane %v2763, 4
    %v2765 = vadd.f32 %v2763, %v2764
    %v2766 = vrot.slane %v2765, 2
    %v2767 = vadd.f32 %v2765, %v2766
    %v2768 = vrot.slane %v2767, 1
    %v2769 = vadd.f32 %v2767, %v2768
    %v2770 = vsel %vm52, %v2699, 0.0
    %v2771 = vsel %vm52, %v2700, 0.0
    %v2772 = vadd.f32 %v2770, %v2771
    %v2773 = vrot.slane %v2772, 4
    %v2774 = vadd.f32 %v2772, %v2773
    %v2775 = vrot.slane %v2774, 2
    %v2776 = vadd.f32 %v2774, %v2775
    %v2777 = vrot.slane %v2776, 1
    %v2778 = vadd.f32 %v2776, %v2777
    %v2779 = vsel %vm52, %v2701, 0.0
    %v2780 = vsel %vm52, %v2702, 0.0
    %v2781 = vadd.f32 %v2779, %v2780
    %v2782 = vrot.slane %v2781, 4
    %v2783 = vadd.f32 %v2781, %v2782
    %v2784 = vrot.slane %v2783, 2
    %v2785 = vadd.f32 %v2783, %v2784
    %v2786 = vrot.slane %v2785, 1
    %v2787 = vadd.f32 %v2785, %v2786
    %v2788 = vsel %vm52, %v2703, 0.0
    %v2789 = vsel %vm52, %v2704, 0.0
    %v2790 = vadd.f32 %v2788, %v2789
    %v2791 = vrot.slane %v2790, 4
    %v2792 = vadd.f32 %v2790, %v2791
    %v2793 = vrot.slane %v2792, 2
    %v2794 = vadd.f32 %v2792, %v2793
    %v2795 = vrot.slane %v2794, 1
    %v2796 = vadd.f32 %v2794, %v2795
    %v2797 = vsel %vm52, %v2705, 0.0
    %v2798 = vsel %vm52, %v2706, 0.0
    %v2799 = vadd.f32 %v2797, %v2798
    %v2800 = vrot.slane %v2799, 4
    %v2801 = vadd.f32 %v2799, %v2800
    %v2802 = vrot.slane %v2801, 2
    %v2803 = vadd.f32 %v2801, %v2802
    %v2804 = vrot.slane %v2803, 1
    %v2805 = vadd.f32 %v2803, %v2804
    %v2806 = vsel %vm52, %v2707, 0.0
    %v2807 = vsel %vm52, %v2708, 0.0
    %v2808 = vadd.f32 %v2806, %v2807
    %v2809 = vrot.slane %v2808, 4
    %v2810 = vadd.f32 %v2808, %v2809
    %v2811 = vrot.slane %v2810, 2
    %v2812 = vadd.f32 %v2810, %v2811
    %v2813 = vrot.slane %v2812, 1
    %v2814 = vadd.f32 %v2812, %v2813
    %v2815 = vsel %vm52, %v2709, 0.0
    %v2816 = vsel %vm52, %v2710, 0.0
    %v2817 = vadd.f32 %v2815, %v2816
    %v2818 = vrot.slane %v2817, 4
    %v2819 = vadd.f32 %v2817, %v2818
    %v2820 = vrot.slane %v2819, 2
    %v2821 = vadd.f32 %v2819, %v2820
    %v2822 = vrot.slane %v2821, 1
    %v2823 = vadd.f32 %v2821, %v2822
    %v2824 = vsel %vm52, %v2711, 0.0
    %v2825 = vsel %vm52, %v2712, 0.0
    %v2826 = vadd.f32 %v2824, %v2825
    %v2827 = vrot.slane %v2826, 4
    %v2828 = vadd.f32 %v2826, %v2827
    %v2829 = vrot.slane %v2828, 2
    %v2830 = vadd.f32 %v2828, %v2829
    %v2831 = vrot.slane %v2830, 1
    %v2832 = vadd.f32 %v2830, %v2831
    %v2833 = vsel %vm52, %v2713, 0.0
    %v2834 = vsel %vm52, %v2714, 0.0
    %v2835 = vadd.f32 %v2833, %v2834
    %v2836 = vrot.slane %v2835, 4
    %v2837 = vadd.f32 %v2835, %v2836
    %v2838 = vrot.slane %v2837, 2
    %v2839 = vadd.f32 %v2837, %v2838
    %v2840 = vrot.slane %v2839, 1
    %v2841 = vadd.f32 %v2839, %v2840
    %v2842 = vsel %vm52, %v2715, 0.0
    %v2843 = vsel %vm52, %v2716, 0.0
    %v2844 = vadd.f32 %v2842, %v2843
    %v2845 = vrot.slane %v2844, 4
    %v2846 = vadd.f32 %v2844, %v2845
    %v2847 = vrot.slane %v2846, 2
    %v2848 = vadd.f32 %v2846, %v2847
    %v2849 = vrot.slane %v2848, 1
    %v2850 = vadd.f32 %v2848, %v2849
    %v2851 = vsel %vm52, %v2717, 0.0
    %v2852 = vsel %vm52, %v2718, 0.0
    %v2853 = vadd.f32 %v2851, %v2852
    %v2854 = vrot.slane %v2853, 4
    %v2855 = vadd.f32 %v2853, %v2854
    %v2856 = vrot.slane %v2855, 2
    %v2857 = vadd.f32 %v2855, %v2856
    %v2858 = vrot.slane %v2857, 1
    %v2859 = vadd.f32 %v2857, %v2858
    %v2860 = vsel %vm52, %v2719, 0.0
    %v2861 = vsel %vm52, %v2720, 0.0
    %v2862 = vadd.f32 %v2860, %v2861
    %v2863 = vrot.slane %v2862, 4
    %v2864 = vadd.f32 %v2862, %v2863
    %v2865 = vrot.slane %v2864, 2
    %v2866 = vadd.f32 %v2864, %v2865
    %v2867 = vrot.slane %v2866, 1
    %v2868 = vadd.f32 %v2866, %v2867
    %v2869 = vsel %vm52, %v2721, 0.0
    %v2870 = vsel %vm52, %v2722, 0.0
    %v2871 = vadd.f32 %v2869, %v2870
    %v2872 = vrot.slane %v2871, 4
    %v2873 = vadd.f32 %v2871, %v2872
    %v2874 = vrot.slane %v2873, 2
    %v2875 = vadd.f32 %v2873, %v2874
    %v2876 = vrot.slane %v2875, 1
    %v2877 = vadd.f32 %v2875, %v2876
    %v2878 = vsel %vm52, %v2723, 0.0
    %v2879 = vsel %vm52, %v2724, 0.0
    %v2880 = vadd.f32 %v2878, %v2879
    %v2881 = vrot.slane %v2880, 4
    %v2882 = vadd.f32 %v2880, %v2881
    %v2883 = vrot.slane %v2882, 2
    %v2884 = vadd.f32 %v2882, %v2883
    %v2885 = vrot.slane %v2884, 1
    %v2886 = vadd.f32 %v2884, %v2885
    %v2887 = vsel %vm52, %v2725, 0.0
    %v2888 = vsel %vm52, %v2726, 0.0
    %v2889 = vadd.f32 %v2887, %v2888
    %v2890 = vrot.slane %v2889, 4
    %v2891 = vadd.f32 %v2889, %v2890
    %v2892 = vrot.slane %v2891, 2
    %v2893 = vadd.f32 %v2891, %v2892
    %v2894 = vrot.slane %v2893, 1
    %v2895 = vadd.f32 %v2893, %v2894
    %v2896 = vsel %vm52, %v2727, 0.0
    %v2897 = vsel %vm52, %v2728, 0.0
    %v2898 = vadd.f32 %v2896, %v2897
    %v2899 = vrot.slane %v2898, 4
    %v2900 = vadd.f32 %v2898, %v2899
    %v2901 = vrot.slane %v2900, 2
    %v2902 = vadd.f32 %v2900, %v2901
    %v2903 = vrot.slane %v2902, 1
    %v2904 = vadd.f32 %v2902, %v2903
    %v2905 = vsel %vm52, %v2729, 0.0
    %v2906 = vsel %vm52, %v2730, 0.0
    %v2907 = vadd.f32 %v2905, %v2906
    %v2908 = vrot.slane %v2907, 4
    %v2909 = vadd.f32 %v2907, %v2908
    %v2910 = vrot.slane %v2909, 2
    %v2911 = vadd.f32 %v2909, %v2910
    %v2912 = vrot.slane %v2911, 1
    %v2913 = vadd.f32 %v2911, %v2912
    %v2914 = vsel %vm52, %v2731, 0.0
    %v2915 = vsel %vm52, %v2732, 0.0
    %v2916 = vadd.f32 %v2914, %v2915
    %v2917 = vrot.slane %v2916, 4
    %v2918 = vadd.f32 %v2916, %v2917
    %v2919 = vrot.slane %v2918, 2
    %v2920 = vadd.f32 %v2918, %v2919
    %v2921 = vrot.slane %v2920, 1
    %v2922 = vadd.f32 %v2920, %v2921
    %v2923 = vsel %vm52, %v2733, 0.0
    %v2924 = vsel %vm52, %v2734, 0.0
    %v2925 = vadd.f32 %v2923, %v2924
    %v2926 = vrot.slane %v2925, 4
    %v2927 = vadd.f32 %v2925, %v2926
    %v2928 = vrot.slane %v2927, 2
    %v2929 = vadd.f32 %v2927, %v2928
    %v2930 = vrot.slane %v2929, 1
    %v2931 = vadd.f32 %v2929, %v2930
    %v2932 = vsel %vm52, %v2735, 0.0
    %v2933 = vsel %vm52, %v2736, 0.0
    %v2934 = vadd.f32 %v2932, %v2933
    %v2935 = vrot.slane %v2934, 4
    %v2936 = vadd.f32 %v2934, %v2935
    %v2937 = vrot.slane %v2936, 2
    %v2938 = vadd.f32 %v2936, %v2937
    %v2939 = vrot.slane %v2938, 1
    %v2940 = vadd.f32 %v2938, %v2939
    %v2941 = vsel %vm52, %v2737, 0.0
    %v2942 = vsel %vm52, %v2738, 0.0
    %v2943 = vadd.f32 %v2941, %v2942
    %v2944 = vrot.slane %v2943, 4
    %v2945 = vadd.f32 %v2943, %v2944
    %v2946 = vrot.slane %v2945, 2
    %v2947 = vadd.f32 %v2945, %v2946
    %v2948 = vrot.slane %v2947, 1
    %v2949 = vadd.f32 %v2947, %v2948
    %v2950 = vsel %vm52, %v2739, 0.0
    %v2951 = vsel %vm52, %v2740, 0.0
    %v2952 = vadd.f32 %v2950, %v2951
    %v2953 = vrot.slane %v2952, 4
    %v2954 = vadd.f32 %v2952, %v2953
    %v2955 = vrot.slane %v2954, 2
    %v2956 = vadd.f32 %v2954, %v2955
    %v2957 = vrot.slane %v2956, 1
    %v2958 = vadd.f32 %v2956, %v2957
    %v2959 = vsel %vm52, %v2741, 0.0
    %v2960 = vsel %vm52, %v2742, 0.0
    %v2961 = vadd.f32 %v2959, %v2960
    %v2962 = vrot.slane %v2961, 4
    %v2963 = vadd.f32 %v2961, %v2962
    %v2964 = vrot.slane %v2963, 2
    %v2965 = vadd.f32 %v2963, %v2964
    %v2966 = vrot.slane %v2965, 1
    %v2967 = vadd.f32 %v2965, %v2966
    %v2968 = vsel %vm52, %v2743, 0.0
    %v2969 = vsel %vm52, %v2744, 0.0
    %v2970 = vadd.f32 %v2968, %v2969
    %v2971 = vrot.slane %v2970, 4
    %v2972 = vadd.f32 %v2970, %v2971
    %v2973 = vrot.slane %v2972, 2
    %v2974 = vadd.f32 %v2972, %v2973
    %v2975 = vrot.slane %v2974, 1
    %v2976 = vadd.f32 %v2974, %v2975
    %v2977 = vsel %vm52, %v2745, 0.0
    %v2978 = vsel %vm52, %v2746, 0.0
    %v2979 = vadd.f32 %v2977, %v2978
    %v2980 = vrot.slane %v2979, 4
    %v2981 = vadd.f32 %v2979, %v2980
    %v2982 = vrot.slane %v2981, 2
    %v2983 = vadd.f32 %v2981, %v2982
    %v2984 = vrot.slane %v2983, 1
    %v2985 = vadd.f32 %v2983, %v2984
    %v2986 = vsel %vm52, %v2747, 0.0
    %v2987 = vsel %vm52, %v2748, 0.0
    %v2988 = vadd.f32 %v2986, %v2987
    %v2989 = vrot.slane %v2988, 4
    %v2990 = vadd.f32 %v2988, %v2989
    %v2991 = vrot.slane %v2990, 2
    %v2992 = vadd.f32 %v2990, %v2991
    %v2993 = vrot.slane %v2992, 1
    %v2994 = vadd.f32 %v2992, %v2993
    %v2995 = vsel %vm52, %v2749, 0.0
    %v2996 = vsel %vm52, %v2750, 0.0
    %v2997 = vadd.f32 %v2995, %v2996
    %v2998 = vrot.slane %v2997, 4
    %v2999 = vadd.f32 %v2997, %v2998
    %v3000 = vrot.slane %v2999, 2
    %v3001 = vadd.f32 %v2999, %v3000
    %v3002 = vrot.slane %v3001, 1
    %v3003 = vadd.f32 %v3001, %v3002
    %v3004 = vsel %vm52, %v2751, 0.0
    %v3005 = vsel %vm52, %v2752, 0.0
    %v3006 = vadd.f32 %v3004, %v3005
    %v3007 = vrot.slane %v3006, 4
    %v3008 = vadd.f32 %v3006, %v3007
    %v3009 = vrot.slane %v3008, 2
    %v3010 = vadd.f32 %v3008, %v3009
    %v3011 = vrot.slane %v3010, 1
    %v3012 = vadd.f32 %v3010, %v3011
    %v3013 = vsel %vm52, %v2753, 0.0
    %v3014 = vsel %vm52, %v2754, 0.0
    %v3015 = vadd.f32 %v3013, %v3014
    %v3016 = vrot.slane %v3015, 4
    %v3017 = vadd.f32 %v3015, %v3016
    %v3018 = vrot.slane %v3017, 2
    %v3019 = vadd.f32 %v3017, %v3018
    %v3020 = vrot.slane %v3019, 1
    %v3021 = vadd.f32 %v3019, %v3020
    %v3022 = vsel %vm52, %v2755, 0.0
    %v3023 = vsel %vm52, %v2756, 0.0
    %v3024 = vadd.f32 %v3022, %v3023
    %v3025 = vrot.slane %v3024, 4
    %v3026 = vadd.f32 %v3024, %v3025
    %v3027 = vrot.slane %v3026, 2
    %v3028 = vadd.f32 %v3026, %v3027
    %v3029 = vrot.slane %v3028, 1
    %v3030 = vadd.f32 %v3028, %v3029
    %v3031 = vsel %vm52, %v2757, 0.0
    %v3032 = vsel %vm52, %v2758, 0.0
    %v3033 = vadd.f32 %v3031, %v3032
    %v3034 = vrot.slane %v3033, 4
    %v3035 = vadd.f32 %v3033, %v3034
    %v3036 = vrot.slane %v3035, 2
    %v3037 = vadd.f32 %v3035, %v3036
    %v3038 = vrot.slane %v3037, 1
    %v3039 = vadd.f32 %v3037, %v3038
    %v3040 = vsel %vm52, %v2759, 0.0
    %v3041 = vsel %vm52, %v2760, 0.0
    %v3042 = vadd.f32 %v3040, %v3041
    %v3043 = vrot.slane %v3042, 4
    %v3044 = vadd.f32 %v3042, %v3043
    %v3045 = vrot.slane %v3044, 2
    %v3046 = vadd.f32 %v3044, %v3045
    %v3047 = vrot.slane %v3046, 1
    %v3048 = vadd.f32 %v3046, %v3047
    %vm3081 = vcmask 1041409
    %v3082 = vsel %vm3081, %v2778, %v2769
    %vm3083 = vcmask 1042434
    %v3084 = vsel %vm3083, %v2787, %v3082
    %vm3085 = vcmask 1043459
    %v3086 = vsel %vm3085, %v2796, %v3084
    %vm3087 = vcmask 1044484
    %v3088 = vsel %vm3087, %v2805, %v3086
    %vm3089 = vcmask 1045509
    %v3090 = vsel %vm3089, %v2814, %v3088
    %vm3091 = vcmask 1046534
    %v3092 = vsel %vm3091, %v2823, %v3090
    %vm3093 = vcmask 1047559
    %v3094 = vsel %vm3093, %v2832, %v3092
    %v3095 = vsel %vm3081, %v2850, %v2841
    %v3096 = vsel %vm3083, %v2859, %v3095
    %v3097 = vsel %vm3085, %v2868, %v3096
    %v3098 = vsel %vm3087, %v2877, %v3097
    %v3099 = vsel %vm3089, %v2886, %v3098
    %v3100 = vsel %vm3091, %v2895, %v3099
    %v3101 = vsel %vm3093, %v2904, %v3100
    %v3102 = vsel %vm3081, %v2922, %v2913
    %v3103 = vsel %vm3083, %v2931, %v3102
    %v3104 = vsel %vm3085, %v2940, %v3103
    %v3105 = vsel %vm3087, %v2949, %v3104
    %v3106 = vsel %vm3089, %v2958, %v3105
    %v3107 = vsel %vm3091, %v2967, %v3106
    %v3108 = vsel %vm3093, %v2976, %v3107
    %v3109 = vsel %vm3081, %v2994, %v2985
    %v3110 = vsel %vm3083, %v3003, %v3109
    %v3111 = vsel %vm3085, %v3012, %v3110
    %v3112 = vsel %vm3087, %v3021, %v3111
    %v3113 = vsel %vm3089, %v3030, %v3112
    %v3114 = vsel %vm3091, %v3039, %v3113
    %v3115 = vsel %vm3093, %v3048, %v3114
    %v3116 = vsel %vm52, %v3094, 0
    %v3118 = vsel %vm52, %v3101, 0
    %v3120 = vsel %vm52, %v3108, 0
    %v3122 = vsel %vm52, %v3115, 0
    %3124 = vmatprep.subr.mxu0 0.0
    %3125 = vmatpush1.msra.mxu0 0.0
    %3126 = vmatprep.subr.mxu0 0.0
    %3127 = vmatpush1.msra.mxu0 0.0
    %3128 = vmatprep.subr.mxu0 0.0
    %3129 = vmatpush1.msra.mxu0 0.0
    %3130 = vmatprep.subr.mxu0 0.0
    %3131 = vmatpush1.msra.mxu0 0.0
    %3132 = vmatprep.subr.mxu0 0.0
    %3133 = vmatpush1.msra.mxu0 0.0
    %3134 = vmatprep.subr.mxu0 0.0
    %3135 = vmatpush1.msra.mxu0 0.0
    %3136 = vmatprep.subr.mxu0 0.0
    %3137 = vmatpush1.msra.mxu0 0.0
    %3138 = vmatprep.subr.mxu0 0.0
    %3139 = vmatpush1.msra.mxu0 0.0
    %3140 = vmatprep.subr.mxu0 0.0
    %3141 = vmatpush1.msra.mxu0 0.0
    %3142 = vmatprep.subr.mxu0 0.0
    %3143 = vmatpush1.msra.mxu0 0.0
    %3144 = vmatprep.subr.mxu0 0.0
    %3145 = vmatpush1.msra.mxu0 0.0
    %3146 = vmatprep.subr.mxu0 0.0
    %3147 = vmatpush1.msra.mxu0 0.0
    %3148 = vmatprep.subr.mxu0 0.0
    %3149 = vmatpush1.msra.mxu0 0.0
    %3150 = vmatprep.subr.mxu0 0.0
    %3151 = vmatpush1.msra.mxu0 0.0
    %3152 = vmatprep.subr.mxu0 0.0
    %3153 = vmatpush1.msra.mxu0 %v34
    %3154 = vmatprep.subr.mxu0 0.0
    %3155 = vmatpush1.msra.mxu0 %v33
    %3156 = vmatprep.subr.mxu0 0.0
    %3157 = vmatpush2.msra.mxu0 0.0
    %3158 = vmatprep.subr.mxu0 0.0
    %3159 = vmatpush2.msra.mxu0 0.0
    %3160 = vmatprep.subr.mxu0 0.0
    %3161 = vmatpush2.msra.mxu0 0.0
    %3162 = vmatprep.subr.mxu0 0.0
    %3163 = vmatpush2.msra.mxu0 0.0
    %3164 = vmatprep.subr.mxu0 0.0
    %3165 = vmatpush2.msra.mxu0 0.0
    %3166 = vmatprep.subr.mxu0 0.0
    %3167 = vmatpush2.msra.mxu0 0.0
    %3168 = vmatprep.subr.mxu0 0.0
    %3169 = vmatpush2.msra.mxu0 0.0
    %3170 = vmatprep.subr.mxu0 0.0
    %3171 = vmatpush2.msra.mxu0 0.0
    %3172 = vmatprep.subr.mxu0 0.0
    %3173 = vmatpush2.msra.mxu0 0.0
    %3174 = vmatprep.subr.mxu0 0.0
    %3175 = vmatpush2.msra.mxu0 0.0
    %3176 = vmatprep.subr.mxu0 0.0
    %3177 = vmatpush2.msra.mxu0 0.0
    %3178 = vmatprep.subr.mxu0 0.0
    %3179 = vmatpush2.msra.mxu0 0.0
    %3180 = vmatprep.subr.mxu0 0.0
    %3181 = vmatpush2.msra.mxu0 0.0
    %3182 = vmatprep.subr.mxu0 0.0
    %3183 = vmatpush2.msra.mxu0 0.0
    %3184 = vmatprep.subr.mxu0 0.0
    %3185 = vmatpush2.msra.mxu0 0.0
    %3186 = vmatprep.subr.mxu0 0.0
    %3187 = vmatpush2.msra.mxu0 0.0
    %3188 = vmatprep.mubr.f32.mxu0 0.0
    %3189 = vmatmul.mubr.f32.gmra.mxu0 %v3116
    %v3190 = vpop.f32.mrf.mxu0
    %v3191 = vadd.f32 0.0, %v3190
    %v3192 = vpop.f32.mrf.mxu0
    %3193 = vmatprep.mubr.f32.mxu0 0.0
    %3194 = vmatmul.mubr.f32.gmra.mxu0 %v3118
    %v3195 = vpop.f32.mrf.mxu0
    %v3196 = vadd.f32 0.0, %v3195
    %v3197 = vpop.f32.mrf.mxu0
    %3198 = vmatprep.mubr.f32.mxu0 0.0
    %3199 = vmatmul.mubr.f32.gmra.mxu0 %v3120
    %v3200 = vpop.f32.mrf.mxu0
    %v3201 = vadd.f32 0.0, %v3200
    %v3202 = vpop.f32.mrf.mxu0
    %3203 = vmatprep.mubr.f32.mxu0 0.0
    %3204 = vmatmul.mubr.f32.gmra.mxu0 %v3122
    %v3205 = vpop.f32.mrf.mxu0
    %v3206 = vadd.f32 0.0, %v3205
    %v3207 = vpop.f32.mrf.mxu0
    %3208 = vdwg.mxu0
    %v3209 = vadd.f32 %v48, %v3191
    %v3210 = vadd.f32 %v49, %v3196
    %v3211 = vadd.f32 %v50, %v3201
    %v3212 = vadd.f32 %v51, %v3206
    %v3213 = vsel %vm52, %v3209, 0.0
    %3214 = vadd.xlane.f32.xlu0 %v3213
    %v3215 = vpop.xlane.xlu0 %3214
    %v3216 = vsel %vm52, %v3210, 0.0
    %3217 = vadd.xlane.f32.xlu0 %v3216
    %v3218 = vpop.xlane.xlu0 %3217
    %v3219 = vsel %vm52, %v3211, 0.0
    %3220 = vadd.xlane.f32.xlu0 %v3219
    %v3221 = vpop.xlane.xlu0 %3220
    %v3222 = vsel %vm52, %v3212, 0.0
    %3223 = vadd.xlane.f32.xlu0 %v3222
    %v3224 = vpop.xlane.xlu0 %3223
    %v3225 = vmul.f32 %v3209, %v3209
    %v3226 = vmul.f32 %v3210, %v3210
    %v3227 = vmul.f32 %v3211, %v3211
    %v3228 = vmul.f32 %v3212, %v3212
    %v3229 = vsel %vm52, %v3225, 0.0
    %3230 = vadd.xlane.f32.xlu0 %v3229
    %v3231 = vpop.xlane.xlu0 %3230
    %v3232 = vsel %vm52, %v3226, 0.0
    %3233 = vadd.xlane.f32.xlu0 %v3232
    %v3234 = vpop.xlane.xlu0 %3233
    %v3235 = vsel %vm52, %v3227, 0.0
    %3236 = vadd.xlane.f32.xlu0 %v3235
    %v3237 = vpop.xlane.xlu0 %3236
    %v3238 = vsel %vm52, %v3228, 0.0
    %3239 = vadd.xlane.f32.xlu0 %v3238
    %v3240 = vpop.xlane.xlu0 %3239
    %v3241 = vmul.f32 %v3215, 0.0625
    %v3242 = vmul.f32 %v3218, 0.0625
    %v3243 = vmul.f32 %v3221, 0.0625
    %v3244 = vmul.f32 %v3224, 0.0625
    %v3245 = vmul.f32 %v3231, 0.0625
    %v3246 = vmul.f32 %v3234, 0.0625
    %v3247 = vmul.f32 %v3237, 0.0625
    %v3248 = vmul.f32 %v3240, 0.0625
    %v3249 = vmul.f32 %v3241, %v3241
    %v3250 = vmul.f32 %v3242, %v3242
    %v3251 = vmul.f32 %v3243, %v3243
    %v3252 = vmul.f32 %v3244, %v3244
    %v3253 = vsub.f32 %v3245, %v3249
    %v3254 = vsub.f32 %v3246, %v3250
    %v3255 = vsub.f32 %v3247, %v3251
    %v3256 = vsub.f32 %v3248, %v3252
    %v3257 = vsub.f32 %v3209, %v3241
    %v3258 = vsub.f32 %v3210, %v3242
    %v3259 = vsub.f32 %v3211, %v3243
    %v3260 = vsub.f32 %v3212, %v3244
    %v3261 = vadd.f32 %v3253, 1e-05
    %v3262 = vadd.f32 %v3254, 1e-05
    %v3263 = vadd.f32 %v3255, 1e-05
    %v3264 = vadd.f32 %v3256, 1e-05
    %v3265 = vrsqrt.pop %v3261
    %v3266 = vrsqrt.pop %v3262
    %v3267 = vrsqrt.pop %v3263
    %v3268 = vrsqrt.pop %v3264
    %v3269 = vlaneseq
    %v3270 = vshrl.u32 %v3269, 7
    %v3271 = vsub.s32 0, %v3270
    %v3272 = vrot.slane %v27, %v3271
    %v3273 = vmul.f32 %v3265, %v3272
    %v3274 = vmul.f32 %v3266, %v3272
    %v3275 = vmul.f32 %v3267, %v3272
    %v3276 = vmul.f32 %v3268, %v3272
    %v3277 = vmul.f32 %v3257, %v3273
    %v3278 = vmul.f32 %v3258, %v3274
    %v3279 = vmul.f32 %v3259, %v3275
    %v3280 = vmul.f32 %v3260, %v3276
    %v3281 = vlaneseq
    %v3282 = vshrl.u32 %v3281, 7
    %v3283 = vsub.s32 0, %v3282
    %v3284 = vrot.slane %v28, %v3283
    %v3285 = vadd.f32 %v3277, %v3284
    %v3286 = vadd.f32 %v3278, %v3284
    %v3287 = vadd.f32 %v3279, %v3284
    %v3288 = vadd.f32 %v3280, %v3284
    %v3289 = vlaneseq
    %v3290 = vshrl.u32 %v3289, 7
    %v3291 = vsub.s32 0, %v3290
    %v3292 = vrot.slane %v29, %v3291
    %v3294 = vsel %vm52, %v3285, 0
    %v3297 = vsel %vm52, %v3286, 0
    %v3300 = vsel %vm52, %v3287, 0
    %v3303 = vsel %vm52, %v3288, 0
    %3305 = vmatprep.subr.mxu0 0.0
    %3306 = vmatpush1.msra.mxu0 0.0
    %3307 = vmatprep.subr.mxu0 0.0
    %3308 = vmatpush1.msra.mxu0 0.0
    %3309 = vmatprep.subr.mxu0 0.0
    %3310 = vmatpush1.msra.mxu0 0.0
    %3311 = vmatprep.subr.mxu0 0.0
    %3312 = vmatpush1.msra.mxu0 0.0
    %3313 = vmatprep.subr.mxu0 0.0
    %3314 = vmatpush1.msra.mxu0 0.0
    %3315 = vmatprep.subr.mxu0 0.0
    %3316 = vmatpush1.msra.mxu0 0.0
    %3317 = vmatprep.subr.mxu0 0.0
    %3318 = vmatpush1.msra.mxu0 0.0
    %3319 = vmatprep.subr.mxu0 0.0
    %3320 = vmatpush1.msra.mxu0 0.0
    %3321 = vmatprep.subr.mxu0 0.0
    %3322 = vmatpush1.msra.mxu0 0.0
    %3323 = vmatprep.subr.mxu0 0.0
    %3324 = vmatpush1.msra.mxu0 0.0
    %3325 = vmatprep.subr.mxu0 0.0
    %3326 = vmatpush1.msra.mxu0 0.0
    %3327 = vmatprep.subr.mxu0 0.0
    %3328 = vmatpush1.msra.mxu0 0.0
    %3329 = vmatprep.subr.mxu0 0.0
    %3330 = vmatpush1.msra.mxu0 0.0
    %3331 = vmatprep.subr.mxu0 0.0
    %3332 = vmatpush1.msra.mxu0 0.0
    %3333 = vmatprep.subr.mxu0 0.0
    %3334 = vmatpush1.msra.mxu0 %v36
    %3335 = vmatprep.subr.mxu0 0.0
    %3336 = vmatpush1.msra.mxu0 %v35
    %3337 = vmatprep.subr.mxu0 0.0
    %3338 = vmatpush2.msra.mxu0 0.0
    %3339 = vmatprep.subr.mxu0 0.0
    %3340 = vmatpush2.msra.mxu0 0.0
    %3341 = vmatprep.subr.mxu0 0.0
    %3342 = vmatpush2.msra.mxu0 0.0
    %3343 = vmatprep.subr.mxu0 0.0
    %3344 = vmatpush2.msra.mxu0 0.0
    %3345 = vmatprep.subr.mxu0 0.0
    %3346 = vmatpush2.msra.mxu0 0.0
    %3347 = vmatprep.subr.mxu0 0.0
    %3348 = vmatpush2.msra.mxu0 0.0
    %3349 = vmatprep.subr.mxu0 0.0
    %3350 = vmatpush2.msra.mxu0 0.0
    %3351 = vmatprep.subr.mxu0 0.0
    %3352 = vmatpush2.msra.mxu0 0.0
    %3353 = vmatprep.subr.mxu0 0.0
    %3354 = vmatpush2.msra.mxu0 0.0
    %3355 = vmatprep.subr.mxu0 0.0
    %3356 = vmatpush2.msra.mxu0 0.0
    %3357 = vmatprep.subr.mxu0 0.0
    %3358 = vmatpush2.msra.mxu0 0.0
    %3359 = vmatprep.subr.mxu0 0.0
    %3360 = vmatpush2.msra.mxu0 0.0
    %3361 = vmatprep.subr.mxu0 0.0
    %3362 = vmatpush2.msra.mxu0 0.0
    %3363 = vmatprep.subr.mxu0 0.0
    %3364 = vmatpush2.msra.mxu0 0.0
    %3365 = vmatprep.subr.mxu0 0.0
    %3366 = vmatpush2.msra.mxu0 0.0
    %3367 = vmatprep.subr.mxu0 0.0
    %3368 = vmatpush2.msra.mxu0 0.0
    %3369 = vmatprep.mubr.f32.mxu0 0.0
    %3370 = vmatmul.mubr.f32.gmra.mxu0 %v3294
    %v3371 = vpop.f32.mrf.mxu0
    %v3372 = vadd.f32 %v3292, %v3371
    %v3373 = vpop.f32.mrf.mxu0
    %3374 = vmatprep.mubr.f32.mxu0 0.0
    %3375 = vmatmul.mubr.f32.gmra.mxu0 %v3297
    %v3376 = vpop.f32.mrf.mxu0
    %v3377 = vadd.f32 %v3292, %v3376
    %v3378 = vpop.f32.mrf.mxu0
    %3379 = vmatprep.mubr.f32.mxu0 0.0
    %3380 = vmatmul.mubr.f32.gmra.mxu0 %v3300
    %v3381 = vpop.f32.mrf.mxu0
    %v3382 = vadd.f32 %v3292, %v3381
    %v3383 = vpop.f32.mrf.mxu0
    %3384 = vmatprep.mubr.f32.mxu0 0.0
    %3385 = vmatmul.mubr.f32.gmra.mxu0 %v3303
    %v3386 = vpop.f32.mrf.mxu0
    %v3387 = vadd.f32 %v3292, %v3386
    %v3388 = vpop.f32.mrf.mxu0
    %3389 = vdwg.mxu0
    %v3390 = vmul.f32 %v3372, 0.5
    %v3391 = vmul.f32 %v3377, 0.5
    %v3392 = vmul.f32 %v3382, 0.5
    %v3393 = vmul.f32 %v3387, 0.5
    %v3394 = vmul.f32 %v3372, 0.044715
    %v3395 = vmul.f32 %v3377, 0.044715
    %v3396 = vmul.f32 %v3382, 0.044715
    %v3397 = vmul.f32 %v3387, 0.044715
    %v3398 = vmul.f32 %v3394, %v3372
    %v3399 = vmul.f32 %v3395, %v3377
    %v3400 = vmul.f32 %v3396, %v3382
    %v3401 = vmul.f32 %v3397, %v3387
    %v3402 = vmul.f32 %v3398, %v3372
    %v3403 = vmul.f32 %v3399, %v3377
    %v3404 = vmul.f32 %v3400, %v3382
    %v3405 = vmul.f32 %v3401, %v3387
    %v3406 = vadd.f32 %v3372, %v3402
    %v3407 = vadd.f32 %v3377, %v3403
    %v3408 = vadd.f32 %v3382, %v3404
    %v3409 = vadd.f32 %v3387, %v3405
    %v3410 = vmul.f32 %v3406, 0.7978846
    %v3411 = vmul.f32 %v3407, 0.7978846
    %v3412 = vmul.f32 %v3408, 0.7978846
    %v3413 = vmul.f32 %v3409, 0.7978846
    %v3414 = vtanh.pop %v3410
    %v3415 = vtanh.pop %v3411
    %v3416 = vtanh.pop %v3412
    %v3417 = vtanh.pop %v3413
    %v3418 = vadd.f32 %v3414, 1.0
    %v3419 = vadd.f32 %v3415, 1.0
    %v3420 = vadd.f32 %v3416, 1.0
    %v3421 = vadd.f32 %v3417, 1.0
    %v3422 = vmul.f32 %v3390, %v3418
    %v3423 = vmul.f32 %v3391, %v3419
    %v3424 = vmul.f32 %v3392, %v3420
    %v3425 = vmul.f32 %v3393, %v3421
    %v3426 = vlaneseq
    %v3427 = vshrl.u32 %v3426, 7
    %v3428 = vsub.s32 0, %v3427
    %v3429 = vrot.slane %v30, %v3428
    %vm3430 = vcmask 523264
    %v3432 = vsel %vm3430, %v3422, 0
    %v3435 = vsel %vm3430, %v3423, 0
    %v3438 = vsel %vm3430, %v3424, 0
    %v3441 = vsel %vm3430, %v3425, 0
    %3443 = vmatprep.subr.mxu0 0.0
    %3444 = vmatpush1.msra.mxu0 0.0
    %3445 = vmatprep.subr.mxu0 0.0
    %3446 = vmatpush1.msra.mxu0 0.0
    %3447 = vmatprep.subr.mxu0 0.0
    %3448 = vmatpush1.msra.mxu0 0.0
    %3449 = vmatprep.subr.mxu0 0.0
    %3450 = vmatpush1.msra.mxu0 0.0
    %3451 = vmatprep.subr.mxu0 0.0
    %3452 = vmatpush1.msra.mxu0 0.0
    %3453 = vmatprep.subr.mxu0 0.0
    %3454 = vmatpush1.msra.mxu0 0.0
    %3455 = vmatprep.subr.mxu0 0.0
    %3456 = vmatpush1.msra.mxu0 0.0
    %3457 = vmatprep.subr.mxu0 0.0
    %3458 = vmatpush1.msra.mxu0 0.0
    %3459 = vmatprep.subr.mxu0 0.0
    %3460 = vmatpush1.msra.mxu0 %v44
    %3461 = vmatprep.subr.mxu0 0.0
    %3462 = vmatpush1.msra.mxu0 %v43
    %3463 = vmatprep.subr.mxu0 0.0
    %3464 = vmatpush1.msra.mxu0 %v42
    %3465 = vmatprep.subr.mxu0 0.0
    %3466 = vmatpush1.msra.mxu0 %v41
    %3467 = vmatprep.subr.mxu0 0.0
    %3468 = vmatpush1.msra.mxu0 %v40
    %3469 = vmatprep.subr.mxu0 0.0
    %3470 = vmatpush1.msra.mxu0 %v39
    %3471 = vmatprep.subr.mxu0 0.0
    %3472 = vmatpush1.msra.mxu0 %v38
    %3473 = vmatprep.subr.mxu0 0.0
    %3474 = vmatpush1.msra.mxu0 %v37
    %3475 = vmatprep.subr.mxu0 0.0
    %3476 = vmatpush2.msra.mxu0 0.0
    %3477 = vmatprep.subr.mxu0 0.0
    %3478 = vmatpush2.msra.mxu0 0.0
    %3479 = vmatprep.subr.mxu0 0.0
    %3480 = vmatpush2.msra.mxu0 0.0
    %3481 = vmatprep.subr.mxu0 0.0
    %3482 = vmatpush2.msra.mxu0 0.0
    %3483 = vmatprep.subr.mxu0 0.0
    %3484 = vmatpush2.msra.mxu0 0.0
    %3485 = vmatprep.subr.mxu0 0.0
    %3486 = vmatpush2.msra.mxu0 0.0
    %3487 = vmatprep.subr.mxu0 0.0
    %3488 = vmatpush2.msra.mxu0 0.0
    %3489 = vmatprep.subr.mxu0 0.0
    %3490 = vmatpush2.msra.mxu0 0.0
    %3491 = vmatprep.subr.mxu0 0.0
    %3492 = vmatpush2.msra.mxu0 0.0
    %3493 = vmatprep.subr.mxu0 0.0
    %3494 = vmatpush2.msra.mxu0 0.0
    %3495 = vmatprep.subr.mxu0 0.0
    %3496 = vmatpush2.msra.mxu0 0.0
    %3497 = vmatprep.subr.mxu0 0.0
    %3498 = vmatpush2.msra.mxu0 0.0
    %3499 = vmatprep.subr.mxu0 0.0
    %3500 = vmatpush2.msra.mxu0 0.0
    %3501 = vmatprep.subr.mxu0 0.0
    %3502 = vmatpush2.msra.mxu0 0.0
    %3503 = vmatprep.subr.mxu0 0.0
    %3504 = vmatpush2.msra.mxu0 0.0
    %3505 = vmatprep.subr.mxu0 0.0
    %3506 = vmatpush2.msra.mxu0 0.0
    %3507 = vmatprep.mubr.f32.mxu0 0.0
    %3508 = vmatmul.mubr.f32.gmra.mxu0 %v3432
    %v3509 = vpop.f32.mrf.mxu0
    %v3510 = vadd.f32 %v3429, %v3509
    %v3511 = vpop.f32.mrf.mxu0
    %3512 = vmatprep.mubr.f32.mxu0 0.0
    %3513 = vmatmul.mubr.f32.gmra.mxu0 %v3435
    %v3514 = vpop.f32.mrf.mxu0
    %v3515 = vadd.f32 %v3429, %v3514
    %v3516 = vpop.f32.mrf.mxu0
    %3517 = vmatprep.mubr.f32.mxu0 0.0
    %3518 = vmatmul.mubr.f32.gmra.mxu0 %v3438
    %v3519 = vpop.f32.mrf.mxu0
    %v3520 = vadd.f32 %v3429, %v3519
    %v3521 = vpop.f32.mrf.mxu0
    %3522 = vmatprep.mubr.f32.mxu0 0.0
    %3523 = vmatmul.mubr.f32.gmra.mxu0 %v3441
    %v3524 = vpop.f32.mrf.mxu0
    %v3525 = vadd.f32 %v3429, %v3524
    %v3526 = vpop.f32.mrf.mxu0
    %3527 = vdwg.mxu0
    %v3528 = vadd.f32 %v3209, %v3510
    %v3529 = vadd.f32 %v3210, %v3515
    %v3530 = vadd.f32 %v3211, %v3520
    %v3531 = vadd.f32 %v3212, %v3525
    %3532 = vst.msk [vmem:[%s2] sm:$0xff] %vm52, %v3528
    %3533 = vst.msk [vmem:[%s2 + $0x8] sm:$0xff] %vm52, %v3529
    %3534 = vst.msk [vmem:[%s2 + $0x10] sm:$0xff] %vm52, %v3530
    %3535 = vst.msk [vmem:[%s2 + $0x18] sm:$0xff] %vm52, %v3531
    // Predicated region
    $region14: #{tpu_custom_call.1} parent=1 // pred_check
      _
    $region15: #{tpu_custom_call.1} parent=1 // pred_check_branch
      %3537 = sbr.rel (0) target = $region17
    $region16: #{tpu_custom_call.1} parent=1 // pred_region
      _
    $region17: #{tpu_custom_call.1} parent=1 // pred_fallthru
      _
    // Predicated region
    $region18: #{tpu_custom_call.1} parent=1 // pred_check
      _
    $region19: #{tpu_custom_call.1} parent=1 // pred_check_branch
      %3539 = sbr.rel (0) target = $region21
    $region20: #{tpu_custom_call.1} parent=1 // pred_region
      _
    $region21: #{tpu_custom_call.1} parent=1 // pred_fallthru
      _
    %3540 = vsyncpa [#allocation3], 1

</llo_original>
